<compile_context>
chip_gen: v7x
topology: tpu7x:2x2x1
jax: 0.10.0
libtpu: 0.0.40
codegen_flags: <defaults>
</compile_context>

<pallas_src>
import functools
import math

import numpy as np
import jax
import jax.numpy as jnp
from jax import lax
from jax.experimental import pallas as pl
from jax.experimental.pallas import tpu as pltpu


# ----------------------------------------------------------------------------------
# Kernels
# ----------------------------------------------------------------------------------
def _pos_enc_xy_kernel(params_ref, x_ref, y_ref, z_ref, o_ref, xy_scr, *, nx, ny, nz):
    """One grid step = one (spatial chunk, batch element).

    params_ref : (2, npf, 1)  [0] = inverse frequency, [1] = phase ((k & 1) * pi/2)
    x_ref/y_ref: (1, 1, TS)   batch-invariant normalized & scaled column / row values
    z_ref      : (1, 1, TS)   per-batch normalized & scaled depth values
    o_ref      : (1, Cpos, TS)
    xy_scr     : (nx+ny, TS) f32 scratch caching the x/y channels across the batch loop
    """
    inv_dim = params_ref[0]          # (npf, 1)
    phase = params_ref[1]            # (npf, 1)

    def encode(v, n):                # v: (1, TS) -> (n, TS); one sin per element
        return jnp.sin(v * inv_dim[:n] + phase[:n])

    bi = pl.program_id(1)            # batch is the innermost ("arbitrary") grid axis

    @pl.when(bi == 0)                # batch-invariant channels: compute once per chunk
    def _():
        xy_scr[0:nx, :] = encode(x_ref[0], nx)
        xy_scr[nx:nx + ny, :] = encode(y_ref[0], ny)

    o_ref[0, 0:nx + ny, :] = xy_scr[...].astype(o_ref.dtype)
    o_ref[0, nx + ny:nx + ny + nz, :] = encode(z_ref[0], nz).astype(o_ref.dtype)


def _pos_enc_z_kernel(params_ref, z_ref, o_ref, *, nz):
    """Depth-only variant (num_pos_feats_x == 0 or num_pos_feats_y == 0)."""
    inv_dim = params_ref[0]
    phase = params_ref[1]
    o_ref[0, :, :] = jnp.sin(z_ref[0] * inv_dim[:nz] + phase[:nz]).astype(o_ref.dtype)


# ----------------------------------------------------------------------------------
# Wrapper helpers
# ----------------------------------------------------------------------------------
def _round_up(x, m):
    return (x + m - 1) // m * m


def _vmem_capacity_bytes():
    try:
        return int(pltpu.get_tpu_info().vmem_capacity_bytes)
    except Exception:
        return 64 << 20  # conservative floor (v7x has 64 MiB/TC)


def _pick_spatial_tile(hw_pad, cpos, budget_bytes):
    """Largest lane-aligned chunk TS (multiple of 128 dividing hw_pad) whose (Cpos, TS)
    f32 tile fits the budget; prefer >= 2 chunks so the 'parallel' grid axis can be
    sharded across both v7x TensorCores."""
    n128 = hw_pad // 128
    kmax = max(1, budget_bytes // (4 * cpos * 128))
    best_any, best_multi = 1, None
    for k in range(1, min(n128, kmax) + 1):
        if n128 % k:
            continue
        best_any = k
        if n128 // k >= 2:
            best_multi = k
    k = best_multi if best_multi is not None else best_any
    return k * 128


# ----------------------------------------------------------------------------------
# Public entry point
# ----------------------------------------------------------------------------------
def positional_encoding(x, depth, *, num_pos_feats_x=64, num_pos_feats_y=64,
                        num_pos_feats_z=128, temperature=10000, normalize=True,
                        scale=None, out_dtype=jnp.float32):
    if scale is not None and normalize is False:
        raise ValueError("normalize should be True if scale is passed")
    if scale is None:
        scale = 2.0 * math.pi
    b, _, h, w = x.shape
    bd, cd, hd, wd = depth.shape
    assert b == bd and cd == 1 and h == hd and w == wd

    nx, ny, nz = num_pos_feats_x, num_pos_feats_y, num_pos_feats_z
    # NOTE: mirrors the PyTorch module exactly -- x/y channels are emitted only when
    # BOTH nx and ny are nonzero (a single-zero config silently drops both, as in spec).
    have_xy = (nx != 0 and ny != 0)
    npf = max(nx, ny, nz)
    cpos = (nx + ny if have_xy else 0) + nz
    eps = 1e-6
    hw = h * w
    hw_pad = _round_up(hw, 128)

    # ---- wrapper glue: O(B*H*W) / O(H*W), vs O(B*Cpos*H*W) kernel output ------------
    z = depth[:, 0].astype(jnp.float32)                       # (B, H, W)
    if normalize:
        zmax = jnp.max(z.reshape(b, -1), axis=1)              # per-batch global max
        z = z / (zmax[:, None, None] + eps) * scale
    zflat = z.reshape(b, 1, hw)

    inputs = []
    if have_xy:
        ye = jnp.broadcast_to(jnp.arange(h, dtype=jnp.float32)[:, None], (h, w))
        xe = jnp.broadcast_to(jnp.arange(w, dtype=jnp.float32)[None, :], (h, w))
        if normalize:
            ye = ye / ((h - 1) + eps) * scale
            xe = xe / ((w - 1) + eps) * scale
        inputs += [xe.reshape(1, 1, hw), ye.reshape(1, 1, hw)]
    inputs.append(zflat)

    if hw_pad != hw:
        # Lane-density hardening: pad the flattened spatial axis so every store stays a
        # full-width vst and tiles stay bounded; pad is sliced off after the kernel.
        inputs = [jnp.pad(v, ((0, 0), (0, 0), (0, hw_pad - hw))) for v in inputs]

    # Hoisted per-channel constants (host-side, float64 -> f32): inverse frequency and
    # the phase that turns the even-sin / odd-cos interleave into a single sin.
    k64 = np.arange(npf, dtype=np.float64)
    inv_dim = np.asarray(
        float(temperature) ** (-2.0 * np.floor(k64 / 2.0) / float(npf)), dtype=np.float32)
    phase = ((np.arange(npf) % 2) * (math.pi / 2.0)).astype(np.float32)
    dim_params = jnp.asarray(np.stack([inv_dim, phase], axis=0).reshape(2, npf, 1))

    # ---- generation-aware tiling ------------------------------------------------------
    vmem_cap = _vmem_capacity_bytes()
    budget = max(1 << 20, vmem_cap // 8)          # ~8 MiB on v7x, ~16 MiB on v5e/v6e
    ts = _pick_spatial_tile(hw_pad, cpos, budget)
    n_tiles = hw_pad // ts
    grid = (n_tiles, b)                            # batch innermost -> x/y slab reused

    params_spec = pl.BlockSpec((2, npf, 1), lambda si, bi: (0, 0, 0))
    const_spec = pl.BlockSpec((1, 1, ts), lambda si, bi: (0, 0, si))    # batch-invariant
    batch_spec = pl.BlockSpec((1, 1, ts), lambda si, bi: (bi, 0, si))   # per-batch depth
    out_spec = pl.BlockSpec((1, cpos, ts), lambda si, bi: (bi, 0, si))

    if have_xy:
        kernel = functools.partial(_pos_enc_xy_kernel, nx=nx, ny=ny, nz=nz)
        in_specs = [params_spec, const_spec, const_spec, batch_spec]
        scratch_shapes = [pltpu.VMEM((nx + ny, ts), jnp.float32)]
        # batch axis "arbitrary": the x/y scratch slab is carried across it per core.
        dim_sem = ("parallel", "arbitrary")
    else:
        kernel = functools.partial(_pos_enc_z_kernel, nz=nz)
        in_specs = [params_spec, batch_spec]
        scratch_shapes = []
        dim_sem = ("parallel", "parallel")

    out = pl.pallas_call(
        kernel,
        out_shape=jax.ShapeDtypeStruct((b, cpos, hw_pad), out_dtype),
        grid_spec=pltpu.PrefetchScalarGridSpec(
            num_scalar_prefetch=0,
            grid=grid,
            in_specs=in_specs,
            out_specs=out_spec,
            scratch_shapes=scratch_shapes),
        compiler_params=pltpu.CompilerParams(
            dimension_semantics=dim_sem,
            vmem_limit_bytes=int(min(vmem_cap * 3 // 4, 100 << 20))),
    )(dim_params, *inputs)

    if hw_pad != hw:
        out = out[:, :, :hw]
    # Free minor-dim split (row-major contiguous): (B, Cpos, H*W) -> (B, Cpos, H, W).
    return out.reshape(b, cpos, h, w)


# ----------------------------------------------------------------------------------
# Pure-JAX reference (mirror of the PyTorch forward) for correctness checking
# ----------------------------------------------------------------------------------
def positional_encoding_ref(x, depth, *, num_pos_feats_x=64, num_pos_feats_y=64,
                            num_pos_feats_z=128, temperature=10000, normalize=True,
                            scale=None):
    if scale is None:
        scale = 2.0 * math.pi
    b, _, h, w = x.shape
    nx, ny, nz = num_pos_feats_x, num_pos_feats_y, num_pos_feats_z
    npf = max(nx, ny, nz)
    have_xy = (nx != 0 and ny != 0)
    if have_xy:
        y_embed = jnp.broadcast_to(jnp.arange(h, dtype=jnp.float32)[:, None], (b, h, w))
        x_embed = jnp.broadcast_to(jnp.arange(w, dtype=jnp.float32)[None, :], (b, h, w))
    z_embed = depth[:, 0].astype(jnp.float32)
    if normalize:
        eps = 1e-6
        if have_xy:
            y_embed = y_embed / (y_embed.max() + eps) * scale
            x_embed = x_embed / (x_embed.max() + eps) * scale
        z_max = z_embed.reshape(b, -1).max(axis=1)
        z_embed = z_embed / (z_max[:, None, None] + eps) * scale
    dim_t = jnp.arange(npf, dtype=jnp.float32)
    dim_t = float(temperature) ** (2.0 * jnp.floor(dim_t / 2.0) / npf)

    def interleave(p):
        s = jnp.sin(p[..., 0::2])
        c = jnp.cos(p[..., 1::2])
        return jnp.stack((s, c), axis=4).reshape(*p.shape[:3], -1)

    parts = []
    if have_xy:
        parts.append(interleave(x_embed[..., None] / dim_t[:nx]))
        parts.append(interleave(y_embed[..., None] / dim_t[:ny]))
    parts.append(interleave(z_embed[..., None] / dim_t[:nz]))
    pos = jnp.concatenate(parts, axis=3) if len(parts) > 1 else parts[0]
    return jnp.transpose(pos, (0, 3, 1, 2))


if __name__ == "__main__":
    key = jax.random.PRNGKey(0)
    kx, kd = jax.random.split(key)
    B, C, H, W = 2, 4, 16, 16
    x = jax.random.normal(kx, (B, C, H, W), jnp.float32)
    depth = jax.random.uniform(kd, (B, 1, H, W), jnp.float32, minval=0.1, maxval=8.0)

    out = positional_encoding(x, depth)
    out = jax.block_until_ready(out)
    assert out.shape == (B, 64 + 64 + 128, H, W), out.shape

    ref = positional_encoding_ref(x, depth)
    # Note: cos(x) is computed as sin(x + pi/2) in the kernel -- differs from the ref
    # only by float argument-reduction noise (~1e-7), well inside the tolerance.
    np.testing.assert_allclose(np.asarray(out), np.asarray(ref), rtol=1e-4, atol=1e-4)

    print("KERNEL_OK")
</pallas_src>

<mosaic_0001>
module attributes {stable_mosaic.version = 11 : i64} {
  func.func @_pos_enc_xy_kernel(%arg0: i32, %arg1: i32, %arg2: memref<2x128x1xf32, #tpu.memory_space<vmem>>, %arg3: memref<1x1x128xf32, #tpu.memory_space<vmem>>, %arg4: memref<1x1x128xf32, #tpu.memory_space<vmem>>, %arg5: memref<1x1x128xf32, #tpu.memory_space<vmem>>, %arg6: memref<1x256x128xf32, #tpu.memory_space<vmem>>, %arg7: memref<128x128xf32, #tpu.memory_space<vmem>>) attributes {dimension_semantics = [#tpu.dimension_semantics<parallel>, #tpu.dimension_semantics<arbitrary>], iteration_bounds = array<i64: 2, 2>, scalar_prefetch = 0 : i64, scratch_operands = 1 : i64, tpu.core_type = #tpu.core_type<tc>, window_params = [{pipeline_mode = #tpu.pipeline_mode<synchronous>, transform_indices = @transform_0, window_bounds = array<i64: 2, 128, 1>}, {transform_indices = @transform_1, window_bounds = array<i64: 1, 1, 128>}, {transform_indices = @transform_2, window_bounds = array<i64: 1, 1, 128>}, {transform_indices = @transform_3, window_bounds = array<i64: 1, 1, 128>}, {transform_indices = @transform_4, window_bounds = array<i64: 1, 256, 128>}]} {
    %c0 = arith.constant 0 : index
    %c0_0 = arith.constant 0 : index
    %c0_1 = arith.constant 0 : index
    %0 = vector.load %arg2[%c0, %c0_0, %c0_1] : memref<2x128x1xf32, #tpu.memory_space<vmem>>, vector<1x128x1xf32>
    %1 = vector.shape_cast %0 : vector<1x128x1xf32> to vector<128x1xf32>
    %c1 = arith.constant 1 : index
    %c0_2 = arith.constant 0 : index
    %c0_3 = arith.constant 0 : index
    %2 = vector.load %arg2[%c1, %c0_2, %c0_3] : memref<2x128x1xf32, #tpu.memory_space<vmem>>, vector<1x128x1xf32>
    %3 = vector.shape_cast %2 : vector<1x128x1xf32> to vector<128x1xf32>
    %c0_i32 = arith.constant 0 : i32
    %4 = arith.cmpi eq, %arg1, %c0_i32 : i32
    %5 = arith.extui %4 : i1 to i32
    %c0_i32_4 = arith.constant 0 : i32
    %6 = arith.cmpi ne, %5, %c0_i32_4 : i32
    scf.if %6 {
      %c0_15 = arith.constant 0 : index
      %c0_16 = arith.constant 0 : index
      %c0_17 = arith.constant 0 : index
      %22 = vector.load %arg3[%c0_15, %c0_16, %c0_17] : memref<1x1x128xf32, #tpu.memory_space<vmem>>, vector<1x1x128xf32>
      %23 = vector.shape_cast %22 : vector<1x1x128xf32> to vector<1x128xf32>
      %24 = vector.extract_strided_slice %1 {offsets = [0, 0], sizes = [64, 1], strides = [1, 1]} : vector<128x1xf32> to vector<64x1xf32>
      %25 = vector.broadcast %23 : vector<1x128xf32> to vector<64x128xf32>
      %26 = vector.broadcast %24 : vector<64x1xf32> to vector<64x128xf32>
      %27 = arith.mulf %25, %26 : vector<64x128xf32>
      %28 = vector.extract_strided_slice %3 {offsets = [0, 0], sizes = [64, 1], strides = [1, 1]} : vector<128x1xf32> to vector<64x1xf32>
      %29 = vector.broadcast %28 : vector<64x1xf32> to vector<64x128xf32>
      %30 = arith.addf %27, %29 : vector<64x128xf32>
      %31 = math.sin %30 : vector<64x128xf32>
      %c0_18 = arith.constant 0 : index
      %c0_19 = arith.constant 0 : index
      %32 = vector.load %arg7[%c0_18, %c0_19] : memref<128x128xf32, #tpu.memory_space<vmem>>, vector<64x128xf32>
      tpu.vector_store %arg7[%c0_18, %c0_19], %31 {strides = array<i32>} : memref<128x128xf32, #tpu.memory_space<vmem>>, vector<64x128xf32>,
      %c0_20 = arith.constant 0 : index
      %c0_21 = arith.constant 0 : index
      %c0_22 = arith.constant 0 : index
      %33 = vector.load %arg4[%c0_20, %c0_21, %c0_22] : memref<1x1x128xf32, #tpu.memory_space<vmem>>, vector<1x1x128xf32>
      %34 = vector.shape_cast %33 : vector<1x1x128xf32> to vector<1x128xf32>
      %35 = vector.extract_strided_slice %1 {offsets = [0, 0], sizes = [64, 1], strides = [1, 1]} : vector<128x1xf32> to vector<64x1xf32>
      %36 = vector.broadcast %34 : vector<1x128xf32> to vector<64x128xf32>
      %37 = vector.broadcast %35 : vector<64x1xf32> to vector<64x128xf32>
      %38 = arith.mulf %36, %37 : vector<64x128xf32>
      %39 = vector.extract_strided_slice %3 {offsets = [0, 0], sizes = [64, 1], strides = [1, 1]} : vector<128x1xf32> to vector<64x1xf32>
      %40 = vector.broadcast %39 : vector<64x1xf32> to vector<64x128xf32>
      %41 = arith.addf %38, %40 : vector<64x128xf32>
      %42 = math.sin %41 : vector<64x128xf32>
      %c64 = arith.constant 64 : index
      %c0_23 = arith.constant 0 : index
      %43 = vector.load %arg7[%c64, %c0_23] : memref<128x128xf32, #tpu.memory_space<vmem>>, vector<64x128xf32>
      tpu.vector_store %arg7[%c64, %c0_23], %42 {strides = array<i32>} : memref<128x128xf32, #tpu.memory_space<vmem>>, vector<64x128xf32>,
    } else {
    }
    %c0_5 = arith.constant 0 : index
    %c0_6 = arith.constant 0 : index
    %7 = vector.load %arg7[%c0_5, %c0_6] : memref<128x128xf32, #tpu.memory_space<vmem>>, vector<128x128xf32>
    %c0_7 = arith.constant 0 : index
    %c0_8 = arith.constant 0 : index
    %c0_9 = arith.constant 0 : index
    %8 = vector.load %arg6[%c0_7, %c0_8, %c0_9] : memref<1x256x128xf32, #tpu.memory_space<vmem>>, vector<1x128x128xf32>
    %9 = vector.shape_cast %8 : vector<1x128x128xf32> to vector<128x128xf32>
    %10 = vector.shape_cast %7 : vector<128x128xf32> to vector<1x128x128xf32>
    tpu.vector_store %arg6[%c0_7, %c0_8, %c0_9], %10 {strides = array<i32>} : memref<1x256x128xf32, #tpu.memory_space<vmem>>, vector<1x128x128xf32>,
    %c0_10 = arith.constant 0 : index
    %c0_11 = arith.constant 0 : index
    %c0_12 = arith.constant 0 : index
    %11 = vector.load %arg5[%c0_10, %c0_11, %c0_12] : memref<1x1x128xf32, #tpu.memory_space<vmem>>, vector<1x1x128xf32>
    %12 = vector.shape_cast %11 : vector<1x1x128xf32> to vector<1x128xf32>
    %13 = vector.broadcast %12 : vector<1x128xf32> to vector<128x128xf32>
    %14 = vector.broadcast %1 : vector<128x1xf32> to vector<128x128xf32>
    %15 = arith.mulf %13, %14 : vector<128x128xf32>
    %16 = vector.broadcast %3 : vector<128x1xf32> to vector<128x128xf32>
    %17 = arith.addf %15, %16 : vector<128x128xf32>
    %18 = math.sin %17 : vector<128x128xf32>
    %c0_13 = arith.constant 0 : index
    %c128 = arith.constant 128 : index
    %c0_14 = arith.constant 0 : index
    %19 = vector.load %arg6[%c0_13, %c128, %c0_14] : memref<1x256x128xf32, #tpu.memory_space<vmem>>, vector<1x128x128xf32>
    %20 = vector.shape_cast %19 : vector<1x128x128xf32> to vector<128x128xf32>
    %21 = vector.shape_cast %18 : vector<128x128xf32> to vector<1x128x128xf32>
    tpu.vector_store %arg6[%c0_13, %c128, %c0_14], %21 {strides = array<i32>} : memref<1x256x128xf32, #tpu.memory_space<vmem>>, vector<1x128x128xf32>,
    return
  }
  func.func @transform_0(%arg0: i32, %arg1: i32) -> (i32, i32, i32) {
    %c0_i32 = arith.constant 0 : i32
    %c0_i32_0 = arith.constant 0 : i32
    %c0_i32_1 = arith.constant 0 : i32
    %c0_i32_2 = arith.constant 0 : i32
    return %c0_i32, %c0_i32_0, %c0_i32_1 : i32, i32, i32
  }
  func.func @transform_1(%arg0: i32, %arg1: i32) -> (i32, i32, i32) {
    %c0_i32 = arith.constant 0 : i32
    %c0_i32_0 = arith.constant 0 : i32
    %c0_i32_1 = arith.constant 0 : i32
    return %c0_i32, %c0_i32_0, %arg0 : i32, i32, i32
  }
  func.func @transform_2(%arg0: i32, %arg1: i32) -> (i32, i32, i32) {
    %c0_i32 = arith.constant 0 : i32
    %c0_i32_0 = arith.constant 0 : i32
    %c0_i32_1 = arith.constant 0 : i32
    return %c0_i32, %c0_i32_0, %arg0 : i32, i32, i32
  }
  func.func @transform_3(%arg0: i32, %arg1: i32) -> (i32, i32, i32) {
    %c0_i32 = arith.constant 0 : i32
    %c0_i32_0 = arith.constant 0 : i32
    return %arg1, %c0_i32, %arg0 : i32, i32, i32
  }
  func.func @transform_4(%arg0: i32, %arg1: i32) -> (i32, i32, i32) {
    %c0_i32 = arith.constant 0 : i32
    %c0_i32_0 = arith.constant 0 : i32
    return %arg1, %c0_i32, %arg0 : i32, i32, i32
  }
}

</mosaic_0001>

<llo_original>
// kernel: tpu_custom_call.1
$region0: #{tpu_custom_call.1}
  #allocation0 [shape = 'u32[]', space=smem, size = 0x4, offset = 0x4, fixed_abs, tag = 'smem constant byte address 0x4 - core index']
  #allocation1 [shape = 'u32[144,128]{1,0:T(1,128)}', space=vmem, size = 0x12000, scoped, tag = 'internal scratch']
  #allocation2 [shape = 'f32[128,128]{1,0:T(8,128)}', space=vmem, size = 0x10000, scoped, tag = 'scratch operand']
  %s0 = inlined_call_operand.vmem [shape: f32[2,128,1], index: 0, kind: input, shape index: {}]
  %s1 = inlined_call_operand.vmem [shape: f32[1,1,256], index: 1, kind: input, shape index: {}]
  %s2 = inlined_call_operand.vmem [shape: f32[1,1,256], index: 2, kind: input, shape index: {}]
  %s3 = inlined_call_operand.vmem [shape: f32[2,1,256], index: 3, kind: input, shape index: {}]
  %s4 = inlined_call_operand.hbm [shape: f32[2,256,256], index: 4, kind: output, shape index: {}]
  %s5 = sld [smem:[#allocation0]]
  $region53: #{tpu_custom_call.1} parent=0
    _
  %s7 = ssub.s32 1, %s5
  %s8 = scalar_select 0, %s7, %s5
  $region1: #{tpu_custom_call.1} parent=0
    #allocation3 [shape = 'u8[262144]{0}', space=vmem, size = 0x40000, scoped, tag = 'output window, operand 0']
    #allocation4 [shape = 's32[2]{0}', space=sflag, size = 0x8, scoped, tag = 'scoped memory for tpu_custom_call.1']
    %9 = vsyncpa [#allocation4], 0
    %s10 = scalar_lea.sflag [#allocation4], 1
    %11 = vsyncpa %s10, 0
    loop: start=0, step=1, limit=6
    $region2: #{tpu_custom_call.1} parent=1 // loop_pre_header
      _
    $region3: #{tpu_custom_call.1} parent=1 // loop_header
      %s13 = sphi 0, %s17
      %p14 = scmp.ge.s32.totalorder %s13, 6
      %s20 = sphi 0, %s32
      %s21 = sphi 0, %s28
      %s22 = sphi 0, %s20
      %s23 = sphi 0, %s21
      %s24 = sphi 0, %s22
      %s25 = sphi 0, %s23
      %s33 = sphi 0, %s33
      %s35 = sphi 0, %s33
      %s36 = sphi 0, %s35
      %s50 = sphi 0, %s36
      %s56 = sphi 0, %s58
      %s59 = sphi 0, %s56
      %s60 = sphi 0, %s59
      %s76 = sphi 0, %s60
      %s82 = sphi 0, %s84
      %s85 = sphi 0, %s82
      %s86 = sphi 0, %s85
      %s102 = sphi 0, %s86
      %s110 = sphi 0, %s112
      %s113 = sphi 0, %s110
      %s114 = sphi 0, %s113
      %s130 = sphi 0, %s114
      %s138 = sphi 0, %s140
      %s141 = sphi 0, %s138
      %s142 = sphi 0, %s141
      %s158 = sphi 0, %s142
    $region4: #{tpu_custom_call.1} parent=1 // loop_header_branch
      %16 = sbr.rel (%p14) target = $region8
    $region5: #{tpu_custom_call.1} parent=1 // loop_body
      %s18 = ssub.s32 %s13, 1
      %s19 = ssub.s32 %s13, 2
      %s26 = sadd.s32 1, %s21
      %p27 = scmp.ge.s32.totalorder %s26, 2
      %s28 = scalar_select %p27, 0, %s26
      %s29 = sadd.s32 1, %s20
      %s30 = scalar_select %p27, %s29, %s20
      %p31 = scmp.ge.s32.totalorder %s30, 2
      %s32 = scalar_select %p31, 0, %s30
      %s34 = sadd.s32 %s33, 1
      %p37 = scmp.eq.s32.totalorder %s13, 3
      %p38 = scmp.ne.s32.totalorder %s33, %s35
      %p39 = scmp.eq.s32.totalorder %s13, 0
      %p40 = por %p38, %p39
      %p41 = scmp.ne.s32.totalorder %s33, %s35
      %p42 = scmp.eq.s32.totalorder %s18, 3
      %p43 = por %p41, %p42
      %p44 = scmp.ne.s32.totalorder %s35, %s36
      %p45 = scmp.eq.s32.totalorder %s18, 0
      %p46 = por %p44, %p45
      %p47 = scmp.ne.s32.totalorder %s35, %s36
      %p48 = scmp.eq.s32.totalorder %s19, 3
      %p49 = por %p47, %p48
      %p51 = scmp.ne.s32.totalorder %s36, %s50
      %p52 = scmp.eq.s32.totalorder %s19, 0
      %p53 = por %p51, %p52
      %s54 = ssub.s32 %s20, %s32
      %p55 = scmp.eq.s32.totalorder %s54, 0
      %s57 = sadd.s32 %s56, 1
      %s58 = scalar_select %p55, %s56, %s57
      %p61 = pneg %p55
      %p62 = scmp.eq.s32.totalorder %s13, 3
      %p63 = por %p61, %p62
      %p64 = scmp.ne.s32.totalorder %s56, %s59
      %p65 = scmp.eq.s32.totalorder %s13, 0
      %p66 = por %p64, %p65
      %p67 = scmp.ne.s32.totalorder %s56, %s59
      %p68 = scmp.eq.s32.totalorder %s18, 3
      %p69 = por %p67, %p68
      %p70 = scmp.ne.s32.totalorder %s59, %s60
      %p71 = scmp.eq.s32.totalorder %s18, 0
      %p72 = por %p70, %p71
      %p73 = scmp.ne.s32.totalorder %s59, %s60
      %p74 = scmp.eq.s32.totalorder %s19, 3
      %p75 = por %p73, %p74
      %p77 = scmp.ne.s32.totalorder %s60, %s76
      %p78 = scmp.eq.s32.totalorder %s19, 0
      %p79 = por %p77, %p78
      %s80 = ssub.s32 %s20, %s32
      %p81 = scmp.eq.s32.totalorder %s80, 0
      %s83 = sadd.s32 %s82, 1
      %s84 = scalar_select %p81, %s82, %s83
      %p87 = pneg %p81
      %p88 = scmp.eq.s32.totalorder %s13, 3
      %p89 = por %p87, %p88
      %p90 = scmp.ne.s32.totalorder %s82, %s85
      %p91 = scmp.eq.s32.totalorder %s13, 0
      %p92 = por %p90, %p91
      %p93 = scmp.ne.s32.totalorder %s82, %s85
      %p94 = scmp.eq.s32.totalorder %s18, 3
      %p95 = por %p93, %p94
      %p96 = scmp.ne.s32.totalorder %s85, %s86
      %p97 = scmp.eq.s32.totalorder %s18, 0
      %p98 = por %p96, %p97
      %p99 = scmp.ne.s32.totalorder %s85, %s86
      %p100 = scmp.eq.s32.totalorder %s19, 3
      %p101 = por %p99, %p100
      %p103 = scmp.ne.s32.totalorder %s86, %s102
      %p104 = scmp.eq.s32.totalorder %s19, 0
      %p105 = por %p103, %p104
      %s106 = ssub.s32 %s21, %s28
      %s107 = ssub.s32 %s20, %s32
      %s108 = sor.u32 %s106, %s107
      %p109 = scmp.eq.s32.totalorder %s108, 0
      %s111 = sadd.s32 %s110, 1
      %s112 = scalar_select %p109, %s110, %s111
      %p115 = pneg %p109
      %p116 = scmp.eq.s32.totalorder %s13, 3
      %p117 = por %p115, %p116
      %p118 = scmp.ne.s32.totalorder %s110, %s113
      %p119 = scmp.eq.s32.totalorder %s13, 0
      %p120 = por %p118, %p119
      %p121 = scmp.ne.s32.totalorder %s110, %s113
      %p122 = scmp.eq.s32.totalorder %s18, 3
      %p123 = por %p121, %p122
      %p124 = scmp.ne.s32.totalorder %s113, %s114
      %p125 = scmp.eq.s32.totalorder %s18, 0
      %p126 = por %p124, %p125
      %p127 = scmp.ne.s32.totalorder %s113, %s114
      %p128 = scmp.eq.s32.totalorder %s19, 3
      %p129 = por %p127, %p128
      %p131 = scmp.ne.s32.totalorder %s114, %s130
      %p132 = scmp.eq.s32.totalorder %s19, 0
      %p133 = por %p131, %p132
      %s134 = ssub.s32 %s21, %s28
      %s135 = ssub.s32 %s20, %s32
      %s136 = sor.u32 %s134, %s135
      %p137 = scmp.eq.s32.totalorder %s136, 0
      %s139 = sadd.s32 %s138, 1
      %s140 = scalar_select %p137, %s138, %s139
      %p143 = pneg %p137
      %p144 = scmp.eq.s32.totalorder %s13, 3
      %p145 = por %p143, %p144
      %p146 = scmp.ne.s32.totalorder %s138, %s141
      %p147 = scmp.eq.s32.totalorder %s13, 0
      %p148 = por %p146, %p147
      %p149 = scmp.ne.s32.totalorder %s138, %s141
      %p150 = scmp.eq.s32.totalorder %s18, 3
      %p151 = por %p149, %p150
      %p152 = scmp.ne.s32.totalorder %s141, %s142
      %p153 = scmp.eq.s32.totalorder %s18, 0
      %p154 = por %p152, %p153
      %p155 = scmp.ne.s32.totalorder %s141, %s142
      %p156 = scmp.eq.s32.totalorder %s19, 3
      %p157 = por %p155, %p156
      %p159 = scmp.ne.s32.totalorder %s142, %s158
      %p160 = scmp.eq.s32.totalorder %s19, 0
      %p161 = por %p159, %p160
      %p162 = scmp.le.s32.totalorder 1, %s13
      %p163 = scmp.lt.s32.totalorder %s13, 5
      %p164 = pnand %p162, %p163
      %p165 = pneg %p164
      // Predicated region
      $region9: #{tpu_custom_call.1} parent=5 // pred_check
        _
      $region10: #{tpu_custom_call.1} parent=5 // pred_check_branch
        %167 = sbr.rel (%p164) target = $region12
      $region11: #{tpu_custom_call.1} parent=5 // pred_region
        %s168 = ssub.s32 %s13, 1
        // Predicated region
        $region13: #{tpu_custom_call.1} parent=11 // pred_check
          %p169 = pneg %p46
        $region14: #{tpu_custom_call.1} parent=11 // pred_check_branch
          %171 = sbr.rel (%p169) target = $region16
        $region15: #{tpu_custom_call.1} parent=11 // pred_region
          _
        $region16: #{tpu_custom_call.1} parent=11 // pred_fallthru
          _
      $region12: #{tpu_custom_call.1} parent=5 // pred_fallthru
        _
      %p172 = scmp.lt.s32.totalorder %s13, 4
      // Predicated region
      $region17: #{tpu_custom_call.1} parent=5 // pred_check
        %p173 = pneg %p172
      $region18: #{tpu_custom_call.1} parent=5 // pred_check_branch
        %175 = sbr.rel (%p173) target = $region20
      $region19: #{tpu_custom_call.1} parent=5 // pred_region
        // Predicated region
        $region21: #{tpu_custom_call.1} parent=19 // pred_check
          %p176 = pneg %p66
        $region22: #{tpu_custom_call.1} parent=19 // pred_check_branch
          %178 = sbr.rel (%p176) target = $region24
        $region23: #{tpu_custom_call.1} parent=19 // pred_region
          %p179 = scmp.lt.s32.totalorder %s20, 1
          %s180 = scalar_select %p179, %s20, 1
          %s181 = scalar_lea.vmem %s1, %s180
        $region24: #{tpu_custom_call.1} parent=19 // pred_fallthru
          _
        // Predicated region
        $region25: #{tpu_custom_call.1} parent=19 // pred_check
          %p182 = pneg %p92
        $region26: #{tpu_custom_call.1} parent=19 // pred_check_branch
          %184 = sbr.rel (%p182) target = $region28
        $region27: #{tpu_custom_call.1} parent=19 // pred_region
          %p185 = scmp.lt.s32.totalorder %s20, 1
          %s186 = scalar_select %p185, %s20, 1
          %s187 = scalar_lea.vmem %s2, %s186
        $region28: #{tpu_custom_call.1} parent=19 // pred_fallthru
          _
        // Predicated region
        $region29: #{tpu_custom_call.1} parent=19 // pred_check
          %p188 = pneg %p120
        $region30: #{tpu_custom_call.1} parent=19 // pred_check_branch
          %190 = sbr.rel (%p188) target = $region32
        $region31: #{tpu_custom_call.1} parent=19 // pred_region
          %p191 = scmp.lt.s32.totalorder %s21, 1
          %s192 = scalar_select %p191, %s21, 1
          %p193 = scmp.lt.s32.totalorder %s20, 1
          %s194 = scalar_select %p193, %s20, 1
          %s195 = smul.addr %s192, 2
          %s196 = sadd.s32 %s194, %s195
          %s197 = scalar_lea.vmem %s3, %s196
        $region32: #{tpu_custom_call.1} parent=19 // pred_fallthru
          _
      $region20: #{tpu_custom_call.1} parent=5 // pred_fallthru
        _
      %p198 = scmp.le.s32.totalorder 1, %s13
      %p199 = scmp.lt.s32.totalorder %s13, 5
      %p200 = pnand %p198, %p199
      %p201 = pneg %p200
      // Predicated region
      $region33: #{tpu_custom_call.1} parent=5 // pred_check
        _
      $region34: #{tpu_custom_call.1} parent=5 // pred_check_branch
        %203 = sbr.rel (%p200) target = $region36
      $region35: #{tpu_custom_call.1} parent=5 // pred_region
        %s204 = ssub.s32 %s13, 1
        %p205 = pneg %p46
        %p206 = pneg %p43
        %p207 = scmp.lt.s32.totalorder %s22, 1
        %s208 = scalar_select %p207, %s22, 1
        %s209 = scalar_lea.vmem %s1, %s208
        %p210 = pneg %p72
        %p211 = pneg %p69
        %p212 = scmp.lt.s32.totalorder %s22, 1
        %s213 = scalar_select %p212, %s22, 1
        %s214 = scalar_lea.vmem %s2, %s213
        %p215 = pneg %p98
        %p216 = pneg %p95
        %p217 = scmp.lt.s32.totalorder %s23, 1
        %s218 = scalar_select %p217, %s23, 1
        %p219 = scmp.lt.s32.totalorder %s22, 1
        %s220 = scalar_select %p219, %s22, 1
        %s221 = smul.addr %s218, 2
        %s222 = sadd.s32 %s220, %s221
        %s223 = scalar_lea.vmem %s3, %s222
        %p224 = pneg %p126
        %p225 = pneg %p123
        %p226 = pneg %p154
        %p227 = pneg %p151
        %s228 = sand.u32 %s141, 1
        %s229 = scalar_lea.sflag [#allocation4], %s228
        %s230 = sand.u32 %s141, 1
        %s231 = smul.addr %s230, 256
        %s232 = scalar_lea.vmem [#allocation3], %s231
        %p233 = scmp.lt.s32.totalorder %s22, 1
        %s234 = scalar_select %p233, %s22, 1
        %s235 = scalar_lea.vmem %s1, %s234
        %p236 = scmp.lt.s32.totalorder %s22, 1
        %s237 = scalar_select %p236, %s22, 1
        %s238 = scalar_lea.vmem %s2, %s237
        %p239 = scmp.lt.s32.totalorder %s23, 1
        %s240 = scalar_select %p239, %s23, 1
        %p241 = scmp.lt.s32.totalorder %s22, 1
        %s242 = scalar_select %p241, %s22, 1
        %s243 = smul.addr %s240, 2
        %s244 = sadd.s32 %s242, %s243
        %s245 = scalar_lea.vmem %s3, %s244
        %v246 = vld [vmem:[%s0] sm:$0xff]
        %v247 = vld [vmem:[%s0 + $0x8] sm:$0xff]
        %v248 = vld [vmem:[%s0 + $0x10] sm:$0xff]
        %v249 = vld [vmem:[%s0 + $0x18] sm:$0xff]
        %v250 = vld [vmem:[%s0 + $0x20] sm:$0xff]
        %v251 = vld [vmem:[%s0 + $0x28] sm:$0xff]
        %v252 = vld [vmem:[%s0 + $0x30] sm:$0xff]
        %v253 = vld [vmem:[%s0 + $0x38] sm:$0xff]
        %v254 = vld [vmem:[%s0 + $0x40] sm:$0xff]
        %v255 = vld [vmem:[%s0 + $0x48] sm:$0xff]
        %v256 = vld [vmem:[%s0 + $0x50] sm:$0xff]
        %v257 = vld [vmem:[%s0 + $0x58] sm:$0xff]
        %v258 = vld [vmem:[%s0 + $0x60] sm:$0xff]
        %v259 = vld [vmem:[%s0 + $0x68] sm:$0xff]
        %v260 = vld [vmem:[%s0 + $0x70] sm:$0xff]
        %v261 = vld [vmem:[%s0 + $0x78] sm:$0xff]
        %s262 = scalar_lea.vmem %s0, 128
        %v263 = vld [vmem:[%s262] sm:$0xff]
        %v264 = vld [vmem:[%s262 + $0x8] sm:$0xff]
        %v265 = vld [vmem:[%s262 + $0x10] sm:$0xff]
        %v266 = vld [vmem:[%s262 + $0x18] sm:$0xff]
        %v267 = vld [vmem:[%s262 + $0x20] sm:$0xff]
        %v268 = vld [vmem:[%s262 + $0x28] sm:$0xff]
        %v269 = vld [vmem:[%s262 + $0x30] sm:$0xff]
        %v270 = vld [vmem:[%s262 + $0x38] sm:$0xff]
        %v271 = vld [vmem:[%s262 + $0x40] sm:$0xff]
        %v272 = vld [vmem:[%s262 + $0x48] sm:$0xff]
        %v273 = vld [vmem:[%s262 + $0x50] sm:$0xff]
        %v274 = vld [vmem:[%s262 + $0x58] sm:$0xff]
        %v275 = vld [vmem:[%s262 + $0x60] sm:$0xff]
        %v276 = vld [vmem:[%s262 + $0x68] sm:$0xff]
        %v277 = vld [vmem:[%s262 + $0x70] sm:$0xff]
        %v278 = vld [vmem:[%s262 + $0x78] sm:$0xff]
        %p279 = scmp.eq.s32.totalorder %s23, 0
        // Predicated region
        $region37: #{tpu_custom_call.1} parent=35 // pred_check
          %p280 = pneg %p279
        $region38: #{tpu_custom_call.1} parent=35 // pred_check_branch
          %282 = sbr.rel (%p280) target = $region40
        $region39: #{tpu_custom_call.1} parent=35 // pred_region
          %v283 = vld [vmem:[%s235] sm:$0x1]
          %v285 = vlaneseq
          %v286 = vshrl.u32 %v285, 7
          %v287 = vsub.s32 0, %v286
          %v288 = vrot.slane %v283, %v287
          %291 = vset.pattern.permute.xlu0 0
          %292 = vperm.xlu0 %291, %v246
          %v293 = vpop.permute.xlu0 %292
          %296 = vset.pattern.permute.xlu0 0
          %297 = vperm.xlu0 %296, %v247
          %v298 = vpop.permute.xlu0 %297
          %301 = vset.pattern.permute.xlu0 0
          %302 = vperm.xlu0 %301, %v248
          %v303 = vpop.permute.xlu0 %302
          %306 = vset.pattern.permute.xlu0 0
          %307 = vperm.xlu0 %306, %v249
          %v308 = vpop.permute.xlu0 %307
          %311 = vset.pattern.permute.xlu0 0
          %312 = vperm.xlu0 %311, %v250
          %v313 = vpop.permute.xlu0 %312
          %316 = vset.pattern.permute.xlu0 0
          %317 = vperm.xlu0 %316, %v251
          %v318 = vpop.permute.xlu0 %317
          %321 = vset.pattern.permute.xlu0 0
          %322 = vperm.xlu0 %321, %v252
          %v323 = vpop.permute.xlu0 %322
          %326 = vset.pattern.permute.xlu0 0
          %327 = vperm.xlu0 %326, %v253
          %v328 = vpop.permute.xlu0 %327
          %v330 = vmul.f32 %v288, %v293
          %v331 = vmul.f32 %v288, %v298
          %v332 = vmul.f32 %v288, %v303
          %v333 = vmul.f32 %v288, %v308
          %v334 = vmul.f32 %v288, %v313
          %v335 = vmul.f32 %v288, %v318
          %v336 = vmul.f32 %v288, %v323
          %v337 = vmul.f32 %v288, %v328
          %339 = vset.pattern.permute.xlu0 0
          %340 = vperm.xlu0 %339, %v263
          %v341 = vpop.permute.xlu0 %340
          %344 = vset.pattern.permute.xlu0 0
          %345 = vperm.xlu0 %344, %v264
          %v346 = vpop.permute.xlu0 %345
          %349 = vset.pattern.permute.xlu0 0
          %350 = vperm.xlu0 %349, %v265
          %v351 = vpop.permute.xlu0 %350
          %354 = vset.pattern.permute.xlu0 0
          %355 = vperm.xlu0 %354, %v266
          %v356 = vpop.permute.xlu0 %355
          %359 = vset.pattern.permute.xlu0 0
          %360 = vperm.xlu0 %359, %v267
          %v361 = vpop.permute.xlu0 %360
          %364 = vset.pattern.permute.xlu0 0
          %365 = vperm.xlu0 %364, %v268
          %v366 = vpop.permute.xlu0 %365
          %369 = vset.pattern.permute.xlu0 0
          %370 = vperm.xlu0 %369, %v269
          %v371 = vpop.permute.xlu0 %370
          %374 = vset.pattern.permute.xlu0 0
          %375 = vperm.xlu0 %374, %v270
          %v376 = vpop.permute.xlu0 %375
          %v378 = vadd.f32 %v330, %v341
          %v379 = vadd.f32 %v331, %v346
          %v380 = vadd.f32 %v332, %v351
          %v381 = vadd.f32 %v333, %v356
          %v382 = vadd.f32 %v334, %v361
          %v383 = vadd.f32 %v335, %v366
          %v384 = vadd.f32 %v336, %v371
          %v385 = vadd.f32 %v337, %v376
          %v386 = vand.u32 2147483647, %v378
          %vm387 = vcmp.le.f32.partialorder %v386, 0.7853982
          %vm388 = vcmp.lt.s32.totalorder %v378, 0
          %v389 = vand.u32 %v378, 2139095040
          %v390 = vshrl.u32 %v389, 23
          %v391 = vsub.s32 %v390, 127
          %v392 = vand.u32 2147483647, %v378
          %v393 = vand.u32 %v392, 8388607
          %v394 = vor.u32 %v393, 8388608
          %v395 = vsub.s32 0, %v394
          %v396 = vadd.s32 %v391, 1
          %vm397 = vcmp.gt.s32.totalorder %v396, 0
          %v398 = vsel %vm397, %v396, 0
          %v399 = vshrl.u32 %v398, 5
          %v400 = vand.u32 %v398, 31
          %v401 = vsub.s32 32, %v400
          %v402 = vshrl.u32 683565275, %v401
          %v403 = vshll.u32 683565275, %v400
          %v404 = vshrl.u32 2475754826, %v401
          %v405 = vor.u32 %v403, %v404
          %v406 = vshll.u32 2475754826, %v400
          %v407 = vshrl.u32 2131351028, %v401
          %v408 = vor.u32 %v406, %v407
          %v409 = vshll.u32 2131351028, %v400
          %v410 = vshrl.u32 2102212464, %v401
          %v411 = vor.u32 %v409, %v410
          %v412 = vshll.u32 2102212464, %v400
          %v413 = vshrl.u32 920167782, %v401
          %v414 = vor.u32 %v412, %v413
          %v415 = vshll.u32 920167782, %v400
          %v416 = vshrl.u32 1326507024, %v401
          %v417 = vor.u32 %v415, %v416
          %vm418 = vcmp.lt.s32.totalorder %v399, 1
          %vm419 = vcmp.lt.s32.totalorder %v399, 2
          %vm420 = vcmp.lt.s32.totalorder %v399, 3
          %vm421 = vcmp.lt.s32.totalorder %v399, 4
          %v422 = vsel %vm418, %v402, %v405
          %v423 = vsel %vm421, %v411, 2102212464
          %v424 = vsel %vm420, %v408, %v423
          %v425 = vsel %vm419, %v422, %v424
          %v426 = vsel %vm418, %v405, %v408
          %v427 = vsel %vm421, %v414, 920167782
          %v428 = vsel %vm420, %v411, %v427
          %v429 = vsel %vm419, %v426, %v428
          %v430 = vsel %vm418, %v408, %v411
          %v431 = vsel %vm421, %v417, 1326507024
          %v432 = vsel %vm420, %v414, %v431
          %v433 = vsel %vm419, %v430, %v432
          %v434 = vshll.u32 %v394, 8
          %v435 = vmul.u32.u64.compose %v434, %v433
          %v436 = vextract.low.u32 %v435
          %v437 = vextract.high.u32 %v435
          %v438 = vmul.u32.u64.compose %v434, %v429
          %v439 = vextract.low.u32 %v438
          %v440 = vextract.high.u32 %v438
          %v441 = vmul.u32 %v434, %v425
          %v442 = vadd.s32 %v437, %v439
          %vm443 = vc.u32 %v437, %v439
          %v444 = vadd.s32 %v440, 1
          %v445 = vsel %vm443, %v444, %v440
          %v446 = vadd.s32 %v441, %v445
          %v447 = vadd.s32 %v446, 536870912
          %v448 = vshrl.u32 %v447, 30
          %v449 = vshll.u32 %v448, 30
          %v450 = vsub.s32 %v446, %v449
          %vm451 = vcmp.lt.s32.totalorder %v450, 0
          %v452 = vsub.s32 0, %v450
          %v453 = vsel %vm451, %v452, %v450
          %v454 = vclz %v453
          %v455 = vsub.s32 %v454, 2
          %vm456 = vcmp.gt.s32.totalorder 0, %v455
          %v457 = vsel %vm456, 0, %v455
          %v458 = vsub.s32 32, %v457
          %v459 = vshll.u32 %v450, %v457
          %v460 = vshrl.u32 %v442, %v458
          %v461 = vor.u32 %v459, %v460
          %v462 = vsub.s32 4294967266, %v457
          %v463 = vadd.s32 %v462, 127
          %v464 = vshll.u32 %v463, 23
          %v465 = vor.u32 4788187, %v464
          %v466 = vand.u32 2147483647, %v465
          %v468 = vcvt.s32.f32 %v461
          %v469 = vmul.f32 %v468, %v466
          %v470 = vxor.u32 %v469, 2147483648
          %v471 = vsel %vm388, %v470, %v469
          %v472 = vsub.s32 4, %v448
          %v473 = vsel %vm388, %v472, %v448
          %v474 = vsel %vm387, %v378, %v471
          %v475 = vsel %vm387, 0, %v473
          %v476 = vcosq.f32.pop %v474
          %v477 = vsinq.f32.pop %v474
          %vm478 = vweird.f32 %v378
          %v479 = vadd.s32 %v475, 3
          %v480 = vand.u32 %v479, 3
          %vm481 = vcmp.lt.s32.totalorder %v480, 2
          %vm482 = vcmp.eq.s32.totalorder %v480, 0
          %v483 = vxor.u32 %v477, 2147483648
          %v484 = vsel %vm482, %v476, %v483
          %vm485 = vcmp.eq.s32.totalorder %v480, 2
          %v486 = vxor.u32 %v476, 2147483648
          %v487 = vsel %vm485, %v486, %v477
          %v488 = vsel %vm481, %v484, %v487
          %v489 = vsel %vm478, nan, %v488
          %v490 = vand.u32 2147483647, %v379
          %vm491 = vcmp.le.f32.partialorder %v490, 0.7853982
          %vm492 = vcmp.lt.s32.totalorder %v379, 0
          %v493 = vand.u32 %v379, 2139095040
          %v494 = vshrl.u32 %v493, 23
          %v495 = vsub.s32 %v494, 127
          %v496 = vand.u32 2147483647, %v379
          %v497 = vand.u32 %v496, 8388607
          %v498 = vor.u32 %v497, 8388608
          %v499 = vsub.s32 0, %v498
          %v500 = vadd.s32 %v495, 1
          %vm501 = vcmp.gt.s32.totalorder %v500, 0
          %v502 = vsel %vm501, %v500, 0
          %v503 = vshrl.u32 %v502, 5
          %v504 = vand.u32 %v502, 31
          %v505 = vsub.s32 32, %v504
          %v506 = vshrl.u32 683565275, %v505
          %v507 = vshll.u32 683565275, %v504
          %v508 = vshrl.u32 2475754826, %v505
          %v509 = vor.u32 %v507, %v508
          %v510 = vshll.u32 2475754826, %v504
          %v511 = vshrl.u32 2131351028, %v505
          %v512 = vor.u32 %v510, %v511
          %v513 = vshll.u32 2131351028, %v504
          %v514 = vshrl.u32 2102212464, %v505
          %v515 = vor.u32 %v513, %v514
          %v516 = vshll.u32 2102212464, %v504
          %v517 = vshrl.u32 920167782, %v505
          %v518 = vor.u32 %v516, %v517
          %v519 = vshll.u32 920167782, %v504
          %v520 = vshrl.u32 1326507024, %v505
          %v521 = vor.u32 %v519, %v520
          %vm522 = vcmp.lt.s32.totalorder %v503, 1
          %vm523 = vcmp.lt.s32.totalorder %v503, 2
          %vm524 = vcmp.lt.s32.totalorder %v503, 3
          %vm525 = vcmp.lt.s32.totalorder %v503, 4
          %v526 = vsel %vm522, %v506, %v509
          %v527 = vsel %vm525, %v515, 2102212464
          %v528 = vsel %vm524, %v512, %v527
          %v529 = vsel %vm523, %v526, %v528
          %v530 = vsel %vm522, %v509, %v512
          %v531 = vsel %vm525, %v518, 920167782
          %v532 = vsel %vm524, %v515, %v531
          %v533 = vsel %vm523, %v530, %v532
          %v534 = vsel %vm522, %v512, %v515
          %v535 = vsel %vm525, %v521, 1326507024
          %v536 = vsel %vm524, %v518, %v535
          %v537 = vsel %vm523, %v534, %v536
          %v538 = vshll.u32 %v498, 8
          %v539 = vmul.u32.u64.compose %v538, %v537
          %v540 = vextract.low.u32 %v539
          %v541 = vextract.high.u32 %v539
          %v542 = vmul.u32.u64.compose %v538, %v533
          %v543 = vextract.low.u32 %v542
          %v544 = vextract.high.u32 %v542
          %v545 = vmul.u32 %v538, %v529
          %v546 = vadd.s32 %v541, %v543
          %vm547 = vc.u32 %v541, %v543
          %v548 = vadd.s32 %v544, 1
          %v549 = vsel %vm547, %v548, %v544
          %v550 = vadd.s32 %v545, %v549
          %v551 = vadd.s32 %v550, 536870912
          %v552 = vshrl.u32 %v551, 30
          %v553 = vshll.u32 %v552, 30
          %v554 = vsub.s32 %v550, %v553
          %vm555 = vcmp.lt.s32.totalorder %v554, 0
          %v556 = vsub.s32 0, %v554
          %v557 = vsel %vm555, %v556, %v554
          %v558 = vclz %v557
          %v559 = vsub.s32 %v558, 2
          %vm560 = vcmp.gt.s32.totalorder 0, %v559
          %v561 = vsel %vm560, 0, %v559
          %v562 = vsub.s32 32, %v561
          %v563 = vshll.u32 %v554, %v561
          %v564 = vshrl.u32 %v546, %v562
          %v565 = vor.u32 %v563, %v564
          %v566 = vsub.s32 4294967266, %v561
          %v567 = vadd.s32 %v566, 127
          %v568 = vshll.u32 %v567, 23
          %v569 = vor.u32 4788187, %v568
          %v570 = vand.u32 2147483647, %v569
          %v572 = vcvt.s32.f32 %v565
          %v573 = vmul.f32 %v572, %v570
          %v574 = vxor.u32 %v573, 2147483648
          %v575 = vsel %vm492, %v574, %v573
          %v576 = vsub.s32 4, %v552
          %v577 = vsel %vm492, %v576, %v552
          %v578 = vsel %vm491, %v379, %v575
          %v579 = vsel %vm491, 0, %v577
          %v580 = vcosq.f32.pop %v578
          %v581 = vsinq.f32.pop %v578
          %vm582 = vweird.f32 %v379
          %v583 = vadd.s32 %v579, 3
          %v584 = vand.u32 %v583, 3
          %vm585 = vcmp.lt.s32.totalorder %v584, 2
          %vm586 = vcmp.eq.s32.totalorder %v584, 0
          %v587 = vxor.u32 %v581, 2147483648
          %v588 = vsel %vm586, %v580, %v587
          %vm589 = vcmp.eq.s32.totalorder %v584, 2
          %v590 = vxor.u32 %v580, 2147483648
          %v591 = vsel %vm589, %v590, %v581
          %v592 = vsel %vm585, %v588, %v591
          %v593 = vsel %vm582, nan, %v592
          %v594 = vand.u32 2147483647, %v380
          %vm595 = vcmp.le.f32.partialorder %v594, 0.7853982
          %vm596 = vcmp.lt.s32.totalorder %v380, 0
          %v597 = vand.u32 %v380, 2139095040
          %v598 = vshrl.u32 %v597, 23
          %v599 = vsub.s32 %v598, 127
          %v600 = vand.u32 2147483647, %v380
          %v601 = vand.u32 %v600, 8388607
          %v602 = vor.u32 %v601, 8388608
          %v603 = vsub.s32 0, %v602
          %v604 = vadd.s32 %v599, 1
          %vm605 = vcmp.gt.s32.totalorder %v604, 0
          %v606 = vsel %vm605, %v604, 0
          %v607 = vshrl.u32 %v606, 5
          %v608 = vand.u32 %v606, 31
          %v609 = vsub.s32 32, %v608
          %v610 = vshrl.u32 683565275, %v609
          %v611 = vshll.u32 683565275, %v608
          %v612 = vshrl.u32 2475754826, %v609
          %v613 = vor.u32 %v611, %v612
          %v614 = vshll.u32 2475754826, %v608
          %v615 = vshrl.u32 2131351028, %v609
          %v616 = vor.u32 %v614, %v615
          %v617 = vshll.u32 2131351028, %v608
          %v618 = vshrl.u32 2102212464, %v609
          %v619 = vor.u32 %v617, %v618
          %v620 = vshll.u32 2102212464, %v608
          %v621 = vshrl.u32 920167782, %v609
          %v622 = vor.u32 %v620, %v621
          %v623 = vshll.u32 920167782, %v608
          %v624 = vshrl.u32 1326507024, %v609
          %v625 = vor.u32 %v623, %v624
          %vm626 = vcmp.lt.s32.totalorder %v607, 1
          %vm627 = vcmp.lt.s32.totalorder %v607, 2
          %vm628 = vcmp.lt.s32.totalorder %v607, 3
          %vm629 = vcmp.lt.s32.totalorder %v607, 4
          %v630 = vsel %vm626, %v610, %v613
          %v631 = vsel %vm629, %v619, 2102212464
          %v632 = vsel %vm628, %v616, %v631
          %v633 = vsel %vm627, %v630, %v632
          %v634 = vsel %vm626, %v613, %v616
          %v635 = vsel %vm629, %v622, 920167782
          %v636 = vsel %vm628, %v619, %v635
          %v637 = vsel %vm627, %v634, %v636
          %v638 = vsel %vm626, %v616, %v619
          %v639 = vsel %vm629, %v625, 1326507024
          %v640 = vsel %vm628, %v622, %v639
          %v641 = vsel %vm627, %v638, %v640
          %v642 = vshll.u32 %v602, 8
          %v643 = vmul.u32.u64.compose %v642, %v641
          %v644 = vextract.low.u32 %v643
          %v645 = vextract.high.u32 %v643
          %v646 = vmul.u32.u64.compose %v642, %v637
          %v647 = vextract.low.u32 %v646
          %v648 = vextract.high.u32 %v646
          %v649 = vmul.u32 %v642, %v633
          %v650 = vadd.s32 %v645, %v647
          %vm651 = vc.u32 %v645, %v647
          %v652 = vadd.s32 %v648, 1
          %v653 = vsel %vm651, %v652, %v648
          %v654 = vadd.s32 %v649, %v653
          %v655 = vadd.s32 %v654, 536870912
          %v656 = vshrl.u32 %v655, 30
          %v657 = vshll.u32 %v656, 30
          %v658 = vsub.s32 %v654, %v657
          %vm659 = vcmp.lt.s32.totalorder %v658, 0
          %v660 = vsub.s32 0, %v658
          %v661 = vsel %vm659, %v660, %v658
          %v662 = vclz %v661
          %v663 = vsub.s32 %v662, 2
          %vm664 = vcmp.gt.s32.totalorder 0, %v663
          %v665 = vsel %vm664, 0, %v663
          %v666 = vsub.s32 32, %v665
          %v667 = vshll.u32 %v658, %v665
          %v668 = vshrl.u32 %v650, %v666
          %v669 = vor.u32 %v667, %v668
          %v670 = vsub.s32 4294967266, %v665
          %v671 = vadd.s32 %v670, 127
          %v672 = vshll.u32 %v671, 23
          %v673 = vor.u32 4788187, %v672
          %v674 = vand.u32 2147483647, %v673
          %v676 = vcvt.s32.f32 %v669
          %v677 = vmul.f32 %v676, %v674
          %v678 = vxor.u32 %v677, 2147483648
          %v679 = vsel %vm596, %v678, %v677
          %v680 = vsub.s32 4, %v656
          %v681 = vsel %vm596, %v680, %v656
          %v682 = vsel %vm595, %v380, %v679
          %v683 = vsel %vm595, 0, %v681
          %v684 = vcosq.f32.pop %v682
          %v685 = vsinq.f32.pop %v682
          %vm686 = vweird.f32 %v380
          %v687 = vadd.s32 %v683, 3
          %v688 = vand.u32 %v687, 3
          %vm689 = vcmp.lt.s32.totalorder %v688, 2
          %vm690 = vcmp.eq.s32.totalorder %v688, 0
          %v691 = vxor.u32 %v685, 2147483648
          %v692 = vsel %vm690, %v684, %v691
          %vm693 = vcmp.eq.s32.totalorder %v688, 2
          %v694 = vxor.u32 %v684, 2147483648
          %v695 = vsel %vm693, %v694, %v685
          %v696 = vsel %vm689, %v692, %v695
          %v697 = vsel %vm686, nan, %v696
          %v698 = vand.u32 2147483647, %v381
          %vm699 = vcmp.le.f32.partialorder %v698, 0.7853982
          %vm700 = vcmp.lt.s32.totalorder %v381, 0
          %v701 = vand.u32 %v381, 2139095040
          %v702 = vshrl.u32 %v701, 23
          %v703 = vsub.s32 %v702, 127
          %v704 = vand.u32 2147483647, %v381
          %v705 = vand.u32 %v704, 8388607
          %v706 = vor.u32 %v705, 8388608
          %v707 = vsub.s32 0, %v706
          %v708 = vadd.s32 %v703, 1
          %vm709 = vcmp.gt.s32.totalorder %v708, 0
          %v710 = vsel %vm709, %v708, 0
          %v711 = vshrl.u32 %v710, 5
          %v712 = vand.u32 %v710, 31
          %v713 = vsub.s32 32, %v712
          %v714 = vshrl.u32 683565275, %v713
          %v715 = vshll.u32 683565275, %v712
          %v716 = vshrl.u32 2475754826, %v713
          %v717 = vor.u32 %v715, %v716
          %v718 = vshll.u32 2475754826, %v712
          %v719 = vshrl.u32 2131351028, %v713
          %v720 = vor.u32 %v718, %v719
          %v721 = vshll.u32 2131351028, %v712
          %v722 = vshrl.u32 2102212464, %v713
          %v723 = vor.u32 %v721, %v722
          %v724 = vshll.u32 2102212464, %v712
          %v725 = vshrl.u32 920167782, %v713
          %v726 = vor.u32 %v724, %v725
          %v727 = vshll.u32 920167782, %v712
          %v728 = vshrl.u32 1326507024, %v713
          %v729 = vor.u32 %v727, %v728
          %vm730 = vcmp.lt.s32.totalorder %v711, 1
          %vm731 = vcmp.lt.s32.totalorder %v711, 2
          %vm732 = vcmp.lt.s32.totalorder %v711, 3
          %vm733 = vcmp.lt.s32.totalorder %v711, 4
          %v734 = vsel %vm730, %v714, %v717
          %v735 = vsel %vm733, %v723, 2102212464
          %v736 = vsel %vm732, %v720, %v735
          %v737 = vsel %vm731, %v734, %v736
          %v738 = vsel %vm730, %v717, %v720
          %v739 = vsel %vm733, %v726, 920167782
          %v740 = vsel %vm732, %v723, %v739
          %v741 = vsel %vm731, %v738, %v740
          %v742 = vsel %vm730, %v720, %v723
          %v743 = vsel %vm733, %v729, 1326507024
          %v744 = vsel %vm732, %v726, %v743
          %v745 = vsel %vm731, %v742, %v744
          %v746 = vshll.u32 %v706, 8
          %v747 = vmul.u32.u64.compose %v746, %v745
          %v748 = vextract.low.u32 %v747
          %v749 = vextract.high.u32 %v747
          %v750 = vmul.u32.u64.compose %v746, %v741
          %v751 = vextract.low.u32 %v750
          %v752 = vextract.high.u32 %v750
          %v753 = vmul.u32 %v746, %v737
          %v754 = vadd.s32 %v749, %v751
          %vm755 = vc.u32 %v749, %v751
          %v756 = vadd.s32 %v752, 1
          %v757 = vsel %vm755, %v756, %v752
          %v758 = vadd.s32 %v753, %v757
          %v759 = vadd.s32 %v758, 536870912
          %v760 = vshrl.u32 %v759, 30
          %v761 = vshll.u32 %v760, 30
          %v762 = vsub.s32 %v758, %v761
          %vm763 = vcmp.lt.s32.totalorder %v762, 0
          %v764 = vsub.s32 0, %v762
          %v765 = vsel %vm763, %v764, %v762
          %v766 = vclz %v765
          %v767 = vsub.s32 %v766, 2
          %vm768 = vcmp.gt.s32.totalorder 0, %v767
          %v769 = vsel %vm768, 0, %v767
          %v770 = vsub.s32 32, %v769
          %v771 = vshll.u32 %v762, %v769
          %v772 = vshrl.u32 %v754, %v770
          %v773 = vor.u32 %v771, %v772
          %v774 = vsub.s32 4294967266, %v769
          %v775 = vadd.s32 %v774, 127
          %v776 = vshll.u32 %v775, 23
          %v777 = vor.u32 4788187, %v776
          %v778 = vand.u32 2147483647, %v777
          %v780 = vcvt.s32.f32 %v773
          %v781 = vmul.f32 %v780, %v778
          %v782 = vxor.u32 %v781, 2147483648
          %v783 = vsel %vm700, %v782, %v781
          %v784 = vsub.s32 4, %v760
          %v785 = vsel %vm700, %v784, %v760
          %v786 = vsel %vm699, %v381, %v783
          %v787 = vsel %vm699, 0, %v785
          %v788 = vcosq.f32.pop %v786
          %v789 = vsinq.f32.pop %v786
          %vm790 = vweird.f32 %v381
          %v791 = vadd.s32 %v787, 3
          %v792 = vand.u32 %v791, 3
          %vm793 = vcmp.lt.s32.totalorder %v792, 2
          %vm794 = vcmp.eq.s32.totalorder %v792, 0
          %v795 = vxor.u32 %v789, 2147483648
          %v796 = vsel %vm794, %v788, %v795
          %vm797 = vcmp.eq.s32.totalorder %v792, 2
          %v798 = vxor.u32 %v788, 2147483648
          %v799 = vsel %vm797, %v798, %v789
          %v800 = vsel %vm793, %v796, %v799
          %v801 = vsel %vm790, nan, %v800
          %v802 = vand.u32 2147483647, %v382
          %vm803 = vcmp.le.f32.partialorder %v802, 0.7853982
          %vm804 = vcmp.lt.s32.totalorder %v382, 0
          %v805 = vand.u32 %v382, 2139095040
          %v806 = vshrl.u32 %v805, 23
          %v807 = vsub.s32 %v806, 127
          %v808 = vand.u32 2147483647, %v382
          %v809 = vand.u32 %v808, 8388607
          %v810 = vor.u32 %v809, 8388608
          %v811 = vsub.s32 0, %v810
          %v812 = vadd.s32 %v807, 1
          %vm813 = vcmp.gt.s32.totalorder %v812, 0
          %v814 = vsel %vm813, %v812, 0
          %v815 = vshrl.u32 %v814, 5
          %v816 = vand.u32 %v814, 31
          %v817 = vsub.s32 32, %v816
          %v818 = vshrl.u32 683565275, %v817
          %v819 = vshll.u32 683565275, %v816
          %v820 = vshrl.u32 2475754826, %v817
          %v821 = vor.u32 %v819, %v820
          %v822 = vshll.u32 2475754826, %v816
          %v823 = vshrl.u32 2131351028, %v817
          %v824 = vor.u32 %v822, %v823
          %v825 = vshll.u32 2131351028, %v816
          %v826 = vshrl.u32 2102212464, %v817
          %v827 = vor.u32 %v825, %v826
          %v828 = vshll.u32 2102212464, %v816
          %v829 = vshrl.u32 920167782, %v817
          %v830 = vor.u32 %v828, %v829
          %v831 = vshll.u32 920167782, %v816
          %v832 = vshrl.u32 1326507024, %v817
          %v833 = vor.u32 %v831, %v832
          %vm834 = vcmp.lt.s32.totalorder %v815, 1
          %vm835 = vcmp.lt.s32.totalorder %v815, 2
          %vm836 = vcmp.lt.s32.totalorder %v815, 3
          %vm837 = vcmp.lt.s32.totalorder %v815, 4
          %v838 = vsel %vm834, %v818, %v821
          %v839 = vsel %vm837, %v827, 2102212464
          %v840 = vsel %vm836, %v824, %v839
          %v841 = vsel %vm835, %v838, %v840
          %v842 = vsel %vm834, %v821, %v824
          %v843 = vsel %vm837, %v830, 920167782
          %v844 = vsel %vm836, %v827, %v843
          %v845 = vsel %vm835, %v842, %v844
          %v846 = vsel %vm834, %v824, %v827
          %v847 = vsel %vm837, %v833, 1326507024
          %v848 = vsel %vm836, %v830, %v847
          %v849 = vsel %vm835, %v846, %v848
          %v850 = vshll.u32 %v810, 8
          %v851 = vmul.u32.u64.compose %v850, %v849
          %v852 = vextract.low.u32 %v851
          %v853 = vextract.high.u32 %v851
          %v854 = vmul.u32.u64.compose %v850, %v845
          %v855 = vextract.low.u32 %v854
          %v856 = vextract.high.u32 %v854
          %v857 = vmul.u32 %v850, %v841
          %v858 = vadd.s32 %v853, %v855
          %vm859 = vc.u32 %v853, %v855
          %v860 = vadd.s32 %v856, 1
          %v861 = vsel %vm859, %v860, %v856
          %v862 = vadd.s32 %v857, %v861
          %v863 = vadd.s32 %v862, 536870912
          %v864 = vshrl.u32 %v863, 30
          %v865 = vshll.u32 %v864, 30
          %v866 = vsub.s32 %v862, %v865
          %vm867 = vcmp.lt.s32.totalorder %v866, 0
          %v868 = vsub.s32 0, %v866
          %v869 = vsel %vm867, %v868, %v866
          %v870 = vclz %v869
          %v871 = vsub.s32 %v870, 2
          %vm872 = vcmp.gt.s32.totalorder 0, %v871
          %v873 = vsel %vm872, 0, %v871
          %v874 = vsub.s32 32, %v873
          %v875 = vshll.u32 %v866, %v873
          %v876 = vshrl.u32 %v858, %v874
          %v877 = vor.u32 %v875, %v876
          %v878 = vsub.s32 4294967266, %v873
          %v879 = vadd.s32 %v878, 127
          %v880 = vshll.u32 %v879, 23
          %v881 = vor.u32 4788187, %v880
          %v882 = vand.u32 2147483647, %v881
          %v884 = vcvt.s32.f32 %v877
          %v885 = vmul.f32 %v884, %v882
          %v886 = vxor.u32 %v885, 2147483648
          %v887 = vsel %vm804, %v886, %v885
          %v888 = vsub.s32 4, %v864
          %v889 = vsel %vm804, %v888, %v864
          %v890 = vsel %vm803, %v382, %v887
          %v891 = vsel %vm803, 0, %v889
          %v892 = vcosq.f32.pop %v890
          %v893 = vsinq.f32.pop %v890
          %vm894 = vweird.f32 %v382
          %v895 = vadd.s32 %v891, 3
          %v896 = vand.u32 %v895, 3
          %vm897 = vcmp.lt.s32.totalorder %v896, 2
          %vm898 = vcmp.eq.s32.totalorder %v896, 0
          %v899 = vxor.u32 %v893, 2147483648
          %v900 = vsel %vm898, %v892, %v899
          %vm901 = vcmp.eq.s32.totalorder %v896, 2
          %v902 = vxor.u32 %v892, 2147483648
          %v903 = vsel %vm901, %v902, %v893
          %v904 = vsel %vm897, %v900, %v903
          %v905 = vsel %vm894, nan, %v904
          %v906 = vand.u32 2147483647, %v383
          %vm907 = vcmp.le.f32.partialorder %v906, 0.7853982
          %vm908 = vcmp.lt.s32.totalorder %v383, 0
          %v909 = vand.u32 %v383, 2139095040
          %v910 = vshrl.u32 %v909, 23
          %v911 = vsub.s32 %v910, 127
          %v912 = vand.u32 2147483647, %v383
          %v913 = vand.u32 %v912, 8388607
          %v914 = vor.u32 %v913, 8388608
          %v915 = vsub.s32 0, %v914
          %v916 = vadd.s32 %v911, 1
          %vm917 = vcmp.gt.s32.totalorder %v916, 0
          %v918 = vsel %vm917, %v916, 0
          %v919 = vshrl.u32 %v918, 5
          %v920 = vand.u32 %v918, 31
          %v921 = vsub.s32 32, %v920
          %v922 = vshrl.u32 683565275, %v921
          %v923 = vshll.u32 683565275, %v920
          %v924 = vshrl.u32 2475754826, %v921
          %v925 = vor.u32 %v923, %v924
          %v926 = vshll.u32 2475754826, %v920
          %v927 = vshrl.u32 2131351028, %v921
          %v928 = vor.u32 %v926, %v927
          %v929 = vshll.u32 2131351028, %v920
          %v930 = vshrl.u32 2102212464, %v921
          %v931 = vor.u32 %v929, %v930
          %v932 = vshll.u32 2102212464, %v920
          %v933 = vshrl.u32 920167782, %v921
          %v934 = vor.u32 %v932, %v933
          %v935 = vshll.u32 920167782, %v920
          %v936 = vshrl.u32 1326507024, %v921
          %v937 = vor.u32 %v935, %v936
          %vm938 = vcmp.lt.s32.totalorder %v919, 1
          %vm939 = vcmp.lt.s32.totalorder %v919, 2
          %vm940 = vcmp.lt.s32.totalorder %v919, 3
          %vm941 = vcmp.lt.s32.totalorder %v919, 4
          %v942 = vsel %vm938, %v922, %v925
          %v943 = vsel %vm941, %v931, 2102212464
          %v944 = vsel %vm940, %v928, %v943
          %v945 = vsel %vm939, %v942, %v944
          %v946 = vsel %vm938, %v925, %v928
          %v947 = vsel %vm941, %v934, 920167782
          %v948 = vsel %vm940, %v931, %v947
          %v949 = vsel %vm939, %v946, %v948
          %v950 = vsel %vm938, %v928, %v931
          %v951 = vsel %vm941, %v937, 1326507024
          %v952 = vsel %vm940, %v934, %v951
          %v953 = vsel %vm939, %v950, %v952
          %v954 = vshll.u32 %v914, 8
          %v955 = vmul.u32.u64.compose %v954, %v953
          %v956 = vextract.low.u32 %v955
          %v957 = vextract.high.u32 %v955
          %v958 = vmul.u32.u64.compose %v954, %v949
          %v959 = vextract.low.u32 %v958
          %v960 = vextract.high.u32 %v958
          %v961 = vmul.u32 %v954, %v945
          %v962 = vadd.s32 %v957, %v959
          %vm963 = vc.u32 %v957, %v959
          %v964 = vadd.s32 %v960, 1
          %v965 = vsel %vm963, %v964, %v960
          %v966 = vadd.s32 %v961, %v965
          %v967 = vadd.s32 %v966, 536870912
          %v968 = vshrl.u32 %v967, 30
          %v969 = vshll.u32 %v968, 30
          %v970 = vsub.s32 %v966, %v969
          %vm971 = vcmp.lt.s32.totalorder %v970, 0
          %v972 = vsub.s32 0, %v970
          %v973 = vsel %vm971, %v972, %v970
          %v974 = vclz %v973
          %v975 = vsub.s32 %v974, 2
          %vm976 = vcmp.gt.s32.totalorder 0, %v975
          %v977 = vsel %vm976, 0, %v975
          %v978 = vsub.s32 32, %v977
          %v979 = vshll.u32 %v970, %v977
          %v980 = vshrl.u32 %v962, %v978
          %v981 = vor.u32 %v979, %v980
          %v982 = vsub.s32 4294967266, %v977
          %v983 = vadd.s32 %v982, 127
          %v984 = vshll.u32 %v983, 23
          %v985 = vor.u32 4788187, %v984
          %v986 = vand.u32 2147483647, %v985
          %v988 = vcvt.s32.f32 %v981
          %v989 = vmul.f32 %v988, %v986
          %v990 = vxor.u32 %v989, 2147483648
          %v991 = vsel %vm908, %v990, %v989
          %v992 = vsub.s32 4, %v968
          %v993 = vsel %vm908, %v992, %v968
          %v994 = vsel %vm907, %v383, %v991
          %v995 = vsel %vm907, 0, %v993
          %v996 = vcosq.f32.pop %v994
          %v997 = vsinq.f32.pop %v994
          %vm998 = vweird.f32 %v383
          %v999 = vadd.s32 %v995, 3
          %v1000 = vand.u32 %v999, 3
          %vm1001 = vcmp.lt.s32.totalorder %v1000, 2
          %vm1002 = vcmp.eq.s32.totalorder %v1000, 0
          %v1003 = vxor.u32 %v997, 2147483648
          %v1004 = vsel %vm1002, %v996, %v1003
          %vm1005 = vcmp.eq.s32.totalorder %v1000, 2
          %v1006 = vxor.u32 %v996, 2147483648
          %v1007 = vsel %vm1005, %v1006, %v997
          %v1008 = vsel %vm1001, %v1004, %v1007
          %v1009 = vsel %vm998, nan, %v1008
          %v1010 = vand.u32 2147483647, %v384
          %vm1011 = vcmp.le.f32.partialorder %v1010, 0.7853982
          %vm1012 = vcmp.lt.s32.totalorder %v384, 0
          %v1013 = vand.u32 %v384, 2139095040
          %v1014 = vshrl.u32 %v1013, 23
          %v1015 = vsub.s32 %v1014, 127
          %v1016 = vand.u32 2147483647, %v384
          %v1017 = vand.u32 %v1016, 8388607
          %v1018 = vor.u32 %v1017, 8388608
          %v1019 = vsub.s32 0, %v1018
          %v1020 = vadd.s32 %v1015, 1
          %vm1021 = vcmp.gt.s32.totalorder %v1020, 0
          %v1022 = vsel %vm1021, %v1020, 0
          %v1023 = vshrl.u32 %v1022, 5
          %v1024 = vand.u32 %v1022, 31
          %v1025 = vsub.s32 32, %v1024
          %v1026 = vshrl.u32 683565275, %v1025
          %v1027 = vshll.u32 683565275, %v1024
          %v1028 = vshrl.u32 2475754826, %v1025
          %v1029 = vor.u32 %v1027, %v1028
          %v1030 = vshll.u32 2475754826, %v1024
          %v1031 = vshrl.u32 2131351028, %v1025
          %v1032 = vor.u32 %v1030, %v1031
          %v1033 = vshll.u32 2131351028, %v1024
          %v1034 = vshrl.u32 2102212464, %v1025
          %v1035 = vor.u32 %v1033, %v1034
          %v1036 = vshll.u32 2102212464, %v1024
          %v1037 = vshrl.u32 920167782, %v1025
          %v1038 = vor.u32 %v1036, %v1037
          %v1039 = vshll.u32 920167782, %v1024
          %v1040 = vshrl.u32 1326507024, %v1025
          %v1041 = vor.u32 %v1039, %v1040
          %vm1042 = vcmp.lt.s32.totalorder %v1023, 1
          %vm1043 = vcmp.lt.s32.totalorder %v1023, 2
          %vm1044 = vcmp.lt.s32.totalorder %v1023, 3
          %vm1045 = vcmp.lt.s32.totalorder %v1023, 4
          %v1046 = vsel %vm1042, %v1026, %v1029
          %v1047 = vsel %vm1045, %v1035, 2102212464
          %v1048 = vsel %vm1044, %v1032, %v1047
          %v1049 = vsel %vm1043, %v1046, %v1048
          %v1050 = vsel %vm1042, %v1029, %v1032
          %v1051 = vsel %vm1045, %v1038, 920167782
          %v1052 = vsel %vm1044, %v1035, %v1051
          %v1053 = vsel %vm1043, %v1050, %v1052
          %v1054 = vsel %vm1042, %v1032, %v1035
          %v1055 = vsel %vm1045, %v1041, 1326507024
          %v1056 = vsel %vm1044, %v1038, %v1055
          %v1057 = vsel %vm1043, %v1054, %v1056
          %v1058 = vshll.u32 %v1018, 8
          %v1059 = vmul.u32.u64.compose %v1058, %v1057
          %v1060 = vextract.low.u32 %v1059
          %v1061 = vextract.high.u32 %v1059
          %v1062 = vmul.u32.u64.compose %v1058, %v1053
          %v1063 = vextract.low.u32 %v1062
          %v1064 = vextract.high.u32 %v1062
          %v1065 = vmul.u32 %v1058, %v1049
          %v1066 = vadd.s32 %v1061, %v1063
          %vm1067 = vc.u32 %v1061, %v1063
          %v1068 = vadd.s32 %v1064, 1
          %v1069 = vsel %vm1067, %v1068, %v1064
          %v1070 = vadd.s32 %v1065, %v1069
          %v1071 = vadd.s32 %v1070, 536870912
          %v1072 = vshrl.u32 %v1071, 30
          %v1073 = vshll.u32 %v1072, 30
          %v1074 = vsub.s32 %v1070, %v1073
          %vm1075 = vcmp.lt.s32.totalorder %v1074, 0
          %v1076 = vsub.s32 0, %v1074
          %v1077 = vsel %vm1075, %v1076, %v1074
          %v1078 = vclz %v1077
          %v1079 = vsub.s32 %v1078, 2
          %vm1080 = vcmp.gt.s32.totalorder 0, %v1079
          %v1081 = vsel %vm1080, 0, %v1079
          %v1082 = vsub.s32 32, %v1081
          %v1083 = vshll.u32 %v1074, %v1081
          %v1084 = vshrl.u32 %v1066, %v1082
          %v1085 = vor.u32 %v1083, %v1084
          %v1086 = vsub.s32 4294967266, %v1081
          %v1087 = vadd.s32 %v1086, 127
          %v1088 = vshll.u32 %v1087, 23
          %v1089 = vor.u32 4788187, %v1088
          %v1090 = vand.u32 2147483647, %v1089
          %v1092 = vcvt.s32.f32 %v1085
          %v1093 = vmul.f32 %v1092, %v1090
          %v1094 = vxor.u32 %v1093, 2147483648
          %v1095 = vsel %vm1012, %v1094, %v1093
          %v1096 = vsub.s32 4, %v1072
          %v1097 = vsel %vm1012, %v1096, %v1072
          %v1098 = vsel %vm1011, %v384, %v1095
          %v1099 = vsel %vm1011, 0, %v1097
          %v1100 = vcosq.f32.pop %v1098
          %v1101 = vsinq.f32.pop %v1098
          %vm1102 = vweird.f32 %v384
          %v1103 = vadd.s32 %v1099, 3
          %v1104 = vand.u32 %v1103, 3
          %vm1105 = vcmp.lt.s32.totalorder %v1104, 2
          %vm1106 = vcmp.eq.s32.totalorder %v1104, 0
          %v1107 = vxor.u32 %v1101, 2147483648
          %v1108 = vsel %vm1106, %v1100, %v1107
          %vm1109 = vcmp.eq.s32.totalorder %v1104, 2
          %v1110 = vxor.u32 %v1100, 2147483648
          %v1111 = vsel %vm1109, %v1110, %v1101
          %v1112 = vsel %vm1105, %v1108, %v1111
          %v1113 = vsel %vm1102, nan, %v1112
          %v1114 = vand.u32 2147483647, %v385
          %vm1115 = vcmp.le.f32.partialorder %v1114, 0.7853982
          %vm1116 = vcmp.lt.s32.totalorder %v385, 0
          %v1117 = vand.u32 %v385, 2139095040
          %v1118 = vshrl.u32 %v1117, 23
          %v1119 = vsub.s32 %v1118, 127
          %v1120 = vand.u32 2147483647, %v385
          %v1121 = vand.u32 %v1120, 8388607
          %v1122 = vor.u32 %v1121, 8388608
          %v1123 = vsub.s32 0, %v1122
          %v1124 = vadd.s32 %v1119, 1
          %vm1125 = vcmp.gt.s32.totalorder %v1124, 0
          %v1126 = vsel %vm1125, %v1124, 0
          %v1127 = vshrl.u32 %v1126, 5
          %v1128 = vand.u32 %v1126, 31
          %v1129 = vsub.s32 32, %v1128
          %v1130 = vshrl.u32 683565275, %v1129
          %v1131 = vshll.u32 683565275, %v1128
          %v1132 = vshrl.u32 2475754826, %v1129
          %v1133 = vor.u32 %v1131, %v1132
          %v1134 = vshll.u32 2475754826, %v1128
          %v1135 = vshrl.u32 2131351028, %v1129
          %v1136 = vor.u32 %v1134, %v1135
          %v1137 = vshll.u32 2131351028, %v1128
          %v1138 = vshrl.u32 2102212464, %v1129
          %v1139 = vor.u32 %v1137, %v1138
          %v1140 = vshll.u32 2102212464, %v1128
          %v1141 = vshrl.u32 920167782, %v1129
          %v1142 = vor.u32 %v1140, %v1141
          %v1143 = vshll.u32 920167782, %v1128
          %v1144 = vshrl.u32 1326507024, %v1129
          %v1145 = vor.u32 %v1143, %v1144
          %vm1146 = vcmp.lt.s32.totalorder %v1127, 1
          %vm1147 = vcmp.lt.s32.totalorder %v1127, 2
          %vm1148 = vcmp.lt.s32.totalorder %v1127, 3
          %vm1149 = vcmp.lt.s32.totalorder %v1127, 4
          %v1150 = vsel %vm1146, %v1130, %v1133
          %v1151 = vsel %vm1149, %v1139, 2102212464
          %v1152 = vsel %vm1148, %v1136, %v1151
          %v1153 = vsel %vm1147, %v1150, %v1152
          %v1154 = vsel %vm1146, %v1133, %v1136
          %v1155 = vsel %vm1149, %v1142, 920167782
          %v1156 = vsel %vm1148, %v1139, %v1155
          %v1157 = vsel %vm1147, %v1154, %v1156
          %v1158 = vsel %vm1146, %v1136, %v1139
          %v1159 = vsel %vm1149, %v1145, 1326507024
          %v1160 = vsel %vm1148, %v1142, %v1159
          %v1161 = vsel %vm1147, %v1158, %v1160
          %v1162 = vshll.u32 %v1122, 8
          %v1163 = vmul.u32.u64.compose %v1162, %v1161
          %v1164 = vextract.low.u32 %v1163
          %v1165 = vextract.high.u32 %v1163
          %v1166 = vmul.u32.u64.compose %v1162, %v1157
          %v1167 = vextract.low.u32 %v1166
          %v1168 = vextract.high.u32 %v1166
          %v1169 = vmul.u32 %v1162, %v1153
          %v1170 = vadd.s32 %v1165, %v1167
          %vm1171 = vc.u32 %v1165, %v1167
          %v1172 = vadd.s32 %v1168, 1
          %v1173 = vsel %vm1171, %v1172, %v1168
          %v1174 = vadd.s32 %v1169, %v1173
          %v1175 = vadd.s32 %v1174, 536870912
          %v1176 = vshrl.u32 %v1175, 30
          %v1177 = vshll.u32 %v1176, 30
          %v1178 = vsub.s32 %v1174, %v1177
          %vm1179 = vcmp.lt.s32.totalorder %v1178, 0
          %v1180 = vsub.s32 0, %v1178
          %v1181 = vsel %vm1179, %v1180, %v1178
          %v1182 = vclz %v1181
          %v1183 = vsub.s32 %v1182, 2
          %vm1184 = vcmp.gt.s32.totalorder 0, %v1183
          %v1185 = vsel %vm1184, 0, %v1183
          %v1186 = vsub.s32 32, %v1185
          %v1187 = vshll.u32 %v1178, %v1185
          %v1188 = vshrl.u32 %v1170, %v1186
          %v1189 = vor.u32 %v1187, %v1188
          %v1190 = vsub.s32 4294967266, %v1185
          %v1191 = vadd.s32 %v1190, 127
          %v1192 = vshll.u32 %v1191, 23
          %v1193 = vor.u32 4788187, %v1192
          %v1194 = vand.u32 2147483647, %v1193
          %v1196 = vcvt.s32.f32 %v1189
          %v1197 = vmul.f32 %v1196, %v1194
          %v1198 = vxor.u32 %v1197, 2147483648
          %v1199 = vsel %vm1116, %v1198, %v1197
          %v1200 = vsub.s32 4, %v1176
          %v1201 = vsel %vm1116, %v1200, %v1176
          %v1202 = vsel %vm1115, %v385, %v1199
          %v1203 = vsel %vm1115, 0, %v1201
          %v1204 = vcosq.f32.pop %v1202
          %v1205 = vsinq.f32.pop %v1202
          %vm1206 = vweird.f32 %v385
          %v1207 = vadd.s32 %v1203, 3
          %v1208 = vand.u32 %v1207, 3
          %vm1209 = vcmp.lt.s32.totalorder %v1208, 2
          %vm1210 = vcmp.eq.s32.totalorder %v1208, 0
          %v1211 = vxor.u32 %v1205, 2147483648
          %v1212 = vsel %vm1210, %v1204, %v1211
          %vm1213 = vcmp.eq.s32.totalorder %v1208, 2
          %v1214 = vxor.u32 %v1204, 2147483648
          %v1215 = vsel %vm1213, %v1214, %v1205
          %v1216 = vsel %vm1209, %v1212, %v1215
          %v1217 = vsel %vm1206, nan, %v1216
          %1218 = vst [vmem:[#allocation2] sm:$0xff] %v489
          %1219 = vst [vmem:[#allocation2 + $0x8] sm:$0xff] %v593
          %1220 = vst [vmem:[#allocation2 + $0x10] sm:$0xff] %v697
          %1221 = vst [vmem:[#allocation2 + $0x18] sm:$0xff] %v801
          %1222 = vst [vmem:[#allocation2 + $0x20] sm:$0xff] %v905
          %1223 = vst [vmem:[#allocation2 + $0x28] sm:$0xff] %v1009
          %1224 = vst [vmem:[#allocation2 + $0x30] sm:$0xff] %v1113
          %1225 = vst [vmem:[#allocation2 + $0x38] sm:$0xff] %v1217
          %v1226 = vld [vmem:[%s238] sm:$0x1]
          %v1228 = vlaneseq
          %v1229 = vshrl.u32 %v1228, 7
          %v1230 = vsub.s32 0, %v1229
          %v1231 = vrot.slane %v1226, %v1230
          %v1233 = vmul.f32 %v1231, %v293
          %v1234 = vmul.f32 %v1231, %v298
          %v1235 = vmul.f32 %v1231, %v303
          %v1236 = vmul.f32 %v1231, %v308
          %v1237 = vmul.f32 %v1231, %v313
          %v1238 = vmul.f32 %v1231, %v318
          %v1239 = vmul.f32 %v1231, %v323
          %v1240 = vmul.f32 %v1231, %v328
          %v1241 = vadd.f32 %v1233, %v341
          %v1242 = vadd.f32 %v1234, %v346
          %v1243 = vadd.f32 %v1235, %v351
          %v1244 = vadd.f32 %v1236, %v356
          %v1245 = vadd.f32 %v1237, %v361
          %v1246 = vadd.f32 %v1238, %v366
          %v1247 = vadd.f32 %v1239, %v371
          %v1248 = vadd.f32 %v1240, %v376
          %v1249 = vand.u32 2147483647, %v1241
          %vm1250 = vcmp.le.f32.partialorder %v1249, 0.7853982
          %vm1251 = vcmp.lt.s32.totalorder %v1241, 0
          %v1252 = vand.u32 %v1241, 2139095040
          %v1253 = vshrl.u32 %v1252, 23
          %v1254 = vsub.s32 %v1253, 127
          %v1255 = vand.u32 2147483647, %v1241
          %v1256 = vand.u32 %v1255, 8388607
          %v1257 = vor.u32 %v1256, 8388608
          %v1258 = vsub.s32 0, %v1257
          %v1259 = vadd.s32 %v1254, 1
          %vm1260 = vcmp.gt.s32.totalorder %v1259, 0
          %v1261 = vsel %vm1260, %v1259, 0
          %v1262 = vshrl.u32 %v1261, 5
          %v1263 = vand.u32 %v1261, 31
          %v1264 = vsub.s32 32, %v1263
          %v1265 = vshrl.u32 683565275, %v1264
          %v1266 = vshll.u32 683565275, %v1263
          %v1267 = vshrl.u32 2475754826, %v1264
          %v1268 = vor.u32 %v1266, %v1267
          %v1269 = vshll.u32 2475754826, %v1263
          %v1270 = vshrl.u32 2131351028, %v1264
          %v1271 = vor.u32 %v1269, %v1270
          %v1272 = vshll.u32 2131351028, %v1263
          %v1273 = vshrl.u32 2102212464, %v1264
          %v1274 = vor.u32 %v1272, %v1273
          %v1275 = vshll.u32 2102212464, %v1263
          %v1276 = vshrl.u32 920167782, %v1264
          %v1277 = vor.u32 %v1275, %v1276
          %v1278 = vshll.u32 920167782, %v1263
          %v1279 = vshrl.u32 1326507024, %v1264
          %v1280 = vor.u32 %v1278, %v1279
          %vm1281 = vcmp.lt.s32.totalorder %v1262, 1
          %vm1282 = vcmp.lt.s32.totalorder %v1262, 2
          %vm1283 = vcmp.lt.s32.totalorder %v1262, 3
          %vm1284 = vcmp.lt.s32.totalorder %v1262, 4
          %v1285 = vsel %vm1281, %v1265, %v1268
          %v1286 = vsel %vm1284, %v1274, 2102212464
          %v1287 = vsel %vm1283, %v1271, %v1286
          %v1288 = vsel %vm1282, %v1285, %v1287
          %v1289 = vsel %vm1281, %v1268, %v1271
          %v1290 = vsel %vm1284, %v1277, 920167782
          %v1291 = vsel %vm1283, %v1274, %v1290
          %v1292 = vsel %vm1282, %v1289, %v1291
          %v1293 = vsel %vm1281, %v1271, %v1274
          %v1294 = vsel %vm1284, %v1280, 1326507024
          %v1295 = vsel %vm1283, %v1277, %v1294
          %v1296 = vsel %vm1282, %v1293, %v1295
          %v1297 = vshll.u32 %v1257, 8
          %v1298 = vmul.u32.u64.compose %v1297, %v1296
          %v1299 = vextract.low.u32 %v1298
          %v1300 = vextract.high.u32 %v1298
          %v1301 = vmul.u32.u64.compose %v1297, %v1292
          %v1302 = vextract.low.u32 %v1301
          %v1303 = vextract.high.u32 %v1301
          %v1304 = vmul.u32 %v1297, %v1288
          %v1305 = vadd.s32 %v1300, %v1302
          %vm1306 = vc.u32 %v1300, %v1302
          %v1307 = vadd.s32 %v1303, 1
          %v1308 = vsel %vm1306, %v1307, %v1303
          %v1309 = vadd.s32 %v1304, %v1308
          %v1310 = vadd.s32 %v1309, 536870912
          %v1311 = vshrl.u32 %v1310, 30
          %v1312 = vshll.u32 %v1311, 30
          %v1313 = vsub.s32 %v1309, %v1312
          %vm1314 = vcmp.lt.s32.totalorder %v1313, 0
          %v1315 = vsub.s32 0, %v1313
          %v1316 = vsel %vm1314, %v1315, %v1313
          %v1317 = vclz %v1316
          %v1318 = vsub.s32 %v1317, 2
          %vm1319 = vcmp.gt.s32.totalorder 0, %v1318
          %v1320 = vsel %vm1319, 0, %v1318
          %v1321 = vsub.s32 32, %v1320
          %v1322 = vshll.u32 %v1313, %v1320
          %v1323 = vshrl.u32 %v1305, %v1321
          %v1324 = vor.u32 %v1322, %v1323
          %v1325 = vsub.s32 4294967266, %v1320
          %v1326 = vadd.s32 %v1325, 127
          %v1327 = vshll.u32 %v1326, 23
          %v1328 = vor.u32 4788187, %v1327
          %v1329 = vand.u32 2147483647, %v1328
          %v1331 = vcvt.s32.f32 %v1324
          %v1332 = vmul.f32 %v1331, %v1329
          %v1333 = vxor.u32 %v1332, 2147483648
          %v1334 = vsel %vm1251, %v1333, %v1332
          %v1335 = vsub.s32 4, %v1311
          %v1336 = vsel %vm1251, %v1335, %v1311
          %v1337 = vsel %vm1250, %v1241, %v1334
          %v1338 = vsel %vm1250, 0, %v1336
          %v1339 = vcosq.f32.pop %v1337
          %v1340 = vsinq.f32.pop %v1337
          %vm1341 = vweird.f32 %v1241
          %v1342 = vadd.s32 %v1338, 3
          %v1343 = vand.u32 %v1342, 3
          %vm1344 = vcmp.lt.s32.totalorder %v1343, 2
          %vm1345 = vcmp.eq.s32.totalorder %v1343, 0
          %v1346 = vxor.u32 %v1340, 2147483648
          %v1347 = vsel %vm1345, %v1339, %v1346
          %vm1348 = vcmp.eq.s32.totalorder %v1343, 2
          %v1349 = vxor.u32 %v1339, 2147483648
          %v1350 = vsel %vm1348, %v1349, %v1340
          %v1351 = vsel %vm1344, %v1347, %v1350
          %v1352 = vsel %vm1341, nan, %v1351
          %v1353 = vand.u32 2147483647, %v1242
          %vm1354 = vcmp.le.f32.partialorder %v1353, 0.7853982
          %vm1355 = vcmp.lt.s32.totalorder %v1242, 0
          %v1356 = vand.u32 %v1242, 2139095040
          %v1357 = vshrl.u32 %v1356, 23
          %v1358 = vsub.s32 %v1357, 127
          %v1359 = vand.u32 2147483647, %v1242
          %v1360 = vand.u32 %v1359, 8388607
          %v1361 = vor.u32 %v1360, 8388608
          %v1362 = vsub.s32 0, %v1361
          %v1363 = vadd.s32 %v1358, 1
          %vm1364 = vcmp.gt.s32.totalorder %v1363, 0
          %v1365 = vsel %vm1364, %v1363, 0
          %v1366 = vshrl.u32 %v1365, 5
          %v1367 = vand.u32 %v1365, 31
          %v1368 = vsub.s32 32, %v1367
          %v1369 = vshrl.u32 683565275, %v1368
          %v1370 = vshll.u32 683565275, %v1367
          %v1371 = vshrl.u32 2475754826, %v1368
          %v1372 = vor.u32 %v1370, %v1371
          %v1373 = vshll.u32 2475754826, %v1367
          %v1374 = vshrl.u32 2131351028, %v1368
          %v1375 = vor.u32 %v1373, %v1374
          %v1376 = vshll.u32 2131351028, %v1367
          %v1377 = vshrl.u32 2102212464, %v1368
          %v1378 = vor.u32 %v1376, %v1377
          %v1379 = vshll.u32 2102212464, %v1367
          %v1380 = vshrl.u32 920167782, %v1368
          %v1381 = vor.u32 %v1379, %v1380
          %v1382 = vshll.u32 920167782, %v1367
          %v1383 = vshrl.u32 1326507024, %v1368
          %v1384 = vor.u32 %v1382, %v1383
          %vm1385 = vcmp.lt.s32.totalorder %v1366, 1
          %vm1386 = vcmp.lt.s32.totalorder %v1366, 2
          %vm1387 = vcmp.lt.s32.totalorder %v1366, 3
          %vm1388 = vcmp.lt.s32.totalorder %v1366, 4
          %v1389 = vsel %vm1385, %v1369, %v1372
          %v1390 = vsel %vm1388, %v1378, 2102212464
          %v1391 = vsel %vm1387, %v1375, %v1390
          %v1392 = vsel %vm1386, %v1389, %v1391
          %v1393 = vsel %vm1385, %v1372, %v1375
          %v1394 = vsel %vm1388, %v1381, 920167782
          %v1395 = vsel %vm1387, %v1378, %v1394
          %v1396 = vsel %vm1386, %v1393, %v1395
          %v1397 = vsel %vm1385, %v1375, %v1378
          %v1398 = vsel %vm1388, %v1384, 1326507024
          %v1399 = vsel %vm1387, %v1381, %v1398
          %v1400 = vsel %vm1386, %v1397, %v1399
          %v1401 = vshll.u32 %v1361, 8
          %v1402 = vmul.u32.u64.compose %v1401, %v1400
          %v1403 = vextract.low.u32 %v1402
          %v1404 = vextract.high.u32 %v1402
          %v1405 = vmul.u32.u64.compose %v1401, %v1396
          %v1406 = vextract.low.u32 %v1405
          %v1407 = vextract.high.u32 %v1405
          %v1408 = vmul.u32 %v1401, %v1392
          %v1409 = vadd.s32 %v1404, %v1406
          %vm1410 = vc.u32 %v1404, %v1406
          %v1411 = vadd.s32 %v1407, 1
          %v1412 = vsel %vm1410, %v1411, %v1407
          %v1413 = vadd.s32 %v1408, %v1412
          %v1414 = vadd.s32 %v1413, 536870912
          %v1415 = vshrl.u32 %v1414, 30
          %v1416 = vshll.u32 %v1415, 30
          %v1417 = vsub.s32 %v1413, %v1416
          %vm1418 = vcmp.lt.s32.totalorder %v1417, 0
          %v1419 = vsub.s32 0, %v1417
          %v1420 = vsel %vm1418, %v1419, %v1417
          %v1421 = vclz %v1420
          %v1422 = vsub.s32 %v1421, 2
          %vm1423 = vcmp.gt.s32.totalorder 0, %v1422
          %v1424 = vsel %vm1423, 0, %v1422
          %v1425 = vsub.s32 32, %v1424
          %v1426 = vshll.u32 %v1417, %v1424
          %v1427 = vshrl.u32 %v1409, %v1425
          %v1428 = vor.u32 %v1426, %v1427
          %v1429 = vsub.s32 4294967266, %v1424
          %v1430 = vadd.s32 %v1429, 127
          %v1431 = vshll.u32 %v1430, 23
          %v1432 = vor.u32 4788187, %v1431
          %v1433 = vand.u32 2147483647, %v1432
          %v1435 = vcvt.s32.f32 %v1428
          %v1436 = vmul.f32 %v1435, %v1433
          %v1437 = vxor.u32 %v1436, 2147483648
          %v1438 = vsel %vm1355, %v1437, %v1436
          %v1439 = vsub.s32 4, %v1415
          %v1440 = vsel %vm1355, %v1439, %v1415
          %v1441 = vsel %vm1354, %v1242, %v1438
          %v1442 = vsel %vm1354, 0, %v1440
          %v1443 = vcosq.f32.pop %v1441
          %v1444 = vsinq.f32.pop %v1441
          %vm1445 = vweird.f32 %v1242
          %v1446 = vadd.s32 %v1442, 3
          %v1447 = vand.u32 %v1446, 3
          %vm1448 = vcmp.lt.s32.totalorder %v1447, 2
          %vm1449 = vcmp.eq.s32.totalorder %v1447, 0
          %v1450 = vxor.u32 %v1444, 2147483648
          %v1451 = vsel %vm1449, %v1443, %v1450
          %vm1452 = vcmp.eq.s32.totalorder %v1447, 2
          %v1453 = vxor.u32 %v1443, 2147483648
          %v1454 = vsel %vm1452, %v1453, %v1444
          %v1455 = vsel %vm1448, %v1451, %v1454
          %v1456 = vsel %vm1445, nan, %v1455
          %v1457 = vand.u32 2147483647, %v1243
          %vm1458 = vcmp.le.f32.partialorder %v1457, 0.7853982
          %vm1459 = vcmp.lt.s32.totalorder %v1243, 0
          %v1460 = vand.u32 %v1243, 2139095040
          %v1461 = vshrl.u32 %v1460, 23
          %v1462 = vsub.s32 %v1461, 127
          %v1463 = vand.u32 2147483647, %v1243
          %v1464 = vand.u32 %v1463, 8388607
          %v1465 = vor.u32 %v1464, 8388608
          %v1466 = vsub.s32 0, %v1465
          %v1467 = vadd.s32 %v1462, 1
          %vm1468 = vcmp.gt.s32.totalorder %v1467, 0
          %v1469 = vsel %vm1468, %v1467, 0
          %v1470 = vshrl.u32 %v1469, 5
          %v1471 = vand.u32 %v1469, 31
          %v1472 = vsub.s32 32, %v1471
          %v1473 = vshrl.u32 683565275, %v1472
          %v1474 = vshll.u32 683565275, %v1471
          %v1475 = vshrl.u32 2475754826, %v1472
          %v1476 = vor.u32 %v1474, %v1475
          %v1477 = vshll.u32 2475754826, %v1471
          %v1478 = vshrl.u32 2131351028, %v1472
          %v1479 = vor.u32 %v1477, %v1478
          %v1480 = vshll.u32 2131351028, %v1471
          %v1481 = vshrl.u32 2102212464, %v1472
          %v1482 = vor.u32 %v1480, %v1481
          %v1483 = vshll.u32 2102212464, %v1471
          %v1484 = vshrl.u32 920167782, %v1472
          %v1485 = vor.u32 %v1483, %v1484
          %v1486 = vshll.u32 920167782, %v1471
          %v1487 = vshrl.u32 1326507024, %v1472
          %v1488 = vor.u32 %v1486, %v1487
          %vm1489 = vcmp.lt.s32.totalorder %v1470, 1
          %vm1490 = vcmp.lt.s32.totalorder %v1470, 2
          %vm1491 = vcmp.lt.s32.totalorder %v1470, 3
          %vm1492 = vcmp.lt.s32.totalorder %v1470, 4
          %v1493 = vsel %vm1489, %v1473, %v1476
          %v1494 = vsel %vm1492, %v1482, 2102212464
          %v1495 = vsel %vm1491, %v1479, %v1494
          %v1496 = vsel %vm1490, %v1493, %v1495
          %v1497 = vsel %vm1489, %v1476, %v1479
          %v1498 = vsel %vm1492, %v1485, 920167782
          %v1499 = vsel %vm1491, %v1482, %v1498
          %v1500 = vsel %vm1490, %v1497, %v1499
          %v1501 = vsel %vm1489, %v1479, %v1482
          %v1502 = vsel %vm1492, %v1488, 1326507024
          %v1503 = vsel %vm1491, %v1485, %v1502
          %v1504 = vsel %vm1490, %v1501, %v1503
          %v1505 = vshll.u32 %v1465, 8
          %v1506 = vmul.u32.u64.compose %v1505, %v1504
          %v1507 = vextract.low.u32 %v1506
          %v1508 = vextract.high.u32 %v1506
          %v1509 = vmul.u32.u64.compose %v1505, %v1500
          %v1510 = vextract.low.u32 %v1509
          %v1511 = vextract.high.u32 %v1509
          %v1512 = vmul.u32 %v1505, %v1496
          %v1513 = vadd.s32 %v1508, %v1510
          %vm1514 = vc.u32 %v1508, %v1510
          %v1515 = vadd.s32 %v1511, 1
          %v1516 = vsel %vm1514, %v1515, %v1511
          %v1517 = vadd.s32 %v1512, %v1516
          %v1518 = vadd.s32 %v1517, 536870912
          %v1519 = vshrl.u32 %v1518, 30
          %v1520 = vshll.u32 %v1519, 30
          %v1521 = vsub.s32 %v1517, %v1520
          %vm1522 = vcmp.lt.s32.totalorder %v1521, 0
          %v1523 = vsub.s32 0, %v1521
          %v1524 = vsel %vm1522, %v1523, %v1521
          %v1525 = vclz %v1524
          %v1526 = vsub.s32 %v1525, 2
          %vm1527 = vcmp.gt.s32.totalorder 0, %v1526
          %v1528 = vsel %vm1527, 0, %v1526
          %v1529 = vsub.s32 32, %v1528
          %v1530 = vshll.u32 %v1521, %v1528
          %v1531 = vshrl.u32 %v1513, %v1529
          %v1532 = vor.u32 %v1530, %v1531
          %v1533 = vsub.s32 4294967266, %v1528
          %v1534 = vadd.s32 %v1533, 127
          %v1535 = vshll.u32 %v1534, 23
          %v1536 = vor.u32 4788187, %v1535
          %v1537 = vand.u32 2147483647, %v1536
          %v1539 = vcvt.s32.f32 %v1532
          %v1540 = vmul.f32 %v1539, %v1537
          %v1541 = vxor.u32 %v1540, 2147483648
          %v1542 = vsel %vm1459, %v1541, %v1540
          %v1543 = vsub.s32 4, %v1519
          %v1544 = vsel %vm1459, %v1543, %v1519
          %v1545 = vsel %vm1458, %v1243, %v1542
          %v1546 = vsel %vm1458, 0, %v1544
          %v1547 = vcosq.f32.pop %v1545
          %v1548 = vsinq.f32.pop %v1545
          %vm1549 = vweird.f32 %v1243
          %v1550 = vadd.s32 %v1546, 3
          %v1551 = vand.u32 %v1550, 3
          %vm1552 = vcmp.lt.s32.totalorder %v1551, 2
          %vm1553 = vcmp.eq.s32.totalorder %v1551, 0
          %v1554 = vxor.u32 %v1548, 2147483648
          %v1555 = vsel %vm1553, %v1547, %v1554
          %vm1556 = vcmp.eq.s32.totalorder %v1551, 2
          %v1557 = vxor.u32 %v1547, 2147483648
          %v1558 = vsel %vm1556, %v1557, %v1548
          %v1559 = vsel %vm1552, %v1555, %v1558
          %v1560 = vsel %vm1549, nan, %v1559
          %v1561 = vand.u32 2147483647, %v1244
          %vm1562 = vcmp.le.f32.partialorder %v1561, 0.7853982
          %vm1563 = vcmp.lt.s32.totalorder %v1244, 0
          %v1564 = vand.u32 %v1244, 2139095040
          %v1565 = vshrl.u32 %v1564, 23
          %v1566 = vsub.s32 %v1565, 127
          %v1567 = vand.u32 2147483647, %v1244
          %v1568 = vand.u32 %v1567, 8388607
          %v1569 = vor.u32 %v1568, 8388608
          %v1570 = vsub.s32 0, %v1569
          %v1571 = vadd.s32 %v1566, 1
          %vm1572 = vcmp.gt.s32.totalorder %v1571, 0
          %v1573 = vsel %vm1572, %v1571, 0
          %v1574 = vshrl.u32 %v1573, 5
          %v1575 = vand.u32 %v1573, 31
          %v1576 = vsub.s32 32, %v1575
          %v1577 = vshrl.u32 683565275, %v1576
          %v1578 = vshll.u32 683565275, %v1575
          %v1579 = vshrl.u32 2475754826, %v1576
          %v1580 = vor.u32 %v1578, %v1579
          %v1581 = vshll.u32 2475754826, %v1575
          %v1582 = vshrl.u32 2131351028, %v1576
          %v1583 = vor.u32 %v1581, %v1582
          %v1584 = vshll.u32 2131351028, %v1575
          %v1585 = vshrl.u32 2102212464, %v1576
          %v1586 = vor.u32 %v1584, %v1585
          %v1587 = vshll.u32 2102212464, %v1575
          %v1588 = vshrl.u32 920167782, %v1576
          %v1589 = vor.u32 %v1587, %v1588
          %v1590 = vshll.u32 920167782, %v1575
          %v1591 = vshrl.u32 1326507024, %v1576
          %v1592 = vor.u32 %v1590, %v1591
          %vm1593 = vcmp.lt.s32.totalorder %v1574, 1
          %vm1594 = vcmp.lt.s32.totalorder %v1574, 2
          %vm1595 = vcmp.lt.s32.totalorder %v1574, 3
          %vm1596 = vcmp.lt.s32.totalorder %v1574, 4
          %v1597 = vsel %vm1593, %v1577, %v1580
          %v1598 = vsel %vm1596, %v1586, 2102212464
          %v1599 = vsel %vm1595, %v1583, %v1598
          %v1600 = vsel %vm1594, %v1597, %v1599
          %v1601 = vsel %vm1593, %v1580, %v1583
          %v1602 = vsel %vm1596, %v1589, 920167782
          %v1603 = vsel %vm1595, %v1586, %v1602
          %v1604 = vsel %vm1594, %v1601, %v1603
          %v1605 = vsel %vm1593, %v1583, %v1586
          %v1606 = vsel %vm1596, %v1592, 1326507024
          %v1607 = vsel %vm1595, %v1589, %v1606
          %v1608 = vsel %vm1594, %v1605, %v1607
          %v1609 = vshll.u32 %v1569, 8
          %v1610 = vmul.u32.u64.compose %v1609, %v1608
          %v1611 = vextract.low.u32 %v1610
          %v1612 = vextract.high.u32 %v1610
          %v1613 = vmul.u32.u64.compose %v1609, %v1604
          %v1614 = vextract.low.u32 %v1613
          %v1615 = vextract.high.u32 %v1613
          %v1616 = vmul.u32 %v1609, %v1600
          %v1617 = vadd.s32 %v1612, %v1614
          %vm1618 = vc.u32 %v1612, %v1614
          %v1619 = vadd.s32 %v1615, 1
          %v1620 = vsel %vm1618, %v1619, %v1615
          %v1621 = vadd.s32 %v1616, %v1620
          %v1622 = vadd.s32 %v1621, 536870912
          %v1623 = vshrl.u32 %v1622, 30
          %v1624 = vshll.u32 %v1623, 30
          %v1625 = vsub.s32 %v1621, %v1624
          %vm1626 = vcmp.lt.s32.totalorder %v1625, 0
          %v1627 = vsub.s32 0, %v1625
          %v1628 = vsel %vm1626, %v1627, %v1625
          %v1629 = vclz %v1628
          %v1630 = vsub.s32 %v1629, 2
          %vm1631 = vcmp.gt.s32.totalorder 0, %v1630
          %v1632 = vsel %vm1631, 0, %v1630
          %v1633 = vsub.s32 32, %v1632
          %v1634 = vshll.u32 %v1625, %v1632
          %v1635 = vshrl.u32 %v1617, %v1633
          %v1636 = vor.u32 %v1634, %v1635
          %v1637 = vsub.s32 4294967266, %v1632
          %v1638 = vadd.s32 %v1637, 127
          %v1639 = vshll.u32 %v1638, 23
          %v1640 = vor.u32 4788187, %v1639
          %v1641 = vand.u32 2147483647, %v1640
          %v1643 = vcvt.s32.f32 %v1636
          %v1644 = vmul.f32 %v1643, %v1641
          %v1645 = vxor.u32 %v1644, 2147483648
          %v1646 = vsel %vm1563, %v1645, %v1644
          %v1647 = vsub.s32 4, %v1623
          %v1648 = vsel %vm1563, %v1647, %v1623
          %v1649 = vsel %vm1562, %v1244, %v1646
          %v1650 = vsel %vm1562, 0, %v1648
          %v1651 = vcosq.f32.pop %v1649
          %v1652 = vsinq.f32.pop %v1649
          %vm1653 = vweird.f32 %v1244
          %v1654 = vadd.s32 %v1650, 3
          %v1655 = vand.u32 %v1654, 3
          %vm1656 = vcmp.lt.s32.totalorder %v1655, 2
          %vm1657 = vcmp.eq.s32.totalorder %v1655, 0
          %v1658 = vxor.u32 %v1652, 2147483648
          %v1659 = vsel %vm1657, %v1651, %v1658
          %vm1660 = vcmp.eq.s32.totalorder %v1655, 2
          %v1661 = vxor.u32 %v1651, 2147483648
          %v1662 = vsel %vm1660, %v1661, %v1652
          %v1663 = vsel %vm1656, %v1659, %v1662
          %v1664 = vsel %vm1653, nan, %v1663
          %v1665 = vand.u32 2147483647, %v1245
          %vm1666 = vcmp.le.f32.partialorder %v1665, 0.7853982
          %vm1667 = vcmp.lt.s32.totalorder %v1245, 0
          %v1668 = vand.u32 %v1245, 2139095040
          %v1669 = vshrl.u32 %v1668, 23
          %v1670 = vsub.s32 %v1669, 127
          %v1671 = vand.u32 2147483647, %v1245
          %v1672 = vand.u32 %v1671, 8388607
          %v1673 = vor.u32 %v1672, 8388608
          %v1674 = vsub.s32 0, %v1673
          %v1675 = vadd.s32 %v1670, 1
          %vm1676 = vcmp.gt.s32.totalorder %v1675, 0
          %v1677 = vsel %vm1676, %v1675, 0
          %v1678 = vshrl.u32 %v1677, 5
          %v1679 = vand.u32 %v1677, 31
          %v1680 = vsub.s32 32, %v1679
          %v1681 = vshrl.u32 683565275, %v1680
          %v1682 = vshll.u32 683565275, %v1679
          %v1683 = vshrl.u32 2475754826, %v1680
          %v1684 = vor.u32 %v1682, %v1683
          %v1685 = vshll.u32 2475754826, %v1679
          %v1686 = vshrl.u32 2131351028, %v1680
          %v1687 = vor.u32 %v1685, %v1686
          %v1688 = vshll.u32 2131351028, %v1679
          %v1689 = vshrl.u32 2102212464, %v1680
          %v1690 = vor.u32 %v1688, %v1689
          %v1691 = vshll.u32 2102212464, %v1679
          %v1692 = vshrl.u32 920167782, %v1680
          %v1693 = vor.u32 %v1691, %v1692
          %v1694 = vshll.u32 920167782, %v1679
          %v1695 = vshrl.u32 1326507024, %v1680
          %v1696 = vor.u32 %v1694, %v1695
          %vm1697 = vcmp.lt.s32.totalorder %v1678, 1
          %vm1698 = vcmp.lt.s32.totalorder %v1678, 2
          %vm1699 = vcmp.lt.s32.totalorder %v1678, 3
          %vm1700 = vcmp.lt.s32.totalorder %v1678, 4
          %v1701 = vsel %vm1697, %v1681, %v1684
          %v1702 = vsel %vm1700, %v1690, 2102212464
          %v1703 = vsel %vm1699, %v1687, %v1702
          %v1704 = vsel %vm1698, %v1701, %v1703
          %v1705 = vsel %vm1697, %v1684, %v1687
          %v1706 = vsel %vm1700, %v1693, 920167782
          %v1707 = vsel %vm1699, %v1690, %v1706
          %v1708 = vsel %vm1698, %v1705, %v1707
          %v1709 = vsel %vm1697, %v1687, %v1690
          %v1710 = vsel %vm1700, %v1696, 1326507024
          %v1711 = vsel %vm1699, %v1693, %v1710
          %v1712 = vsel %vm1698, %v1709, %v1711
          %v1713 = vshll.u32 %v1673, 8
          %v1714 = vmul.u32.u64.compose %v1713, %v1712
          %v1715 = vextract.low.u32 %v1714
          %v1716 = vextract.high.u32 %v1714
          %v1717 = vmul.u32.u64.compose %v1713, %v1708
          %v1718 = vextract.low.u32 %v1717
          %v1719 = vextract.high.u32 %v1717
          %v1720 = vmul.u32 %v1713, %v1704
          %v1721 = vadd.s32 %v1716, %v1718
          %vm1722 = vc.u32 %v1716, %v1718
          %v1723 = vadd.s32 %v1719, 1
          %v1724 = vsel %vm1722, %v1723, %v1719
          %v1725 = vadd.s32 %v1720, %v1724
          %v1726 = vadd.s32 %v1725, 536870912
          %v1727 = vshrl.u32 %v1726, 30
          %v1728 = vshll.u32 %v1727, 30
          %v1729 = vsub.s32 %v1725, %v1728
          %vm1730 = vcmp.lt.s32.totalorder %v1729, 0
          %v1731 = vsub.s32 0, %v1729
          %v1732 = vsel %vm1730, %v1731, %v1729
          %v1733 = vclz %v1732
          %v1734 = vsub.s32 %v1733, 2
          %vm1735 = vcmp.gt.s32.totalorder 0, %v1734
          %v1736 = vsel %vm1735, 0, %v1734
          %v1737 = vsub.s32 32, %v1736
          %v1738 = vshll.u32 %v1729, %v1736
          %v1739 = vshrl.u32 %v1721, %v1737
          %v1740 = vor.u32 %v1738, %v1739
          %v1741 = vsub.s32 4294967266, %v1736
          %v1742 = vadd.s32 %v1741, 127
          %v1743 = vshll.u32 %v1742, 23
          %v1744 = vor.u32 4788187, %v1743
          %v1745 = vand.u32 2147483647, %v1744
          %v1747 = vcvt.s32.f32 %v1740
          %v1748 = vmul.f32 %v1747, %v1745
          %v1749 = vxor.u32 %v1748, 2147483648
          %v1750 = vsel %vm1667, %v1749, %v1748
          %v1751 = vsub.s32 4, %v1727
          %v1752 = vsel %vm1667, %v1751, %v1727
          %v1753 = vsel %vm1666, %v1245, %v1750
          %v1754 = vsel %vm1666, 0, %v1752
          %v1755 = vcosq.f32.pop %v1753
          %v1756 = vsinq.f32.pop %v1753
          %vm1757 = vweird.f32 %v1245
          %v1758 = vadd.s32 %v1754, 3
          %v1759 = vand.u32 %v1758, 3
          %vm1760 = vcmp.lt.s32.totalorder %v1759, 2
          %vm1761 = vcmp.eq.s32.totalorder %v1759, 0
          %v1762 = vxor.u32 %v1756, 2147483648
          %v1763 = vsel %vm1761, %v1755, %v1762
          %vm1764 = vcmp.eq.s32.totalorder %v1759, 2
          %v1765 = vxor.u32 %v1755, 2147483648
          %v1766 = vsel %vm1764, %v1765, %v1756
          %v1767 = vsel %vm1760, %v1763, %v1766
          %v1768 = vsel %vm1757, nan, %v1767
          %v1769 = vand.u32 2147483647, %v1246
          %vm1770 = vcmp.le.f32.partialorder %v1769, 0.7853982
          %vm1771 = vcmp.lt.s32.totalorder %v1246, 0
          %v1772 = vand.u32 %v1246, 2139095040
          %v1773 = vshrl.u32 %v1772, 23
          %v1774 = vsub.s32 %v1773, 127
          %v1775 = vand.u32 2147483647, %v1246
          %v1776 = vand.u32 %v1775, 8388607
          %v1777 = vor.u32 %v1776, 8388608
          %v1778 = vsub.s32 0, %v1777
          %v1779 = vadd.s32 %v1774, 1
          %vm1780 = vcmp.gt.s32.totalorder %v1779, 0
          %v1781 = vsel %vm1780, %v1779, 0
          %v1782 = vshrl.u32 %v1781, 5
          %v1783 = vand.u32 %v1781, 31
          %v1784 = vsub.s32 32, %v1783
          %v1785 = vshrl.u32 683565275, %v1784
          %v1786 = vshll.u32 683565275, %v1783
          %v1787 = vshrl.u32 2475754826, %v1784
          %v1788 = vor.u32 %v1786, %v1787
          %v1789 = vshll.u32 2475754826, %v1783
          %v1790 = vshrl.u32 2131351028, %v1784
          %v1791 = vor.u32 %v1789, %v1790
          %v1792 = vshll.u32 2131351028, %v1783
          %v1793 = vshrl.u32 2102212464, %v1784
          %v1794 = vor.u32 %v1792, %v1793
          %v1795 = vshll.u32 2102212464, %v1783
          %v1796 = vshrl.u32 920167782, %v1784
          %v1797 = vor.u32 %v1795, %v1796
          %v1798 = vshll.u32 920167782, %v1783
          %v1799 = vshrl.u32 1326507024, %v1784
          %v1800 = vor.u32 %v1798, %v1799
          %vm1801 = vcmp.lt.s32.totalorder %v1782, 1
          %vm1802 = vcmp.lt.s32.totalorder %v1782, 2
          %vm1803 = vcmp.lt.s32.totalorder %v1782, 3
          %vm1804 = vcmp.lt.s32.totalorder %v1782, 4
          %v1805 = vsel %vm1801, %v1785, %v1788
          %v1806 = vsel %vm1804, %v1794, 2102212464
          %v1807 = vsel %vm1803, %v1791, %v1806
          %v1808 = vsel %vm1802, %v1805, %v1807
          %v1809 = vsel %vm1801, %v1788, %v1791
          %v1810 = vsel %vm1804, %v1797, 920167782
          %v1811 = vsel %vm1803, %v1794, %v1810
          %v1812 = vsel %vm1802, %v1809, %v1811
          %v1813 = vsel %vm1801, %v1791, %v1794
          %v1814 = vsel %vm1804, %v1800, 1326507024
          %v1815 = vsel %vm1803, %v1797, %v1814
          %v1816 = vsel %vm1802, %v1813, %v1815
          %v1817 = vshll.u32 %v1777, 8
          %v1818 = vmul.u32.u64.compose %v1817, %v1816
          %v1819 = vextract.low.u32 %v1818
          %v1820 = vextract.high.u32 %v1818
          %v1821 = vmul.u32.u64.compose %v1817, %v1812
          %v1822 = vextract.low.u32 %v1821
          %v1823 = vextract.high.u32 %v1821
          %v1824 = vmul.u32 %v1817, %v1808
          %v1825 = vadd.s32 %v1820, %v1822
          %vm1826 = vc.u32 %v1820, %v1822
          %v1827 = vadd.s32 %v1823, 1
          %v1828 = vsel %vm1826, %v1827, %v1823
          %v1829 = vadd.s32 %v1824, %v1828
          %v1830 = vadd.s32 %v1829, 536870912
          %v1831 = vshrl.u32 %v1830, 30
          %v1832 = vshll.u32 %v1831, 30
          %v1833 = vsub.s32 %v1829, %v1832
          %vm1834 = vcmp.lt.s32.totalorder %v1833, 0
          %v1835 = vsub.s32 0, %v1833
          %v1836 = vsel %vm1834, %v1835, %v1833
          %v1837 = vclz %v1836
          %v1838 = vsub.s32 %v1837, 2
          %vm1839 = vcmp.gt.s32.totalorder 0, %v1838
          %v1840 = vsel %vm1839, 0, %v1838
          %v1841 = vsub.s32 32, %v1840
          %v1842 = vshll.u32 %v1833, %v1840
          %v1843 = vshrl.u32 %v1825, %v1841
          %v1844 = vor.u32 %v1842, %v1843
          %v1845 = vsub.s32 4294967266, %v1840
          %v1846 = vadd.s32 %v1845, 127
          %v1847 = vshll.u32 %v1846, 23
          %v1848 = vor.u32 4788187, %v1847
          %v1849 = vand.u32 2147483647, %v1848
          %v1851 = vcvt.s32.f32 %v1844
          %v1852 = vmul.f32 %v1851, %v1849
          %v1853 = vxor.u32 %v1852, 2147483648
          %v1854 = vsel %vm1771, %v1853, %v1852
          %v1855 = vsub.s32 4, %v1831
          %v1856 = vsel %vm1771, %v1855, %v1831
          %v1857 = vsel %vm1770, %v1246, %v1854
          %v1858 = vsel %vm1770, 0, %v1856
          %v1859 = vcosq.f32.pop %v1857
          %v1860 = vsinq.f32.pop %v1857
          %vm1861 = vweird.f32 %v1246
          %v1862 = vadd.s32 %v1858, 3
          %v1863 = vand.u32 %v1862, 3
          %vm1864 = vcmp.lt.s32.totalorder %v1863, 2
          %vm1865 = vcmp.eq.s32.totalorder %v1863, 0
          %v1866 = vxor.u32 %v1860, 2147483648
          %v1867 = vsel %vm1865, %v1859, %v1866
          %vm1868 = vcmp.eq.s32.totalorder %v1863, 2
          %v1869 = vxor.u32 %v1859, 2147483648
          %v1870 = vsel %vm1868, %v1869, %v1860
          %v1871 = vsel %vm1864, %v1867, %v1870
          %v1872 = vsel %vm1861, nan, %v1871
          %v1873 = vand.u32 2147483647, %v1247
          %vm1874 = vcmp.le.f32.partialorder %v1873, 0.7853982
          %vm1875 = vcmp.lt.s32.totalorder %v1247, 0
          %v1876 = vand.u32 %v1247, 2139095040
          %v1877 = vshrl.u32 %v1876, 23
          %v1878 = vsub.s32 %v1877, 127
          %v1879 = vand.u32 2147483647, %v1247
          %v1880 = vand.u32 %v1879, 8388607
          %v1881 = vor.u32 %v1880, 8388608
          %v1882 = vsub.s32 0, %v1881
          %v1883 = vadd.s32 %v1878, 1
          %vm1884 = vcmp.gt.s32.totalorder %v1883, 0
          %v1885 = vsel %vm1884, %v1883, 0
          %v1886 = vshrl.u32 %v1885, 5
          %v1887 = vand.u32 %v1885, 31
          %v1888 = vsub.s32 32, %v1887
          %v1889 = vshrl.u32 683565275, %v1888
          %v1890 = vshll.u32 683565275, %v1887
          %v1891 = vshrl.u32 2475754826, %v1888
          %v1892 = vor.u32 %v1890, %v1891
          %v1893 = vshll.u32 2475754826, %v1887
          %v1894 = vshrl.u32 2131351028, %v1888
          %v1895 = vor.u32 %v1893, %v1894
          %v1896 = vshll.u32 2131351028, %v1887
          %v1897 = vshrl.u32 2102212464, %v1888
          %v1898 = vor.u32 %v1896, %v1897
          %v1899 = vshll.u32 2102212464, %v1887
          %v1900 = vshrl.u32 920167782, %v1888
          %v1901 = vor.u32 %v1899, %v1900
          %v1902 = vshll.u32 920167782, %v1887
          %v1903 = vshrl.u32 1326507024, %v1888
          %v1904 = vor.u32 %v1902, %v1903
          %vm1905 = vcmp.lt.s32.totalorder %v1886, 1
          %vm1906 = vcmp.lt.s32.totalorder %v1886, 2
          %vm1907 = vcmp.lt.s32.totalorder %v1886, 3
          %vm1908 = vcmp.lt.s32.totalorder %v1886, 4
          %v1909 = vsel %vm1905, %v1889, %v1892
          %v1910 = vsel %vm1908, %v1898, 2102212464
          %v1911 = vsel %vm1907, %v1895, %v1910
          %v1912 = vsel %vm1906, %v1909, %v1911
          %v1913 = vsel %vm1905, %v1892, %v1895
          %v1914 = vsel %vm1908, %v1901, 920167782
          %v1915 = vsel %vm1907, %v1898, %v1914
          %v1916 = vsel %vm1906, %v1913, %v1915
          %v1917 = vsel %vm1905, %v1895, %v1898
          %v1918 = vsel %vm1908, %v1904, 1326507024
          %v1919 = vsel %vm1907, %v1901, %v1918
          %v1920 = vsel %vm1906, %v1917, %v1919
          %v1921 = vshll.u32 %v1881, 8
          %v1922 = vmul.u32.u64.compose %v1921, %v1920
          %v1923 = vextract.low.u32 %v1922
          %v1924 = vextract.high.u32 %v1922
          %v1925 = vmul.u32.u64.compose %v1921, %v1916
          %v1926 = vextract.low.u32 %v1925
          %v1927 = vextract.high.u32 %v1925
          %v1928 = vmul.u32 %v1921, %v1912
          %v1929 = vadd.s32 %v1924, %v1926
          %vm1930 = vc.u32 %v1924, %v1926
          %v1931 = vadd.s32 %v1927, 1
          %v1932 = vsel %vm1930, %v1931, %v1927
          %v1933 = vadd.s32 %v1928, %v1932
          %v1934 = vadd.s32 %v1933, 536870912
          %v1935 = vshrl.u32 %v1934, 30
          %v1936 = vshll.u32 %v1935, 30
          %v1937 = vsub.s32 %v1933, %v1936
          %vm1938 = vcmp.lt.s32.totalorder %v1937, 0
          %v1939 = vsub.s32 0, %v1937
          %v1940 = vsel %vm1938, %v1939, %v1937
          %v1941 = vclz %v1940
          %v1942 = vsub.s32 %v1941, 2
          %vm1943 = vcmp.gt.s32.totalorder 0, %v1942
          %v1944 = vsel %vm1943, 0, %v1942
          %v1945 = vsub.s32 32, %v1944
          %v1946 = vshll.u32 %v1937, %v1944
          %v1947 = vshrl.u32 %v1929, %v1945
          %v1948 = vor.u32 %v1946, %v1947
          %v1949 = vsub.s32 4294967266, %v1944
          %v1950 = vadd.s32 %v1949, 127
          %v1951 = vshll.u32 %v1950, 23
          %v1952 = vor.u32 4788187, %v1951
          %v1953 = vand.u32 2147483647, %v1952
          %v1955 = vcvt.s32.f32 %v1948
          %v1956 = vmul.f32 %v1955, %v1953
          %v1957 = vxor.u32 %v1956, 2147483648
          %v1958 = vsel %vm1875, %v1957, %v1956
          %v1959 = vsub.s32 4, %v1935
          %v1960 = vsel %vm1875, %v1959, %v1935
          %v1961 = vsel %vm1874, %v1247, %v1958
          %v1962 = vsel %vm1874, 0, %v1960
          %v1963 = vcosq.f32.pop %v1961
          %v1964 = vsinq.f32.pop %v1961
          %vm1965 = vweird.f32 %v1247
          %v1966 = vadd.s32 %v1962, 3
          %v1967 = vand.u32 %v1966, 3
          %vm1968 = vcmp.lt.s32.totalorder %v1967, 2
          %vm1969 = vcmp.eq.s32.totalorder %v1967, 0
          %v1970 = vxor.u32 %v1964, 2147483648
          %v1971 = vsel %vm1969, %v1963, %v1970
          %vm1972 = vcmp.eq.s32.totalorder %v1967, 2
          %v1973 = vxor.u32 %v1963, 2147483648
          %v1974 = vsel %vm1972, %v1973, %v1964
          %v1975 = vsel %vm1968, %v1971, %v1974
          %v1976 = vsel %vm1965, nan, %v1975
          %v1977 = vand.u32 2147483647, %v1248
          %vm1978 = vcmp.le.f32.partialorder %v1977, 0.7853982
          %vm1979 = vcmp.lt.s32.totalorder %v1248, 0
          %v1980 = vand.u32 %v1248, 2139095040
          %v1981 = vshrl.u32 %v1980, 23
          %v1982 = vsub.s32 %v1981, 127
          %v1983 = vand.u32 2147483647, %v1248
          %v1984 = vand.u32 %v1983, 8388607
          %v1985 = vor.u32 %v1984, 8388608
          %v1986 = vsub.s32 0, %v1985
          %v1987 = vadd.s32 %v1982, 1
          %vm1988 = vcmp.gt.s32.totalorder %v1987, 0
          %v1989 = vsel %vm1988, %v1987, 0
          %v1990 = vshrl.u32 %v1989, 5
          %v1991 = vand.u32 %v1989, 31
          %v1992 = vsub.s32 32, %v1991
          %v1993 = vshrl.u32 683565275, %v1992
          %v1994 = vshll.u32 683565275, %v1991
          %v1995 = vshrl.u32 2475754826, %v1992
          %v1996 = vor.u32 %v1994, %v1995
          %v1997 = vshll.u32 2475754826, %v1991
          %v1998 = vshrl.u32 2131351028, %v1992
          %v1999 = vor.u32 %v1997, %v1998
          %v2000 = vshll.u32 2131351028, %v1991
          %v2001 = vshrl.u32 2102212464, %v1992
          %v2002 = vor.u32 %v2000, %v2001
          %v2003 = vshll.u32 2102212464, %v1991
          %v2004 = vshrl.u32 920167782, %v1992
          %v2005 = vor.u32 %v2003, %v2004
          %v2006 = vshll.u32 920167782, %v1991
          %v2007 = vshrl.u32 1326507024, %v1992
          %v2008 = vor.u32 %v2006, %v2007
          %vm2009 = vcmp.lt.s32.totalorder %v1990, 1
          %vm2010 = vcmp.lt.s32.totalorder %v1990, 2
          %vm2011 = vcmp.lt.s32.totalorder %v1990, 3
          %vm2012 = vcmp.lt.s32.totalorder %v1990, 4
          %v2013 = vsel %vm2009, %v1993, %v1996
          %v2014 = vsel %vm2012, %v2002, 2102212464
          %v2015 = vsel %vm2011, %v1999, %v2014
          %v2016 = vsel %vm2010, %v2013, %v2015
          %v2017 = vsel %vm2009, %v1996, %v1999
          %v2018 = vsel %vm2012, %v2005, 920167782
          %v2019 = vsel %vm2011, %v2002, %v2018
          %v2020 = vsel %vm2010, %v2017, %v2019
          %v2021 = vsel %vm2009, %v1999, %v2002
          %v2022 = vsel %vm2012, %v2008, 1326507024
          %v2023 = vsel %vm2011, %v2005, %v2022
          %v2024 = vsel %vm2010, %v2021, %v2023
          %v2025 = vshll.u32 %v1985, 8
          %v2026 = vmul.u32.u64.compose %v2025, %v2024
          %v2027 = vextract.low.u32 %v2026
          %v2028 = vextract.high.u32 %v2026
          %v2029 = vmul.u32.u64.compose %v2025, %v2020
          %v2030 = vextract.low.u32 %v2029
          %v2031 = vextract.high.u32 %v2029
          %v2032 = vmul.u32 %v2025, %v2016
          %v2033 = vadd.s32 %v2028, %v2030
          %vm2034 = vc.u32 %v2028, %v2030
          %v2035 = vadd.s32 %v2031, 1
          %v2036 = vsel %vm2034, %v2035, %v2031
          %v2037 = vadd.s32 %v2032, %v2036
          %v2038 = vadd.s32 %v2037, 536870912
          %v2039 = vshrl.u32 %v2038, 30
          %v2040 = vshll.u32 %v2039, 30
          %v2041 = vsub.s32 %v2037, %v2040
          %vm2042 = vcmp.lt.s32.totalorder %v2041, 0
          %v2043 = vsub.s32 0, %v2041
          %v2044 = vsel %vm2042, %v2043, %v2041
          %v2045 = vclz %v2044
          %v2046 = vsub.s32 %v2045, 2
          %vm2047 = vcmp.gt.s32.totalorder 0, %v2046
          %v2048 = vsel %vm2047, 0, %v2046
          %v2049 = vsub.s32 32, %v2048
          %v2050 = vshll.u32 %v2041, %v2048
          %v2051 = vshrl.u32 %v2033, %v2049
          %v2052 = vor.u32 %v2050, %v2051
          %v2053 = vsub.s32 4294967266, %v2048
          %v2054 = vadd.s32 %v2053, 127
          %v2055 = vshll.u32 %v2054, 23
          %v2056 = vor.u32 4788187, %v2055
          %v2057 = vand.u32 2147483647, %v2056
          %v2059 = vcvt.s32.f32 %v2052
          %v2060 = vmul.f32 %v2059, %v2057
          %v2061 = vxor.u32 %v2060, 2147483648
          %v2062 = vsel %vm1979, %v2061, %v2060
          %v2063 = vsub.s32 4, %v2039
          %v2064 = vsel %vm1979, %v2063, %v2039
          %v2065 = vsel %vm1978, %v1248, %v2062
          %v2066 = vsel %vm1978, 0, %v2064
          %v2067 = vcosq.f32.pop %v2065
          %v2068 = vsinq.f32.pop %v2065
          %vm2069 = vweird.f32 %v1248
          %v2070 = vadd.s32 %v2066, 3
          %v2071 = vand.u32 %v2070, 3
          %vm2072 = vcmp.lt.s32.totalorder %v2071, 2
          %vm2073 = vcmp.eq.s32.totalorder %v2071, 0
          %v2074 = vxor.u32 %v2068, 2147483648
          %v2075 = vsel %vm2073, %v2067, %v2074
          %vm2076 = vcmp.eq.s32.totalorder %v2071, 2
          %v2077 = vxor.u32 %v2067, 2147483648
          %v2078 = vsel %vm2076, %v2077, %v2068
          %v2079 = vsel %vm2072, %v2075, %v2078
          %v2080 = vsel %vm2069, nan, %v2079
          %2081 = vst [vmem:[#allocation2 + $0x40] sm:$0xff] %v1352
          %2082 = vst [vmem:[#allocation2 + $0x48] sm:$0xff] %v1456
          %2083 = vst [vmem:[#allocation2 + $0x50] sm:$0xff] %v1560
          %2084 = vst [vmem:[#allocation2 + $0x58] sm:$0xff] %v1664
          %2085 = vst [vmem:[#allocation2 + $0x60] sm:$0xff] %v1768
          %2086 = vst [vmem:[#allocation2 + $0x68] sm:$0xff] %v1872
          %2087 = vst [vmem:[#allocation2 + $0x70] sm:$0xff] %v1976
          %2088 = vst [vmem:[#allocation2 + $0x78] sm:$0xff] %v2080
        $region40: #{tpu_custom_call.1} parent=35 // pred_fallthru
          _
        %v2089 = vld [vmem:[#allocation2] sm:$0xff]
        %v2090 = vld [vmem:[#allocation2 + $0x8] sm:$0xff]
        %v2091 = vld [vmem:[#allocation2 + $0x10] sm:$0xff]
        %v2092 = vld [vmem:[#allocation2 + $0x18] sm:$0xff]
        %v2093 = vld [vmem:[#allocation2 + $0x20] sm:$0xff]
        %v2094 = vld [vmem:[#allocation2 + $0x28] sm:$0xff]
        %v2095 = vld [vmem:[#allocation2 + $0x30] sm:$0xff]
        %v2096 = vld [vmem:[#allocation2 + $0x38] sm:$0xff]
        %v2097 = vld [vmem:[#allocation2 + $0x40] sm:$0xff]
        %v2098 = vld [vmem:[#allocation2 + $0x48] sm:$0xff]
        %v2099 = vld [vmem:[#allocation2 + $0x50] sm:$0xff]
        %v2100 = vld [vmem:[#allocation2 + $0x58] sm:$0xff]
        %v2101 = vld [vmem:[#allocation2 + $0x60] sm:$0xff]
        %v2102 = vld [vmem:[#allocation2 + $0x68] sm:$0xff]
        %v2103 = vld [vmem:[#allocation2 + $0x70] sm:$0xff]
        %v2104 = vld [vmem:[#allocation2 + $0x78] sm:$0xff]
        %2105 = vst [vmem:[%s232] sm:$0xff] %v2089
        %2106 = vst [vmem:[%s232 + $0x8] sm:$0xff] %v2090
        %2107 = vst [vmem:[%s232 + $0x10] sm:$0xff] %v2091
        %2108 = vst [vmem:[%s232 + $0x18] sm:$0xff] %v2092
        %2109 = vst [vmem:[%s232 + $0x20] sm:$0xff] %v2093
        %2110 = vst [vmem:[%s232 + $0x28] sm:$0xff] %v2094
        %2111 = vst [vmem:[%s232 + $0x30] sm:$0xff] %v2095
        %2112 = vst [vmem:[%s232 + $0x38] sm:$0xff] %v2096
        %2113 = vst [vmem:[%s232 + $0x40] sm:$0xff] %v2097
        %2114 = vst [vmem:[%s232 + $0x48] sm:$0xff] %v2098
        %2115 = vst [vmem:[%s232 + $0x50] sm:$0xff] %v2099
        %2116 = vst [vmem:[%s232 + $0x58] sm:$0xff] %v2100
        %2117 = vst [vmem:[%s232 + $0x60] sm:$0xff] %v2101
        %2118 = vst [vmem:[%s232 + $0x68] sm:$0xff] %v2102
        %2119 = vst [vmem:[%s232 + $0x70] sm:$0xff] %v2103
        %2120 = vst [vmem:[%s232 + $0x78] sm:$0xff] %v2104
        %v2121 = vld [vmem:[%s245] sm:$0x1]
        %v2123 = vlaneseq
        %v2124 = vshrl.u32 %v2123, 7
        %v2125 = vsub.s32 0, %v2124
        %v2126 = vrot.slane %v2121, %v2125
        %2129 = vset.pattern.permute.xlu0 0
        %2130 = vperm.xlu0 %2129, %v246
        %v2131 = vpop.permute.xlu0 %2130
        %2134 = vset.pattern.permute.xlu0 0
        %2135 = vperm.xlu0 %2134, %v247
        %v2136 = vpop.permute.xlu0 %2135
        %2139 = vset.pattern.permute.xlu0 0
        %2140 = vperm.xlu0 %2139, %v248
        %v2141 = vpop.permute.xlu0 %2140
        %2144 = vset.pattern.permute.xlu0 0
        %2145 = vperm.xlu0 %2144, %v249
        %v2146 = vpop.permute.xlu0 %2145
        %2149 = vset.pattern.permute.xlu0 0
        %2150 = vperm.xlu0 %2149, %v250
        %v2151 = vpop.permute.xlu0 %2150
        %2154 = vset.pattern.permute.xlu0 0
        %2155 = vperm.xlu0 %2154, %v251
        %v2156 = vpop.permute.xlu0 %2155
        %2159 = vset.pattern.permute.xlu0 0
        %2160 = vperm.xlu0 %2159, %v252
        %v2161 = vpop.permute.xlu0 %2160
        %2164 = vset.pattern.permute.xlu0 0
        %2165 = vperm.xlu0 %2164, %v253
        %v2166 = vpop.permute.xlu0 %2165
        %2169 = vset.pattern.permute.xlu0 0
        %2170 = vperm.xlu0 %2169, %v254
        %v2171 = vpop.permute.xlu0 %2170
        %2174 = vset.pattern.permute.xlu0 0
        %2175 = vperm.xlu0 %2174, %v255
        %v2176 = vpop.permute.xlu0 %2175
        %2179 = vset.pattern.permute.xlu0 0
        %2180 = vperm.xlu0 %2179, %v256
        %v2181 = vpop.permute.xlu0 %2180
        %2184 = vset.pattern.permute.xlu0 0
        %2185 = vperm.xlu0 %2184, %v257
        %v2186 = vpop.permute.xlu0 %2185
        %2189 = vset.pattern.permute.xlu0 0
        %2190 = vperm.xlu0 %2189, %v258
        %v2191 = vpop.permute.xlu0 %2190
        %2194 = vset.pattern.permute.xlu0 0
        %2195 = vperm.xlu0 %2194, %v259
        %v2196 = vpop.permute.xlu0 %2195
        %2199 = vset.pattern.permute.xlu0 0
        %2200 = vperm.xlu0 %2199, %v260
        %v2201 = vpop.permute.xlu0 %2200
        %2204 = vset.pattern.permute.xlu0 0
        %2205 = vperm.xlu0 %2204, %v261
        %v2206 = vpop.permute.xlu0 %2205
        %v2208 = vmul.f32 %v2126, %v2131
        %v2209 = vmul.f32 %v2126, %v2136
        %v2210 = vmul.f32 %v2126, %v2141
        %v2211 = vmul.f32 %v2126, %v2146
        %v2212 = vmul.f32 %v2126, %v2151
        %v2213 = vmul.f32 %v2126, %v2156
        %v2214 = vmul.f32 %v2126, %v2161
        %v2215 = vmul.f32 %v2126, %v2166
        %v2216 = vmul.f32 %v2126, %v2171
        %v2217 = vmul.f32 %v2126, %v2176
        %v2218 = vmul.f32 %v2126, %v2181
        %v2219 = vmul.f32 %v2126, %v2186
        %v2220 = vmul.f32 %v2126, %v2191
        %v2221 = vmul.f32 %v2126, %v2196
        %v2222 = vmul.f32 %v2126, %v2201
        %v2223 = vmul.f32 %v2126, %v2206
        %2225 = vset.pattern.permute.xlu0 0
        %2226 = vperm.xlu0 %2225, %v263
        %v2227 = vpop.permute.xlu0 %2226
        %2230 = vset.pattern.permute.xlu0 0
        %2231 = vperm.xlu0 %2230, %v264
        %v2232 = vpop.permute.xlu0 %2231
        %2235 = vset.pattern.permute.xlu0 0
        %2236 = vperm.xlu0 %2235, %v265
        %v2237 = vpop.permute.xlu0 %2236
        %2240 = vset.pattern.permute.xlu0 0
        %2241 = vperm.xlu0 %2240, %v266
        %v2242 = vpop.permute.xlu0 %2241
        %2245 = vset.pattern.permute.xlu0 0
        %2246 = vperm.xlu0 %2245, %v267
        %v2247 = vpop.permute.xlu0 %2246
        %2250 = vset.pattern.permute.xlu0 0
        %2251 = vperm.xlu0 %2250, %v268
        %v2252 = vpop.permute.xlu0 %2251
        %2255 = vset.pattern.permute.xlu0 0
        %2256 = vperm.xlu0 %2255, %v269
        %v2257 = vpop.permute.xlu0 %2256
        %2260 = vset.pattern.permute.xlu0 0
        %2261 = vperm.xlu0 %2260, %v270
        %v2262 = vpop.permute.xlu0 %2261
        %2265 = vset.pattern.permute.xlu0 0
        %2266 = vperm.xlu0 %2265, %v271
        %v2267 = vpop.permute.xlu0 %2266
        %2270 = vset.pattern.permute.xlu0 0
        %2271 = vperm.xlu0 %2270, %v272
        %v2272 = vpop.permute.xlu0 %2271
        %2275 = vset.pattern.permute.xlu0 0
        %2276 = vperm.xlu0 %2275, %v273
        %v2277 = vpop.permute.xlu0 %2276
        %2280 = vset.pattern.permute.xlu0 0
        %2281 = vperm.xlu0 %2280, %v274
        %v2282 = vpop.permute.xlu0 %2281
        %2285 = vset.pattern.permute.xlu0 0
        %2286 = vperm.xlu0 %2285, %v275
        %v2287 = vpop.permute.xlu0 %2286
        %2290 = vset.pattern.permute.xlu0 0
        %2291 = vperm.xlu0 %2290, %v276
        %v2292 = vpop.permute.xlu0 %2291
        %2295 = vset.pattern.permute.xlu0 0
        %2296 = vperm.xlu0 %2295, %v277
        %v2297 = vpop.permute.xlu0 %2296
        %2300 = vset.pattern.permute.xlu0 0
        %2301 = vperm.xlu0 %2300, %v278
        %v2302 = vpop.permute.xlu0 %2301
        %v2304 = vadd.f32 %v2208, %v2227
        %v2305 = vadd.f32 %v2209, %v2232
        %v2306 = vadd.f32 %v2210, %v2237
        %v2307 = vadd.f32 %v2211, %v2242
        %v2308 = vadd.f32 %v2212, %v2247
        %v2309 = vadd.f32 %v2213, %v2252
        %v2310 = vadd.f32 %v2214, %v2257
        %v2311 = vadd.f32 %v2215, %v2262
        %v2312 = vadd.f32 %v2216, %v2267
        %v2313 = vadd.f32 %v2217, %v2272
        %v2314 = vadd.f32 %v2218, %v2277
        %v2315 = vadd.f32 %v2219, %v2282
        %v2316 = vadd.f32 %v2220, %v2287
        %v2317 = vadd.f32 %v2221, %v2292
        %v2318 = vadd.f32 %v2222, %v2297
        %v2319 = vadd.f32 %v2223, %v2302
        %v2320 = vand.u32 2147483647, %v2304
        %vm2321 = vcmp.le.f32.partialorder %v2320, 0.7853982
        %vm2322 = vcmp.lt.s32.totalorder %v2304, 0
        %v2323 = vand.u32 %v2304, 2139095040
        %v2324 = vshrl.u32 %v2323, 23
        %v2325 = vsub.s32 %v2324, 127
        %v2326 = vand.u32 2147483647, %v2304
        %v2327 = vand.u32 %v2326, 8388607
        %v2328 = vor.u32 %v2327, 8388608
        %v2329 = vsub.s32 0, %v2328
        %v2330 = vadd.s32 %v2325, 1
        %vm2331 = vcmp.gt.s32.totalorder %v2330, 0
        %v2332 = vsel %vm2331, %v2330, 0
        %v2333 = vshrl.u32 %v2332, 5
        %v2334 = vand.u32 %v2332, 31
        %v2335 = vsub.s32 32, %v2334
        %v2336 = vshrl.u32 683565275, %v2335
        %v2337 = vshll.u32 683565275, %v2334
        %v2338 = vshrl.u32 2475754826, %v2335
        %v2339 = vor.u32 %v2337, %v2338
        %v2340 = vshll.u32 2475754826, %v2334
        %v2341 = vshrl.u32 2131351028, %v2335
        %v2342 = vor.u32 %v2340, %v2341
        %v2343 = vshll.u32 2131351028, %v2334
        %v2344 = vshrl.u32 2102212464, %v2335
        %v2345 = vor.u32 %v2343, %v2344
        %v2346 = vshll.u32 2102212464, %v2334
        %v2347 = vshrl.u32 920167782, %v2335
        %v2348 = vor.u32 %v2346, %v2347
        %v2349 = vshll.u32 920167782, %v2334
        %v2350 = vshrl.u32 1326507024, %v2335
        %v2351 = vor.u32 %v2349, %v2350
        %vm2352 = vcmp.lt.s32.totalorder %v2333, 1
        %vm2353 = vcmp.lt.s32.totalorder %v2333, 2
        %vm2354 = vcmp.lt.s32.totalorder %v2333, 3
        %vm2355 = vcmp.lt.s32.totalorder %v2333, 4
        %v2356 = vsel %vm2352, %v2336, %v2339
        %v2357 = vsel %vm2355, %v2345, 2102212464
        %v2358 = vsel %vm2354, %v2342, %v2357
        %v2359 = vsel %vm2353, %v2356, %v2358
        %v2360 = vsel %vm2352, %v2339, %v2342
        %v2361 = vsel %vm2355, %v2348, 920167782
        %v2362 = vsel %vm2354, %v2345, %v2361
        %v2363 = vsel %vm2353, %v2360, %v2362
        %v2364 = vsel %vm2352, %v2342, %v2345
        %v2365 = vsel %vm2355, %v2351, 1326507024
        %v2366 = vsel %vm2354, %v2348, %v2365
        %v2367 = vsel %vm2353, %v2364, %v2366
        %v2368 = vshll.u32 %v2328, 8
        %v2369 = vmul.u32.u64.compose %v2368, %v2367
        %v2370 = vextract.low.u32 %v2369
        %v2371 = vextract.high.u32 %v2369
        %v2372 = vmul.u32.u64.compose %v2368, %v2363
        %v2373 = vextract.low.u32 %v2372
        %v2374 = vextract.high.u32 %v2372
        %v2375 = vmul.u32 %v2368, %v2359
        %v2376 = vadd.s32 %v2371, %v2373
        %vm2377 = vc.u32 %v2371, %v2373
        %v2378 = vadd.s32 %v2374, 1
        %v2379 = vsel %vm2377, %v2378, %v2374
        %v2380 = vadd.s32 %v2375, %v2379
        %v2381 = vadd.s32 %v2380, 536870912
        %v2382 = vshrl.u32 %v2381, 30
        %v2383 = vshll.u32 %v2382, 30
        %v2384 = vsub.s32 %v2380, %v2383
        %vm2385 = vcmp.lt.s32.totalorder %v2384, 0
        %v2386 = vsub.s32 0, %v2384
        %v2387 = vsel %vm2385, %v2386, %v2384
        %v2388 = vclz %v2387
        %v2389 = vsub.s32 %v2388, 2
        %vm2390 = vcmp.gt.s32.totalorder 0, %v2389
        %v2391 = vsel %vm2390, 0, %v2389
        %v2392 = vsub.s32 32, %v2391
        %v2393 = vshll.u32 %v2384, %v2391
        %v2394 = vshrl.u32 %v2376, %v2392
        %v2395 = vor.u32 %v2393, %v2394
        %v2396 = vsub.s32 4294967266, %v2391
        %v2397 = vadd.s32 %v2396, 127
        %v2398 = vshll.u32 %v2397, 23
        %v2399 = vor.u32 4788187, %v2398
        %v2400 = vand.u32 2147483647, %v2399
        %v2402 = vcvt.s32.f32 %v2395
        %v2403 = vmul.f32 %v2402, %v2400
        %v2404 = vxor.u32 %v2403, 2147483648
        %v2405 = vsel %vm2322, %v2404, %v2403
        %v2406 = vsub.s32 4, %v2382
        %v2407 = vsel %vm2322, %v2406, %v2382
        %v2408 = vsel %vm2321, %v2304, %v2405
        %v2409 = vsel %vm2321, 0, %v2407
        %v2410 = vcosq.f32.pop %v2408
        %v2411 = vsinq.f32.pop %v2408
        %vm2412 = vweird.f32 %v2304
        %v2413 = vadd.s32 %v2409, 3
        %v2414 = vand.u32 %v2413, 3
        %vm2415 = vcmp.lt.s32.totalorder %v2414, 2
        %vm2416 = vcmp.eq.s32.totalorder %v2414, 0
        %v2417 = vxor.u32 %v2411, 2147483648
        %v2418 = vsel %vm2416, %v2410, %v2417
        %vm2419 = vcmp.eq.s32.totalorder %v2414, 2
        %v2420 = vxor.u32 %v2410, 2147483648
        %v2421 = vsel %vm2419, %v2420, %v2411
        %v2422 = vsel %vm2415, %v2418, %v2421
        %v2423 = vsel %vm2412, nan, %v2422
        %v2424 = vand.u32 2147483647, %v2305
        %vm2425 = vcmp.le.f32.partialorder %v2424, 0.7853982
        %vm2426 = vcmp.lt.s32.totalorder %v2305, 0
        %v2427 = vand.u32 %v2305, 2139095040
        %v2428 = vshrl.u32 %v2427, 23
        %v2429 = vsub.s32 %v2428, 127
        %v2430 = vand.u32 2147483647, %v2305
        %v2431 = vand.u32 %v2430, 8388607
        %v2432 = vor.u32 %v2431, 8388608
        %v2433 = vsub.s32 0, %v2432
        %v2434 = vadd.s32 %v2429, 1
        %vm2435 = vcmp.gt.s32.totalorder %v2434, 0
        %v2436 = vsel %vm2435, %v2434, 0
        %v2437 = vshrl.u32 %v2436, 5
        %v2438 = vand.u32 %v2436, 31
        %v2439 = vsub.s32 32, %v2438
        %v2440 = vshrl.u32 683565275, %v2439
        %v2441 = vshll.u32 683565275, %v2438
        %v2442 = vshrl.u32 2475754826, %v2439
        %v2443 = vor.u32 %v2441, %v2442
        %v2444 = vshll.u32 2475754826, %v2438
        %v2445 = vshrl.u32 2131351028, %v2439
        %v2446 = vor.u32 %v2444, %v2445
        %v2447 = vshll.u32 2131351028, %v2438
        %v2448 = vshrl.u32 2102212464, %v2439
        %v2449 = vor.u32 %v2447, %v2448
        %v2450 = vshll.u32 2102212464, %v2438
        %v2451 = vshrl.u32 920167782, %v2439
        %v2452 = vor.u32 %v2450, %v2451
        %v2453 = vshll.u32 920167782, %v2438
        %v2454 = vshrl.u32 1326507024, %v2439
        %v2455 = vor.u32 %v2453, %v2454
        %vm2456 = vcmp.lt.s32.totalorder %v2437, 1
        %vm2457 = vcmp.lt.s32.totalorder %v2437, 2
        %vm2458 = vcmp.lt.s32.totalorder %v2437, 3
        %vm2459 = vcmp.lt.s32.totalorder %v2437, 4
        %v2460 = vsel %vm2456, %v2440, %v2443
        %v2461 = vsel %vm2459, %v2449, 2102212464
        %v2462 = vsel %vm2458, %v2446, %v2461
        %v2463 = vsel %vm2457, %v2460, %v2462
        %v2464 = vsel %vm2456, %v2443, %v2446
        %v2465 = vsel %vm2459, %v2452, 920167782
        %v2466 = vsel %vm2458, %v2449, %v2465
        %v2467 = vsel %vm2457, %v2464, %v2466
        %v2468 = vsel %vm2456, %v2446, %v2449
        %v2469 = vsel %vm2459, %v2455, 1326507024
        %v2470 = vsel %vm2458, %v2452, %v2469
        %v2471 = vsel %vm2457, %v2468, %v2470
        %v2472 = vshll.u32 %v2432, 8
        %v2473 = vmul.u32.u64.compose %v2472, %v2471
        %v2474 = vextract.low.u32 %v2473
        %v2475 = vextract.high.u32 %v2473
        %v2476 = vmul.u32.u64.compose %v2472, %v2467
        %v2477 = vextract.low.u32 %v2476
        %v2478 = vextract.high.u32 %v2476
        %v2479 = vmul.u32 %v2472, %v2463
        %v2480 = vadd.s32 %v2475, %v2477
        %vm2481 = vc.u32 %v2475, %v2477
        %v2482 = vadd.s32 %v2478, 1
        %v2483 = vsel %vm2481, %v2482, %v2478
        %v2484 = vadd.s32 %v2479, %v2483
        %v2485 = vadd.s32 %v2484, 536870912
        %v2486 = vshrl.u32 %v2485, 30
        %v2487 = vshll.u32 %v2486, 30
        %v2488 = vsub.s32 %v2484, %v2487
        %vm2489 = vcmp.lt.s32.totalorder %v2488, 0
        %v2490 = vsub.s32 0, %v2488
        %v2491 = vsel %vm2489, %v2490, %v2488
        %v2492 = vclz %v2491
        %v2493 = vsub.s32 %v2492, 2
        %vm2494 = vcmp.gt.s32.totalorder 0, %v2493
        %v2495 = vsel %vm2494, 0, %v2493
        %v2496 = vsub.s32 32, %v2495
        %v2497 = vshll.u32 %v2488, %v2495
        %v2498 = vshrl.u32 %v2480, %v2496
        %v2499 = vor.u32 %v2497, %v2498
        %v2500 = vsub.s32 4294967266, %v2495
        %v2501 = vadd.s32 %v2500, 127
        %v2502 = vshll.u32 %v2501, 23
        %v2503 = vor.u32 4788187, %v2502
        %v2504 = vand.u32 2147483647, %v2503
        %v2506 = vcvt.s32.f32 %v2499
        %v2507 = vmul.f32 %v2506, %v2504
        %v2508 = vxor.u32 %v2507, 2147483648
        %v2509 = vsel %vm2426, %v2508, %v2507
        %v2510 = vsub.s32 4, %v2486
        %v2511 = vsel %vm2426, %v2510, %v2486
        %v2512 = vsel %vm2425, %v2305, %v2509
        %v2513 = vsel %vm2425, 0, %v2511
        %v2514 = vcosq.f32.pop %v2512
        %v2515 = vsinq.f32.pop %v2512
        %vm2516 = vweird.f32 %v2305
        %v2517 = vadd.s32 %v2513, 3
        %v2518 = vand.u32 %v2517, 3
        %vm2519 = vcmp.lt.s32.totalorder %v2518, 2
        %vm2520 = vcmp.eq.s32.totalorder %v2518, 0
        %v2521 = vxor.u32 %v2515, 2147483648
        %v2522 = vsel %vm2520, %v2514, %v2521
        %vm2523 = vcmp.eq.s32.totalorder %v2518, 2
        %v2524 = vxor.u32 %v2514, 2147483648
        %v2525 = vsel %vm2523, %v2524, %v2515
        %v2526 = vsel %vm2519, %v2522, %v2525
        %v2527 = vsel %vm2516, nan, %v2526
        %v2528 = vand.u32 2147483647, %v2306
        %vm2529 = vcmp.le.f32.partialorder %v2528, 0.7853982
        %vm2530 = vcmp.lt.s32.totalorder %v2306, 0
        %v2531 = vand.u32 %v2306, 2139095040
        %v2532 = vshrl.u32 %v2531, 23
        %v2533 = vsub.s32 %v2532, 127
        %v2534 = vand.u32 2147483647, %v2306
        %v2535 = vand.u32 %v2534, 8388607
        %v2536 = vor.u32 %v2535, 8388608
        %v2537 = vsub.s32 0, %v2536
        %v2538 = vadd.s32 %v2533, 1
        %vm2539 = vcmp.gt.s32.totalorder %v2538, 0
        %v2540 = vsel %vm2539, %v2538, 0
        %v2541 = vshrl.u32 %v2540, 5
        %v2542 = vand.u32 %v2540, 31
        %v2543 = vsub.s32 32, %v2542
        %v2544 = vshrl.u32 683565275, %v2543
        %v2545 = vshll.u32 683565275, %v2542
        %v2546 = vshrl.u32 2475754826, %v2543
        %v2547 = vor.u32 %v2545, %v2546
        %v2548 = vshll.u32 2475754826, %v2542
        %v2549 = vshrl.u32 2131351028, %v2543
        %v2550 = vor.u32 %v2548, %v2549
        %v2551 = vshll.u32 2131351028, %v2542
        %v2552 = vshrl.u32 2102212464, %v2543
        %v2553 = vor.u32 %v2551, %v2552
        %v2554 = vshll.u32 2102212464, %v2542
        %v2555 = vshrl.u32 920167782, %v2543
        %v2556 = vor.u32 %v2554, %v2555
        %v2557 = vshll.u32 920167782, %v2542
        %v2558 = vshrl.u32 1326507024, %v2543
        %v2559 = vor.u32 %v2557, %v2558
        %vm2560 = vcmp.lt.s32.totalorder %v2541, 1
        %vm2561 = vcmp.lt.s32.totalorder %v2541, 2
        %vm2562 = vcmp.lt.s32.totalorder %v2541, 3
        %vm2563 = vcmp.lt.s32.totalorder %v2541, 4
        %v2564 = vsel %vm2560, %v2544, %v2547
        %v2565 = vsel %vm2563, %v2553, 2102212464
        %v2566 = vsel %vm2562, %v2550, %v2565
        %v2567 = vsel %vm2561, %v2564, %v2566
        %v2568 = vsel %vm2560, %v2547, %v2550
        %v2569 = vsel %vm2563, %v2556, 920167782
        %v2570 = vsel %vm2562, %v2553, %v2569
        %v2571 = vsel %vm2561, %v2568, %v2570
        %v2572 = vsel %vm2560, %v2550, %v2553
        %v2573 = vsel %vm2563, %v2559, 1326507024
        %v2574 = vsel %vm2562, %v2556, %v2573
        %v2575 = vsel %vm2561, %v2572, %v2574
        %v2576 = vshll.u32 %v2536, 8
        %v2577 = vmul.u32.u64.compose %v2576, %v2575
        %v2578 = vextract.low.u32 %v2577
        %v2579 = vextract.high.u32 %v2577
        %v2580 = vmul.u32.u64.compose %v2576, %v2571
        %v2581 = vextract.low.u32 %v2580
        %v2582 = vextract.high.u32 %v2580
        %v2583 = vmul.u32 %v2576, %v2567
        %v2584 = vadd.s32 %v2579, %v2581
        %vm2585 = vc.u32 %v2579, %v2581
        %v2586 = vadd.s32 %v2582, 1
        %v2587 = vsel %vm2585, %v2586, %v2582
        %v2588 = vadd.s32 %v2583, %v2587
        %v2589 = vadd.s32 %v2588, 536870912
        %v2590 = vshrl.u32 %v2589, 30
        %v2591 = vshll.u32 %v2590, 30
        %v2592 = vsub.s32 %v2588, %v2591
        %vm2593 = vcmp.lt.s32.totalorder %v2592, 0
        %v2594 = vsub.s32 0, %v2592
        %v2595 = vsel %vm2593, %v2594, %v2592
        %v2596 = vclz %v2595
        %v2597 = vsub.s32 %v2596, 2
        %vm2598 = vcmp.gt.s32.totalorder 0, %v2597
        %v2599 = vsel %vm2598, 0, %v2597
        %v2600 = vsub.s32 32, %v2599
        %v2601 = vshll.u32 %v2592, %v2599
        %v2602 = vshrl.u32 %v2584, %v2600
        %v2603 = vor.u32 %v2601, %v2602
        %v2604 = vsub.s32 4294967266, %v2599
        %v2605 = vadd.s32 %v2604, 127
        %v2606 = vshll.u32 %v2605, 23
        %v2607 = vor.u32 4788187, %v2606
        %v2608 = vand.u32 2147483647, %v2607
        %v2610 = vcvt.s32.f32 %v2603
        %v2611 = vmul.f32 %v2610, %v2608
        %v2612 = vxor.u32 %v2611, 2147483648
        %v2613 = vsel %vm2530, %v2612, %v2611
        %v2614 = vsub.s32 4, %v2590
        %v2615 = vsel %vm2530, %v2614, %v2590
        %v2616 = vsel %vm2529, %v2306, %v2613
        %v2617 = vsel %vm2529, 0, %v2615
        %v2618 = vcosq.f32.pop %v2616
        %v2619 = vsinq.f32.pop %v2616
        %vm2620 = vweird.f32 %v2306
        %v2621 = vadd.s32 %v2617, 3
        %v2622 = vand.u32 %v2621, 3
        %vm2623 = vcmp.lt.s32.totalorder %v2622, 2
        %vm2624 = vcmp.eq.s32.totalorder %v2622, 0
        %v2625 = vxor.u32 %v2619, 2147483648
        %v2626 = vsel %vm2624, %v2618, %v2625
        %vm2627 = vcmp.eq.s32.totalorder %v2622, 2
        %v2628 = vxor.u32 %v2618, 2147483648
        %v2629 = vsel %vm2627, %v2628, %v2619
        %v2630 = vsel %vm2623, %v2626, %v2629
        %v2631 = vsel %vm2620, nan, %v2630
        %v2632 = vand.u32 2147483647, %v2307
        %vm2633 = vcmp.le.f32.partialorder %v2632, 0.7853982
        %vm2634 = vcmp.lt.s32.totalorder %v2307, 0
        %v2635 = vand.u32 %v2307, 2139095040
        %v2636 = vshrl.u32 %v2635, 23
        %v2637 = vsub.s32 %v2636, 127
        %v2638 = vand.u32 2147483647, %v2307
        %v2639 = vand.u32 %v2638, 8388607
        %v2640 = vor.u32 %v2639, 8388608
        %v2641 = vsub.s32 0, %v2640
        %v2642 = vadd.s32 %v2637, 1
        %vm2643 = vcmp.gt.s32.totalorder %v2642, 0
        %v2644 = vsel %vm2643, %v2642, 0
        %v2645 = vshrl.u32 %v2644, 5
        %v2646 = vand.u32 %v2644, 31
        %v2647 = vsub.s32 32, %v2646
        %v2648 = vshrl.u32 683565275, %v2647
        %v2649 = vshll.u32 683565275, %v2646
        %v2650 = vshrl.u32 2475754826, %v2647
        %v2651 = vor.u32 %v2649, %v2650
        %v2652 = vshll.u32 2475754826, %v2646
        %v2653 = vshrl.u32 2131351028, %v2647
        %v2654 = vor.u32 %v2652, %v2653
        %v2655 = vshll.u32 2131351028, %v2646
        %v2656 = vshrl.u32 2102212464, %v2647
        %v2657 = vor.u32 %v2655, %v2656
        %v2658 = vshll.u32 2102212464, %v2646
        %v2659 = vshrl.u32 920167782, %v2647
        %v2660 = vor.u32 %v2658, %v2659
        %v2661 = vshll.u32 920167782, %v2646
        %v2662 = vshrl.u32 1326507024, %v2647
        %v2663 = vor.u32 %v2661, %v2662
        %vm2664 = vcmp.lt.s32.totalorder %v2645, 1
        %vm2665 = vcmp.lt.s32.totalorder %v2645, 2
        %vm2666 = vcmp.lt.s32.totalorder %v2645, 3
        %vm2667 = vcmp.lt.s32.totalorder %v2645, 4
        %v2668 = vsel %vm2664, %v2648, %v2651
        %v2669 = vsel %vm2667, %v2657, 2102212464
        %v2670 = vsel %vm2666, %v2654, %v2669
        %v2671 = vsel %vm2665, %v2668, %v2670
        %v2672 = vsel %vm2664, %v2651, %v2654
        %v2673 = vsel %vm2667, %v2660, 920167782
        %v2674 = vsel %vm2666, %v2657, %v2673
        %v2675 = vsel %vm2665, %v2672, %v2674
        %v2676 = vsel %vm2664, %v2654, %v2657
        %v2677 = vsel %vm2667, %v2663, 1326507024
        %v2678 = vsel %vm2666, %v2660, %v2677
        %v2679 = vsel %vm2665, %v2676, %v2678
        %v2680 = vshll.u32 %v2640, 8
        %v2681 = vmul.u32.u64.compose %v2680, %v2679
        %v2682 = vextract.low.u32 %v2681
        %v2683 = vextract.high.u32 %v2681
        %v2684 = vmul.u32.u64.compose %v2680, %v2675
        %v2685 = vextract.low.u32 %v2684
        %v2686 = vextract.high.u32 %v2684
        %v2687 = vmul.u32 %v2680, %v2671
        %v2688 = vadd.s32 %v2683, %v2685
        %vm2689 = vc.u32 %v2683, %v2685
        %v2690 = vadd.s32 %v2686, 1
        %v2691 = vsel %vm2689, %v2690, %v2686
        %v2692 = vadd.s32 %v2687, %v2691
        %v2693 = vadd.s32 %v2692, 536870912
        %v2694 = vshrl.u32 %v2693, 30
        %v2695 = vshll.u32 %v2694, 30
        %v2696 = vsub.s32 %v2692, %v2695
        %vm2697 = vcmp.lt.s32.totalorder %v2696, 0
        %v2698 = vsub.s32 0, %v2696
        %v2699 = vsel %vm2697, %v2698, %v2696
        %v2700 = vclz %v2699
        %v2701 = vsub.s32 %v2700, 2
        %vm2702 = vcmp.gt.s32.totalorder 0, %v2701
        %v2703 = vsel %vm2702, 0, %v2701
        %v2704 = vsub.s32 32, %v2703
        %v2705 = vshll.u32 %v2696, %v2703
        %v2706 = vshrl.u32 %v2688, %v2704
        %v2707 = vor.u32 %v2705, %v2706
        %v2708 = vsub.s32 4294967266, %v2703
        %v2709 = vadd.s32 %v2708, 127
        %v2710 = vshll.u32 %v2709, 23
        %v2711 = vor.u32 4788187, %v2710
        %v2712 = vand.u32 2147483647, %v2711
        %v2714 = vcvt.s32.f32 %v2707
        %v2715 = vmul.f32 %v2714, %v2712
        %v2716 = vxor.u32 %v2715, 2147483648
        %v2717 = vsel %vm2634, %v2716, %v2715
        %v2718 = vsub.s32 4, %v2694
        %v2719 = vsel %vm2634, %v2718, %v2694
        %v2720 = vsel %vm2633, %v2307, %v2717
        %v2721 = vsel %vm2633, 0, %v2719
        %v2722 = vcosq.f32.pop %v2720
        %v2723 = vsinq.f32.pop %v2720
        %vm2724 = vweird.f32 %v2307
        %v2725 = vadd.s32 %v2721, 3
        %v2726 = vand.u32 %v2725, 3
        %vm2727 = vcmp.lt.s32.totalorder %v2726, 2
        %vm2728 = vcmp.eq.s32.totalorder %v2726, 0
        %v2729 = vxor.u32 %v2723, 2147483648
        %v2730 = vsel %vm2728, %v2722, %v2729
        %vm2731 = vcmp.eq.s32.totalorder %v2726, 2
        %v2732 = vxor.u32 %v2722, 2147483648
        %v2733 = vsel %vm2731, %v2732, %v2723
        %v2734 = vsel %vm2727, %v2730, %v2733
        %v2735 = vsel %vm2724, nan, %v2734
        %v2736 = vand.u32 2147483647, %v2308
        %vm2737 = vcmp.le.f32.partialorder %v2736, 0.7853982
        %vm2738 = vcmp.lt.s32.totalorder %v2308, 0
        %v2739 = vand.u32 %v2308, 2139095040
        %v2740 = vshrl.u32 %v2739, 23
        %v2741 = vsub.s32 %v2740, 127
        %v2742 = vand.u32 2147483647, %v2308
        %v2743 = vand.u32 %v2742, 8388607
        %v2744 = vor.u32 %v2743, 8388608
        %v2745 = vsub.s32 0, %v2744
        %v2746 = vadd.s32 %v2741, 1
        %vm2747 = vcmp.gt.s32.totalorder %v2746, 0
        %v2748 = vsel %vm2747, %v2746, 0
        %v2749 = vshrl.u32 %v2748, 5
        %v2750 = vand.u32 %v2748, 31
        %v2751 = vsub.s32 32, %v2750
        %v2752 = vshrl.u32 683565275, %v2751
        %v2753 = vshll.u32 683565275, %v2750
        %v2754 = vshrl.u32 2475754826, %v2751
        %v2755 = vor.u32 %v2753, %v2754
        %v2756 = vshll.u32 2475754826, %v2750
        %v2757 = vshrl.u32 2131351028, %v2751
        %v2758 = vor.u32 %v2756, %v2757
        %v2759 = vshll.u32 2131351028, %v2750
        %v2760 = vshrl.u32 2102212464, %v2751
        %v2761 = vor.u32 %v2759, %v2760
        %v2762 = vshll.u32 2102212464, %v2750
        %v2763 = vshrl.u32 920167782, %v2751
        %v2764 = vor.u32 %v2762, %v2763
        %v2765 = vshll.u32 920167782, %v2750
        %v2766 = vshrl.u32 1326507024, %v2751
        %v2767 = vor.u32 %v2765, %v2766
        %vm2768 = vcmp.lt.s32.totalorder %v2749, 1
        %vm2769 = vcmp.lt.s32.totalorder %v2749, 2
        %vm2770 = vcmp.lt.s32.totalorder %v2749, 3
        %vm2771 = vcmp.lt.s32.totalorder %v2749, 4
        %v2772 = vsel %vm2768, %v2752, %v2755
        %v2773 = vsel %vm2771, %v2761, 2102212464
        %v2774 = vsel %vm2770, %v2758, %v2773
        %v2775 = vsel %vm2769, %v2772, %v2774
        %v2776 = vsel %vm2768, %v2755, %v2758
        %v2777 = vsel %vm2771, %v2764, 920167782
        %v2778 = vsel %vm2770, %v2761, %v2777
        %v2779 = vsel %vm2769, %v2776, %v2778
        %v2780 = vsel %vm2768, %v2758, %v2761
        %v2781 = vsel %vm2771, %v2767, 1326507024
        %v2782 = vsel %vm2770, %v2764, %v2781
        %v2783 = vsel %vm2769, %v2780, %v2782
        %v2784 = vshll.u32 %v2744, 8
        %v2785 = vmul.u32.u64.compose %v2784, %v2783
        %v2786 = vextract.low.u32 %v2785
        %v2787 = vextract.high.u32 %v2785
        %v2788 = vmul.u32.u64.compose %v2784, %v2779
        %v2789 = vextract.low.u32 %v2788
        %v2790 = vextract.high.u32 %v2788
        %v2791 = vmul.u32 %v2784, %v2775
        %v2792 = vadd.s32 %v2787, %v2789
        %vm2793 = vc.u32 %v2787, %v2789
        %v2794 = vadd.s32 %v2790, 1
        %v2795 = vsel %vm2793, %v2794, %v2790
        %v2796 = vadd.s32 %v2791, %v2795
        %v2797 = vadd.s32 %v2796, 536870912
        %v2798 = vshrl.u32 %v2797, 30
        %v2799 = vshll.u32 %v2798, 30
        %v2800 = vsub.s32 %v2796, %v2799
        %vm2801 = vcmp.lt.s32.totalorder %v2800, 0
        %v2802 = vsub.s32 0, %v2800
        %v2803 = vsel %vm2801, %v2802, %v2800
        %v2804 = vclz %v2803
        %v2805 = vsub.s32 %v2804, 2
        %vm2806 = vcmp.gt.s32.totalorder 0, %v2805
        %v2807 = vsel %vm2806, 0, %v2805
        %v2808 = vsub.s32 32, %v2807
        %v2809 = vshll.u32 %v2800, %v2807
        %v2810 = vshrl.u32 %v2792, %v2808
        %v2811 = vor.u32 %v2809, %v2810
        %v2812 = vsub.s32 4294967266, %v2807
        %v2813 = vadd.s32 %v2812, 127
        %v2814 = vshll.u32 %v2813, 23
        %v2815 = vor.u32 4788187, %v2814
        %v2816 = vand.u32 2147483647, %v2815
        %v2818 = vcvt.s32.f32 %v2811
        %v2819 = vmul.f32 %v2818, %v2816
        %v2820 = vxor.u32 %v2819, 2147483648
        %v2821 = vsel %vm2738, %v2820, %v2819
        %v2822 = vsub.s32 4, %v2798
        %v2823 = vsel %vm2738, %v2822, %v2798
        %v2824 = vsel %vm2737, %v2308, %v2821
        %v2825 = vsel %vm2737, 0, %v2823
        %v2826 = vcosq.f32.pop %v2824
        %v2827 = vsinq.f32.pop %v2824
        %vm2828 = vweird.f32 %v2308
        %v2829 = vadd.s32 %v2825, 3
        %v2830 = vand.u32 %v2829, 3
        %vm2831 = vcmp.lt.s32.totalorder %v2830, 2
        %vm2832 = vcmp.eq.s32.totalorder %v2830, 0
        %v2833 = vxor.u32 %v2827, 2147483648
        %v2834 = vsel %vm2832, %v2826, %v2833
        %vm2835 = vcmp.eq.s32.totalorder %v2830, 2
        %v2836 = vxor.u32 %v2826, 2147483648
        %v2837 = vsel %vm2835, %v2836, %v2827
        %v2838 = vsel %vm2831, %v2834, %v2837
        %v2839 = vsel %vm2828, nan, %v2838
        %v2840 = vand.u32 2147483647, %v2309
        %vm2841 = vcmp.le.f32.partialorder %v2840, 0.7853982
        %vm2842 = vcmp.lt.s32.totalorder %v2309, 0
        %v2843 = vand.u32 %v2309, 2139095040
        %v2844 = vshrl.u32 %v2843, 23
        %v2845 = vsub.s32 %v2844, 127
        %v2846 = vand.u32 2147483647, %v2309
        %v2847 = vand.u32 %v2846, 8388607
        %v2848 = vor.u32 %v2847, 8388608
        %v2849 = vsub.s32 0, %v2848
        %v2850 = vadd.s32 %v2845, 1
        %vm2851 = vcmp.gt.s32.totalorder %v2850, 0
        %v2852 = vsel %vm2851, %v2850, 0
        %v2853 = vshrl.u32 %v2852, 5
        %v2854 = vand.u32 %v2852, 31
        %v2855 = vsub.s32 32, %v2854
        %v2856 = vshrl.u32 683565275, %v2855
        %v2857 = vshll.u32 683565275, %v2854
        %v2858 = vshrl.u32 2475754826, %v2855
        %v2859 = vor.u32 %v2857, %v2858
        %v2860 = vshll.u32 2475754826, %v2854
        %v2861 = vshrl.u32 2131351028, %v2855
        %v2862 = vor.u32 %v2860, %v2861
        %v2863 = vshll.u32 2131351028, %v2854
        %v2864 = vshrl.u32 2102212464, %v2855
        %v2865 = vor.u32 %v2863, %v2864
        %v2866 = vshll.u32 2102212464, %v2854
        %v2867 = vshrl.u32 920167782, %v2855
        %v2868 = vor.u32 %v2866, %v2867
        %v2869 = vshll.u32 920167782, %v2854
        %v2870 = vshrl.u32 1326507024, %v2855
        %v2871 = vor.u32 %v2869, %v2870
        %vm2872 = vcmp.lt.s32.totalorder %v2853, 1
        %vm2873 = vcmp.lt.s32.totalorder %v2853, 2
        %vm2874 = vcmp.lt.s32.totalorder %v2853, 3
        %vm2875 = vcmp.lt.s32.totalorder %v2853, 4
        %v2876 = vsel %vm2872, %v2856, %v2859
        %v2877 = vsel %vm2875, %v2865, 2102212464
        %v2878 = vsel %vm2874, %v2862, %v2877
        %v2879 = vsel %vm2873, %v2876, %v2878
        %v2880 = vsel %vm2872, %v2859, %v2862
        %v2881 = vsel %vm2875, %v2868, 920167782
        %v2882 = vsel %vm2874, %v2865, %v2881
        %v2883 = vsel %vm2873, %v2880, %v2882
        %v2884 = vsel %vm2872, %v2862, %v2865
        %v2885 = vsel %vm2875, %v2871, 1326507024
        %v2886 = vsel %vm2874, %v2868, %v2885
        %v2887 = vsel %vm2873, %v2884, %v2886
        %v2888 = vshll.u32 %v2848, 8
        %v2889 = vmul.u32.u64.compose %v2888, %v2887
        %v2890 = vextract.low.u32 %v2889
        %v2891 = vextract.high.u32 %v2889
        %v2892 = vmul.u32.u64.compose %v2888, %v2883
        %v2893 = vextract.low.u32 %v2892
        %v2894 = vextract.high.u32 %v2892
        %v2895 = vmul.u32 %v2888, %v2879
        %v2896 = vadd.s32 %v2891, %v2893
        %vm2897 = vc.u32 %v2891, %v2893
        %v2898 = vadd.s32 %v2894, 1
        %v2899 = vsel %vm2897, %v2898, %v2894
        %v2900 = vadd.s32 %v2895, %v2899
        %v2901 = vadd.s32 %v2900, 536870912
        %v2902 = vshrl.u32 %v2901, 30
        %v2903 = vshll.u32 %v2902, 30
        %v2904 = vsub.s32 %v2900, %v2903
        %vm2905 = vcmp.lt.s32.totalorder %v2904, 0
        %v2906 = vsub.s32 0, %v2904
        %v2907 = vsel %vm2905, %v2906, %v2904
        %v2908 = vclz %v2907
        %v2909 = vsub.s32 %v2908, 2
        %vm2910 = vcmp.gt.s32.totalorder 0, %v2909
        %v2911 = vsel %vm2910, 0, %v2909
        %v2912 = vsub.s32 32, %v2911
        %v2913 = vshll.u32 %v2904, %v2911
        %v2914 = vshrl.u32 %v2896, %v2912
        %v2915 = vor.u32 %v2913, %v2914
        %v2916 = vsub.s32 4294967266, %v2911
        %v2917 = vadd.s32 %v2916, 127
        %v2918 = vshll.u32 %v2917, 23
        %v2919 = vor.u32 4788187, %v2918
        %v2920 = vand.u32 2147483647, %v2919
        %v2922 = vcvt.s32.f32 %v2915
        %v2923 = vmul.f32 %v2922, %v2920
        %v2924 = vxor.u32 %v2923, 2147483648
        %v2925 = vsel %vm2842, %v2924, %v2923
        %v2926 = vsub.s32 4, %v2902
        %v2927 = vsel %vm2842, %v2926, %v2902
        %v2928 = vsel %vm2841, %v2309, %v2925
        %v2929 = vsel %vm2841, 0, %v2927
        %v2930 = vcosq.f32.pop %v2928
        %v2931 = vsinq.f32.pop %v2928
        %vm2932 = vweird.f32 %v2309
        %v2933 = vadd.s32 %v2929, 3
        %v2934 = vand.u32 %v2933, 3
        %vm2935 = vcmp.lt.s32.totalorder %v2934, 2
        %vm2936 = vcmp.eq.s32.totalorder %v2934, 0
        %v2937 = vxor.u32 %v2931, 2147483648
        %v2938 = vsel %vm2936, %v2930, %v2937
        %vm2939 = vcmp.eq.s32.totalorder %v2934, 2
        %v2940 = vxor.u32 %v2930, 2147483648
        %v2941 = vsel %vm2939, %v2940, %v2931
        %v2942 = vsel %vm2935, %v2938, %v2941
        %v2943 = vsel %vm2932, nan, %v2942
        %v2944 = vand.u32 2147483647, %v2310
        %vm2945 = vcmp.le.f32.partialorder %v2944, 0.7853982
        %vm2946 = vcmp.lt.s32.totalorder %v2310, 0
        %v2947 = vand.u32 %v2310, 2139095040
        %v2948 = vshrl.u32 %v2947, 23
        %v2949 = vsub.s32 %v2948, 127
        %v2950 = vand.u32 2147483647, %v2310
        %v2951 = vand.u32 %v2950, 8388607
        %v2952 = vor.u32 %v2951, 8388608
        %v2953 = vsub.s32 0, %v2952
        %v2954 = vadd.s32 %v2949, 1
        %vm2955 = vcmp.gt.s32.totalorder %v2954, 0
        %v2956 = vsel %vm2955, %v2954, 0
        %v2957 = vshrl.u32 %v2956, 5
        %v2958 = vand.u32 %v2956, 31
        %v2959 = vsub.s32 32, %v2958
        %v2960 = vshrl.u32 683565275, %v2959
        %v2961 = vshll.u32 683565275, %v2958
        %v2962 = vshrl.u32 2475754826, %v2959
        %v2963 = vor.u32 %v2961, %v2962
        %v2964 = vshll.u32 2475754826, %v2958
        %v2965 = vshrl.u32 2131351028, %v2959
        %v2966 = vor.u32 %v2964, %v2965
        %v2967 = vshll.u32 2131351028, %v2958
        %v2968 = vshrl.u32 2102212464, %v2959
        %v2969 = vor.u32 %v2967, %v2968
        %v2970 = vshll.u32 2102212464, %v2958
        %v2971 = vshrl.u32 920167782, %v2959
        %v2972 = vor.u32 %v2970, %v2971
        %v2973 = vshll.u32 920167782, %v2958
        %v2974 = vshrl.u32 1326507024, %v2959
        %v2975 = vor.u32 %v2973, %v2974
        %vm2976 = vcmp.lt.s32.totalorder %v2957, 1
        %vm2977 = vcmp.lt.s32.totalorder %v2957, 2
        %vm2978 = vcmp.lt.s32.totalorder %v2957, 3
        %vm2979 = vcmp.lt.s32.totalorder %v2957, 4
        %v2980 = vsel %vm2976, %v2960, %v2963
        %v2981 = vsel %vm2979, %v2969, 2102212464
        %v2982 = vsel %vm2978, %v2966, %v2981
        %v2983 = vsel %vm2977, %v2980, %v2982
        %v2984 = vsel %vm2976, %v2963, %v2966
        %v2985 = vsel %vm2979, %v2972, 920167782
        %v2986 = vsel %vm2978, %v2969, %v2985
        %v2987 = vsel %vm2977, %v2984, %v2986
        %v2988 = vsel %vm2976, %v2966, %v2969
        %v2989 = vsel %vm2979, %v2975, 1326507024
        %v2990 = vsel %vm2978, %v2972, %v2989
        %v2991 = vsel %vm2977, %v2988, %v2990
        %v2992 = vshll.u32 %v2952, 8
        %v2993 = vmul.u32.u64.compose %v2992, %v2991
        %v2994 = vextract.low.u32 %v2993
        %v2995 = vextract.high.u32 %v2993
        %v2996 = vmul.u32.u64.compose %v2992, %v2987
        %v2997 = vextract.low.u32 %v2996
        %v2998 = vextract.high.u32 %v2996
        %v2999 = vmul.u32 %v2992, %v2983
        %v3000 = vadd.s32 %v2995, %v2997
        %vm3001 = vc.u32 %v2995, %v2997
        %v3002 = vadd.s32 %v2998, 1
        %v3003 = vsel %vm3001, %v3002, %v2998
        %v3004 = vadd.s32 %v2999, %v3003
        %v3005 = vadd.s32 %v3004, 536870912
        %v3006 = vshrl.u32 %v3005, 30
        %v3007 = vshll.u32 %v3006, 30
        %v3008 = vsub.s32 %v3004, %v3007
        %vm3009 = vcmp.lt.s32.totalorder %v3008, 0
        %v3010 = vsub.s32 0, %v3008
        %v3011 = vsel %vm3009, %v3010, %v3008
        %v3012 = vclz %v3011
        %v3013 = vsub.s32 %v3012, 2
        %vm3014 = vcmp.gt.s32.totalorder 0, %v3013
        %v3015 = vsel %vm3014, 0, %v3013
        %v3016 = vsub.s32 32, %v3015
        %v3017 = vshll.u32 %v3008, %v3015
        %v3018 = vshrl.u32 %v3000, %v3016
        %v3019 = vor.u32 %v3017, %v3018
        %v3020 = vsub.s32 4294967266, %v3015
        %v3021 = vadd.s32 %v3020, 127
        %v3022 = vshll.u32 %v3021, 23
        %v3023 = vor.u32 4788187, %v3022
        %v3024 = vand.u32 2147483647, %v3023
        %v3026 = vcvt.s32.f32 %v3019
        %v3027 = vmul.f32 %v3026, %v3024
        %v3028 = vxor.u32 %v3027, 2147483648
        %v3029 = vsel %vm2946, %v3028, %v3027
        %v3030 = vsub.s32 4, %v3006
        %v3031 = vsel %vm2946, %v3030, %v3006
        %v3032 = vsel %vm2945, %v2310, %v3029
        %v3033 = vsel %vm2945, 0, %v3031
        %v3034 = vcosq.f32.pop %v3032
        %v3035 = vsinq.f32.pop %v3032
        %vm3036 = vweird.f32 %v2310
        %v3037 = vadd.s32 %v3033, 3
        %v3038 = vand.u32 %v3037, 3
        %vm3039 = vcmp.lt.s32.totalorder %v3038, 2
        %vm3040 = vcmp.eq.s32.totalorder %v3038, 0
        %v3041 = vxor.u32 %v3035, 2147483648
        %v3042 = vsel %vm3040, %v3034, %v3041
        %vm3043 = vcmp.eq.s32.totalorder %v3038, 2
        %v3044 = vxor.u32 %v3034, 2147483648
        %v3045 = vsel %vm3043, %v3044, %v3035
        %v3046 = vsel %vm3039, %v3042, %v3045
        %v3047 = vsel %vm3036, nan, %v3046
        %v3048 = vand.u32 2147483647, %v2311
        %vm3049 = vcmp.le.f32.partialorder %v3048, 0.7853982
        %vm3050 = vcmp.lt.s32.totalorder %v2311, 0
        %v3051 = vand.u32 %v2311, 2139095040
        %v3052 = vshrl.u32 %v3051, 23
        %v3053 = vsub.s32 %v3052, 127
        %v3054 = vand.u32 2147483647, %v2311
        %v3055 = vand.u32 %v3054, 8388607
        %v3056 = vor.u32 %v3055, 8388608
        %v3057 = vsub.s32 0, %v3056
        %v3058 = vadd.s32 %v3053, 1
        %vm3059 = vcmp.gt.s32.totalorder %v3058, 0
        %v3060 = vsel %vm3059, %v3058, 0
        %v3061 = vshrl.u32 %v3060, 5
        %v3062 = vand.u32 %v3060, 31
        %v3063 = vsub.s32 32, %v3062
        %v3064 = vshrl.u32 683565275, %v3063
        %v3065 = vshll.u32 683565275, %v3062
        %v3066 = vshrl.u32 2475754826, %v3063
        %v3067 = vor.u32 %v3065, %v3066
        %v3068 = vshll.u32 2475754826, %v3062
        %v3069 = vshrl.u32 2131351028, %v3063
        %v3070 = vor.u32 %v3068, %v3069
        %v3071 = vshll.u32 2131351028, %v3062
        %v3072 = vshrl.u32 2102212464, %v3063
        %v3073 = vor.u32 %v3071, %v3072
        %v3074 = vshll.u32 2102212464, %v3062
        %v3075 = vshrl.u32 920167782, %v3063
        %v3076 = vor.u32 %v3074, %v3075
        %v3077 = vshll.u32 920167782, %v3062
        %v3078 = vshrl.u32 1326507024, %v3063
        %v3079 = vor.u32 %v3077, %v3078
        %vm3080 = vcmp.lt.s32.totalorder %v3061, 1
        %vm3081 = vcmp.lt.s32.totalorder %v3061, 2
        %vm3082 = vcmp.lt.s32.totalorder %v3061, 3
        %vm3083 = vcmp.lt.s32.totalorder %v3061, 4
        %v3084 = vsel %vm3080, %v3064, %v3067
        %v3085 = vsel %vm3083, %v3073, 2102212464
        %v3086 = vsel %vm3082, %v3070, %v3085
        %v3087 = vsel %vm3081, %v3084, %v3086
        %v3088 = vsel %vm3080, %v3067, %v3070
        %v3089 = vsel %vm3083, %v3076, 920167782
        %v3090 = vsel %vm3082, %v3073, %v3089
        %v3091 = vsel %vm3081, %v3088, %v3090
        %v3092 = vsel %vm3080, %v3070, %v3073
        %v3093 = vsel %vm3083, %v3079, 1326507024
        %v3094 = vsel %vm3082, %v3076, %v3093
        %v3095 = vsel %vm3081, %v3092, %v3094
        %v3096 = vshll.u32 %v3056, 8
        %v3097 = vmul.u32.u64.compose %v3096, %v3095
        %v3098 = vextract.low.u32 %v3097
        %v3099 = vextract.high.u32 %v3097
        %v3100 = vmul.u32.u64.compose %v3096, %v3091
        %v3101 = vextract.low.u32 %v3100
        %v3102 = vextract.high.u32 %v3100
        %v3103 = vmul.u32 %v3096, %v3087
        %v3104 = vadd.s32 %v3099, %v3101
        %vm3105 = vc.u32 %v3099, %v3101
        %v3106 = vadd.s32 %v3102, 1
        %v3107 = vsel %vm3105, %v3106, %v3102
        %v3108 = vadd.s32 %v3103, %v3107
        %v3109 = vadd.s32 %v3108, 536870912
        %v3110 = vshrl.u32 %v3109, 30
        %v3111 = vshll.u32 %v3110, 30
        %v3112 = vsub.s32 %v3108, %v3111
        %vm3113 = vcmp.lt.s32.totalorder %v3112, 0
        %v3114 = vsub.s32 0, %v3112
        %v3115 = vsel %vm3113, %v3114, %v3112
        %v3116 = vclz %v3115
        %v3117 = vsub.s32 %v3116, 2
        %vm3118 = vcmp.gt.s32.totalorder 0, %v3117
        %v3119 = vsel %vm3118, 0, %v3117
        %v3120 = vsub.s32 32, %v3119
        %v3121 = vshll.u32 %v3112, %v3119
        %v3122 = vshrl.u32 %v3104, %v3120
        %v3123 = vor.u32 %v3121, %v3122
        %v3124 = vsub.s32 4294967266, %v3119
        %v3125 = vadd.s32 %v3124, 127
        %v3126 = vshll.u32 %v3125, 23
        %v3127 = vor.u32 4788187, %v3126
        %v3128 = vand.u32 2147483647, %v3127
        %v3130 = vcvt.s32.f32 %v3123
        %v3131 = vmul.f32 %v3130, %v3128
        %v3132 = vxor.u32 %v3131, 2147483648
        %v3133 = vsel %vm3050, %v3132, %v3131
        %v3134 = vsub.s32 4, %v3110
        %v3135 = vsel %vm3050, %v3134, %v3110
        %v3136 = vsel %vm3049, %v2311, %v3133
        %v3137 = vsel %vm3049, 0, %v3135
        %v3138 = vcosq.f32.pop %v3136
        %v3139 = vsinq.f32.pop %v3136
        %vm3140 = vweird.f32 %v2311
        %v3141 = vadd.s32 %v3137, 3
        %v3142 = vand.u32 %v3141, 3
        %vm3143 = vcmp.lt.s32.totalorder %v3142, 2
        %vm3144 = vcmp.eq.s32.totalorder %v3142, 0
        %v3145 = vxor.u32 %v3139, 2147483648
        %v3146 = vsel %vm3144, %v3138, %v3145
        %vm3147 = vcmp.eq.s32.totalorder %v3142, 2
        %v3148 = vxor.u32 %v3138, 2147483648
        %v3149 = vsel %vm3147, %v3148, %v3139
        %v3150 = vsel %vm3143, %v3146, %v3149
        %v3151 = vsel %vm3140, nan, %v3150
        %v3152 = vand.u32 2147483647, %v2312
        %vm3153 = vcmp.le.f32.partialorder %v3152, 0.7853982
        %vm3154 = vcmp.lt.s32.totalorder %v2312, 0
        %v3155 = vand.u32 %v2312, 2139095040
        %v3156 = vshrl.u32 %v3155, 23
        %v3157 = vsub.s32 %v3156, 127
        %v3158 = vand.u32 2147483647, %v2312
        %v3159 = vand.u32 %v3158, 8388607
        %v3160 = vor.u32 %v3159, 8388608
        %v3161 = vsub.s32 0, %v3160
        %v3162 = vadd.s32 %v3157, 1
        %vm3163 = vcmp.gt.s32.totalorder %v3162, 0
        %v3164 = vsel %vm3163, %v3162, 0
        %v3165 = vshrl.u32 %v3164, 5
        %v3166 = vand.u32 %v3164, 31
        %v3167 = vsub.s32 32, %v3166
        %v3168 = vshrl.u32 683565275, %v3167
        %v3169 = vshll.u32 683565275, %v3166
        %v3170 = vshrl.u32 2475754826, %v3167
        %v3171 = vor.u32 %v3169, %v3170
        %v3172 = vshll.u32 2475754826, %v3166
        %v3173 = vshrl.u32 2131351028, %v3167
        %v3174 = vor.u32 %v3172, %v3173
        %v3175 = vshll.u32 2131351028, %v3166
        %v3176 = vshrl.u32 2102212464, %v3167
        %v3177 = vor.u32 %v3175, %v3176
        %v3178 = vshll.u32 2102212464, %v3166
        %v3179 = vshrl.u32 920167782, %v3167
        %v3180 = vor.u32 %v3178, %v3179
        %v3181 = vshll.u32 920167782, %v3166
        %v3182 = vshrl.u32 1326507024, %v3167
        %v3183 = vor.u32 %v3181, %v3182
        %vm3184 = vcmp.lt.s32.totalorder %v3165, 1
        %vm3185 = vcmp.lt.s32.totalorder %v3165, 2
        %vm3186 = vcmp.lt.s32.totalorder %v3165, 3
        %vm3187 = vcmp.lt.s32.totalorder %v3165, 4
        %v3188 = vsel %vm3184, %v3168, %v3171
        %v3189 = vsel %vm3187, %v3177, 2102212464
        %v3190 = vsel %vm3186, %v3174, %v3189
        %v3191 = vsel %vm3185, %v3188, %v3190
        %v3192 = vsel %vm3184, %v3171, %v3174
        %v3193 = vsel %vm3187, %v3180, 920167782
        %v3194 = vsel %vm3186, %v3177, %v3193
        %v3195 = vsel %vm3185, %v3192, %v3194
        %v3196 = vsel %vm3184, %v3174, %v3177
        %v3197 = vsel %vm3187, %v3183, 1326507024
        %v3198 = vsel %vm3186, %v3180, %v3197
        %v3199 = vsel %vm3185, %v3196, %v3198
        %v3200 = vshll.u32 %v3160, 8
        %v3201 = vmul.u32.u64.compose %v3200, %v3199
        %v3202 = vextract.low.u32 %v3201
        %v3203 = vextract.high.u32 %v3201
        %v3204 = vmul.u32.u64.compose %v3200, %v3195
        %v3205 = vextract.low.u32 %v3204
        %v3206 = vextract.high.u32 %v3204
        %v3207 = vmul.u32 %v3200, %v3191
        %v3208 = vadd.s32 %v3203, %v3205
        %vm3209 = vc.u32 %v3203, %v3205
        %v3210 = vadd.s32 %v3206, 1
        %v3211 = vsel %vm3209, %v3210, %v3206
        %v3212 = vadd.s32 %v3207, %v3211
        %v3213 = vadd.s32 %v3212, 536870912
        %v3214 = vshrl.u32 %v3213, 30
        %v3215 = vshll.u32 %v3214, 30
        %v3216 = vsub.s32 %v3212, %v3215
        %vm3217 = vcmp.lt.s32.totalorder %v3216, 0
        %v3218 = vsub.s32 0, %v3216
        %v3219 = vsel %vm3217, %v3218, %v3216
        %v3220 = vclz %v3219
        %v3221 = vsub.s32 %v3220, 2
        %vm3222 = vcmp.gt.s32.totalorder 0, %v3221
        %v3223 = vsel %vm3222, 0, %v3221
        %v3224 = vsub.s32 32, %v3223
        %v3225 = vshll.u32 %v3216, %v3223
        %v3226 = vshrl.u32 %v3208, %v3224
        %v3227 = vor.u32 %v3225, %v3226
        %v3228 = vsub.s32 4294967266, %v3223
        %v3229 = vadd.s32 %v3228, 127
        %v3230 = vshll.u32 %v3229, 23
        %v3231 = vor.u32 4788187, %v3230
        %v3232 = vand.u32 2147483647, %v3231
        %v3234 = vcvt.s32.f32 %v3227
        %v3235 = vmul.f32 %v3234, %v3232
        %v3236 = vxor.u32 %v3235, 2147483648
        %v3237 = vsel %vm3154, %v3236, %v3235
        %v3238 = vsub.s32 4, %v3214
        %v3239 = vsel %vm3154, %v3238, %v3214
        %v3240 = vsel %vm3153, %v2312, %v3237
        %v3241 = vsel %vm3153, 0, %v3239
        %v3242 = vcosq.f32.pop %v3240
        %v3243 = vsinq.f32.pop %v3240
        %vm3244 = vweird.f32 %v2312
        %v3245 = vadd.s32 %v3241, 3
        %v3246 = vand.u32 %v3245, 3
        %vm3247 = vcmp.lt.s32.totalorder %v3246, 2
        %vm3248 = vcmp.eq.s32.totalorder %v3246, 0
        %v3249 = vxor.u32 %v3243, 2147483648
        %v3250 = vsel %vm3248, %v3242, %v3249
        %vm3251 = vcmp.eq.s32.totalorder %v3246, 2
        %v3252 = vxor.u32 %v3242, 2147483648
        %v3253 = vsel %vm3251, %v3252, %v3243
        %v3254 = vsel %vm3247, %v3250, %v3253
        %v3255 = vsel %vm3244, nan, %v3254
        %v3256 = vand.u32 2147483647, %v2313
        %vm3257 = vcmp.le.f32.partialorder %v3256, 0.7853982
        %vm3258 = vcmp.lt.s32.totalorder %v2313, 0
        %v3259 = vand.u32 %v2313, 2139095040
        %v3260 = vshrl.u32 %v3259, 23
        %v3261 = vsub.s32 %v3260, 127
        %v3262 = vand.u32 2147483647, %v2313
        %v3263 = vand.u32 %v3262, 8388607
        %v3264 = vor.u32 %v3263, 8388608
        %v3265 = vsub.s32 0, %v3264
        %v3266 = vadd.s32 %v3261, 1
        %vm3267 = vcmp.gt.s32.totalorder %v3266, 0
        %v3268 = vsel %vm3267, %v3266, 0
        %v3269 = vshrl.u32 %v3268, 5
        %v3270 = vand.u32 %v3268, 31
        %v3271 = vsub.s32 32, %v3270
        %v3272 = vshrl.u32 683565275, %v3271
        %v3273 = vshll.u32 683565275, %v3270
        %v3274 = vshrl.u32 2475754826, %v3271
        %v3275 = vor.u32 %v3273, %v3274
        %v3276 = vshll.u32 2475754826, %v3270
        %v3277 = vshrl.u32 2131351028, %v3271
        %v3278 = vor.u32 %v3276, %v3277
        %v3279 = vshll.u32 2131351028, %v3270
        %v3280 = vshrl.u32 2102212464, %v3271
        %v3281 = vor.u32 %v3279, %v3280
        %v3282 = vshll.u32 2102212464, %v3270
        %v3283 = vshrl.u32 920167782, %v3271
        %v3284 = vor.u32 %v3282, %v3283
        %v3285 = vshll.u32 920167782, %v3270
        %v3286 = vshrl.u32 1326507024, %v3271
        %v3287 = vor.u32 %v3285, %v3286
        %vm3288 = vcmp.lt.s32.totalorder %v3269, 1
        %vm3289 = vcmp.lt.s32.totalorder %v3269, 2
        %vm3290 = vcmp.lt.s32.totalorder %v3269, 3
        %vm3291 = vcmp.lt.s32.totalorder %v3269, 4
        %v3292 = vsel %vm3288, %v3272, %v3275
        %v3293 = vsel %vm3291, %v3281, 2102212464
        %v3294 = vsel %vm3290, %v3278, %v3293
        %v3295 = vsel %vm3289, %v3292, %v3294
        %v3296 = vsel %vm3288, %v3275, %v3278
        %v3297 = vsel %vm3291, %v3284, 920167782
        %v3298 = vsel %vm3290, %v3281, %v3297
        %v3299 = vsel %vm3289, %v3296, %v3298
        %v3300 = vsel %vm3288, %v3278, %v3281
        %v3301 = vsel %vm3291, %v3287, 1326507024
        %v3302 = vsel %vm3290, %v3284, %v3301
        %v3303 = vsel %vm3289, %v3300, %v3302
        %v3304 = vshll.u32 %v3264, 8
        %v3305 = vmul.u32.u64.compose %v3304, %v3303
        %v3306 = vextract.low.u32 %v3305
        %v3307 = vextract.high.u32 %v3305
        %v3308 = vmul.u32.u64.compose %v3304, %v3299
        %v3309 = vextract.low.u32 %v3308
        %v3310 = vextract.high.u32 %v3308
        %v3311 = vmul.u32 %v3304, %v3295
        %v3312 = vadd.s32 %v3307, %v3309
        %vm3313 = vc.u32 %v3307, %v3309
        %v3314 = vadd.s32 %v3310, 1
        %v3315 = vsel %vm3313, %v3314, %v3310
        %v3316 = vadd.s32 %v3311, %v3315
        %v3317 = vadd.s32 %v3316, 536870912
        %v3318 = vshrl.u32 %v3317, 30
        %v3319 = vshll.u32 %v3318, 30
        %v3320 = vsub.s32 %v3316, %v3319
        %vm3321 = vcmp.lt.s32.totalorder %v3320, 0
        %v3322 = vsub.s32 0, %v3320
        %v3323 = vsel %vm3321, %v3322, %v3320
        %v3324 = vclz %v3323
        %v3325 = vsub.s32 %v3324, 2
        %vm3326 = vcmp.gt.s32.totalorder 0, %v3325
        %v3327 = vsel %vm3326, 0, %v3325
        %v3328 = vsub.s32 32, %v3327
        %v3329 = vshll.u32 %v3320, %v3327
        %v3330 = vshrl.u32 %v3312, %v3328
        %v3331 = vor.u32 %v3329, %v3330
        %v3332 = vsub.s32 4294967266, %v3327
        %v3333 = vadd.s32 %v3332, 127
        %v3334 = vshll.u32 %v3333, 23
        %v3335 = vor.u32 4788187, %v3334
        %v3336 = vand.u32 2147483647, %v3335
        %v3338 = vcvt.s32.f32 %v3331
        %v3339 = vmul.f32 %v3338, %v3336
        %v3340 = vxor.u32 %v3339, 2147483648
        %v3341 = vsel %vm3258, %v3340, %v3339
        %v3342 = vsub.s32 4, %v3318
        %v3343 = vsel %vm3258, %v3342, %v3318
        %v3344 = vsel %vm3257, %v2313, %v3341
        %v3345 = vsel %vm3257, 0, %v3343
        %v3346 = vcosq.f32.pop %v3344
        %v3347 = vsinq.f32.pop %v3344
        %vm3348 = vweird.f32 %v2313
        %v3349 = vadd.s32 %v3345, 3
        %v3350 = vand.u32 %v3349, 3
        %vm3351 = vcmp.lt.s32.totalorder %v3350, 2
        %vm3352 = vcmp.eq.s32.totalorder %v3350, 0
        %v3353 = vxor.u32 %v3347, 2147483648
        %v3354 = vsel %vm3352, %v3346, %v3353
        %vm3355 = vcmp.eq.s32.totalorder %v3350, 2
        %v3356 = vxor.u32 %v3346, 2147483648
        %v3357 = vsel %vm3355, %v3356, %v3347
        %v3358 = vsel %vm3351, %v3354, %v3357
        %v3359 = vsel %vm3348, nan, %v3358
        %v3360 = vand.u32 2147483647, %v2314
        %vm3361 = vcmp.le.f32.partialorder %v3360, 0.7853982
        %vm3362 = vcmp.lt.s32.totalorder %v2314, 0
        %v3363 = vand.u32 %v2314, 2139095040
        %v3364 = vshrl.u32 %v3363, 23
        %v3365 = vsub.s32 %v3364, 127
        %v3366 = vand.u32 2147483647, %v2314
        %v3367 = vand.u32 %v3366, 8388607
        %v3368 = vor.u32 %v3367, 8388608
        %v3369 = vsub.s32 0, %v3368
        %v3370 = vadd.s32 %v3365, 1
        %vm3371 = vcmp.gt.s32.totalorder %v3370, 0
        %v3372 = vsel %vm3371, %v3370, 0
        %v3373 = vshrl.u32 %v3372, 5
        %v3374 = vand.u32 %v3372, 31
        %v3375 = vsub.s32 32, %v3374
        %v3376 = vshrl.u32 683565275, %v3375
        %v3377 = vshll.u32 683565275, %v3374
        %v3378 = vshrl.u32 2475754826, %v3375
        %v3379 = vor.u32 %v3377, %v3378
        %v3380 = vshll.u32 2475754826, %v3374
        %v3381 = vshrl.u32 2131351028, %v3375
        %v3382 = vor.u32 %v3380, %v3381
        %v3383 = vshll.u32 2131351028, %v3374
        %v3384 = vshrl.u32 2102212464, %v3375
        %v3385 = vor.u32 %v3383, %v3384
        %v3386 = vshll.u32 2102212464, %v3374
        %v3387 = vshrl.u32 920167782, %v3375
        %v3388 = vor.u32 %v3386, %v3387
        %v3389 = vshll.u32 920167782, %v3374
        %v3390 = vshrl.u32 1326507024, %v3375
        %v3391 = vor.u32 %v3389, %v3390
        %vm3392 = vcmp.lt.s32.totalorder %v3373, 1
        %vm3393 = vcmp.lt.s32.totalorder %v3373, 2
        %vm3394 = vcmp.lt.s32.totalorder %v3373, 3
        %vm3395 = vcmp.lt.s32.totalorder %v3373, 4
        %v3396 = vsel %vm3392, %v3376, %v3379
        %v3397 = vsel %vm3395, %v3385, 2102212464
        %v3398 = vsel %vm3394, %v3382, %v3397
        %v3399 = vsel %vm3393, %v3396, %v3398
        %v3400 = vsel %vm3392, %v3379, %v3382
        %v3401 = vsel %vm3395, %v3388, 920167782
        %v3402 = vsel %vm3394, %v3385, %v3401
        %v3403 = vsel %vm3393, %v3400, %v3402
        %v3404 = vsel %vm3392, %v3382, %v3385
        %v3405 = vsel %vm3395, %v3391, 1326507024
        %v3406 = vsel %vm3394, %v3388, %v3405
        %v3407 = vsel %vm3393, %v3404, %v3406
        %v3408 = vshll.u32 %v3368, 8
        %v3409 = vmul.u32.u64.compose %v3408, %v3407
        %v3410 = vextract.low.u32 %v3409
        %v3411 = vextract.high.u32 %v3409
        %v3412 = vmul.u32.u64.compose %v3408, %v3403
        %v3413 = vextract.low.u32 %v3412
        %v3414 = vextract.high.u32 %v3412
        %v3415 = vmul.u32 %v3408, %v3399
        %v3416 = vadd.s32 %v3411, %v3413
        %vm3417 = vc.u32 %v3411, %v3413
        %v3418 = vadd.s32 %v3414, 1
        %v3419 = vsel %vm3417, %v3418, %v3414
        %v3420 = vadd.s32 %v3415, %v3419
        %v3421 = vadd.s32 %v3420, 536870912
        %v3422 = vshrl.u32 %v3421, 30
        %v3423 = vshll.u32 %v3422, 30
        %v3424 = vsub.s32 %v3420, %v3423
        %vm3425 = vcmp.lt.s32.totalorder %v3424, 0
        %v3426 = vsub.s32 0, %v3424
        %v3427 = vsel %vm3425, %v3426, %v3424
        %v3428 = vclz %v3427
        %v3429 = vsub.s32 %v3428, 2
        %vm3430 = vcmp.gt.s32.totalorder 0, %v3429
        %v3431 = vsel %vm3430, 0, %v3429
        %v3432 = vsub.s32 32, %v3431
        %v3433 = vshll.u32 %v3424, %v3431
        %v3434 = vshrl.u32 %v3416, %v3432
        %v3435 = vor.u32 %v3433, %v3434
        %v3436 = vsub.s32 4294967266, %v3431
        %v3437 = vadd.s32 %v3436, 127
        %v3438 = vshll.u32 %v3437, 23
        %v3439 = vor.u32 4788187, %v3438
        %v3440 = vand.u32 2147483647, %v3439
        %v3442 = vcvt.s32.f32 %v3435
        %v3443 = vmul.f32 %v3442, %v3440
        %v3444 = vxor.u32 %v3443, 2147483648
        %v3445 = vsel %vm3362, %v3444, %v3443
        %v3446 = vsub.s32 4, %v3422
        %v3447 = vsel %vm3362, %v3446, %v3422
        %v3448 = vsel %vm3361, %v2314, %v3445
        %v3449 = vsel %vm3361, 0, %v3447
        %v3450 = vcosq.f32.pop %v3448
        %v3451 = vsinq.f32.pop %v3448
        %vm3452 = vweird.f32 %v2314
        %v3453 = vadd.s32 %v3449, 3
        %v3454 = vand.u32 %v3453, 3
        %vm3455 = vcmp.lt.s32.totalorder %v3454, 2
        %vm3456 = vcmp.eq.s32.totalorder %v3454, 0
        %v3457 = vxor.u32 %v3451, 2147483648
        %v3458 = vsel %vm3456, %v3450, %v3457
        %vm3459 = vcmp.eq.s32.totalorder %v3454, 2
        %v3460 = vxor.u32 %v3450, 2147483648
        %v3461 = vsel %vm3459, %v3460, %v3451
        %v3462 = vsel %vm3455, %v3458, %v3461
        %v3463 = vsel %vm3452, nan, %v3462
        %v3464 = vand.u32 2147483647, %v2315
        %vm3465 = vcmp.le.f32.partialorder %v3464, 0.7853982
        %vm3466 = vcmp.lt.s32.totalorder %v2315, 0
        %v3467 = vand.u32 %v2315, 2139095040
        %v3468 = vshrl.u32 %v3467, 23
        %v3469 = vsub.s32 %v3468, 127
        %v3470 = vand.u32 2147483647, %v2315
        %v3471 = vand.u32 %v3470, 8388607
        %v3472 = vor.u32 %v3471, 8388608
        %v3473 = vsub.s32 0, %v3472
        %v3474 = vadd.s32 %v3469, 1
        %vm3475 = vcmp.gt.s32.totalorder %v3474, 0
        %v3476 = vsel %vm3475, %v3474, 0
        %v3477 = vshrl.u32 %v3476, 5
        %v3478 = vand.u32 %v3476, 31
        %v3479 = vsub.s32 32, %v3478
        %v3480 = vshrl.u32 683565275, %v3479
        %v3481 = vshll.u32 683565275, %v3478
        %v3482 = vshrl.u32 2475754826, %v3479
        %v3483 = vor.u32 %v3481, %v3482
        %v3484 = vshll.u32 2475754826, %v3478
        %v3485 = vshrl.u32 2131351028, %v3479
        %v3486 = vor.u32 %v3484, %v3485
        %v3487 = vshll.u32 2131351028, %v3478
        %v3488 = vshrl.u32 2102212464, %v3479
        %v3489 = vor.u32 %v3487, %v3488
        %v3490 = vshll.u32 2102212464, %v3478
        %v3491 = vshrl.u32 920167782, %v3479
        %v3492 = vor.u32 %v3490, %v3491
        %v3493 = vshll.u32 920167782, %v3478
        %v3494 = vshrl.u32 1326507024, %v3479
        %v3495 = vor.u32 %v3493, %v3494
        %vm3496 = vcmp.lt.s32.totalorder %v3477, 1
        %vm3497 = vcmp.lt.s32.totalorder %v3477, 2
        %vm3498 = vcmp.lt.s32.totalorder %v3477, 3
        %vm3499 = vcmp.lt.s32.totalorder %v3477, 4
        %v3500 = vsel %vm3496, %v3480, %v3483
        %v3501 = vsel %vm3499, %v3489, 2102212464
        %v3502 = vsel %vm3498, %v3486, %v3501
        %v3503 = vsel %vm3497, %v3500, %v3502
        %v3504 = vsel %vm3496, %v3483, %v3486
        %v3505 = vsel %vm3499, %v3492, 920167782
        %v3506 = vsel %vm3498, %v3489, %v3505
        %v3507 = vsel %vm3497, %v3504, %v3506
        %v3508 = vsel %vm3496, %v3486, %v3489
        %v3509 = vsel %vm3499, %v3495, 1326507024
        %v3510 = vsel %vm3498, %v3492, %v3509
        %v3511 = vsel %vm3497, %v3508, %v3510
        %v3512 = vshll.u32 %v3472, 8
        %v3513 = vmul.u32.u64.compose %v3512, %v3511
        %v3514 = vextract.low.u32 %v3513
        %v3515 = vextract.high.u32 %v3513
        %v3516 = vmul.u32.u64.compose %v3512, %v3507
        %v3517 = vextract.low.u32 %v3516
        %v3518 = vextract.high.u32 %v3516
        %v3519 = vmul.u32 %v3512, %v3503
        %v3520 = vadd.s32 %v3515, %v3517
        %vm3521 = vc.u32 %v3515, %v3517
        %v3522 = vadd.s32 %v3518, 1
        %v3523 = vsel %vm3521, %v3522, %v3518
        %v3524 = vadd.s32 %v3519, %v3523
        %v3525 = vadd.s32 %v3524, 536870912
        %v3526 = vshrl.u32 %v3525, 30
        %v3527 = vshll.u32 %v3526, 30
        %v3528 = vsub.s32 %v3524, %v3527
        %vm3529 = vcmp.lt.s32.totalorder %v3528, 0
        %v3530 = vsub.s32 0, %v3528
        %v3531 = vsel %vm3529, %v3530, %v3528
        %v3532 = vclz %v3531
        %v3533 = vsub.s32 %v3532, 2
        %vm3534 = vcmp.gt.s32.totalorder 0, %v3533
        %v3535 = vsel %vm3534, 0, %v3533
        %v3536 = vsub.s32 32, %v3535
        %v3537 = vshll.u32 %v3528, %v3535
        %v3538 = vshrl.u32 %v3520, %v3536
        %v3539 = vor.u32 %v3537, %v3538
        %v3540 = vsub.s32 4294967266, %v3535
        %v3541 = vadd.s32 %v3540, 127
        %v3542 = vshll.u32 %v3541, 23
        %v3543 = vor.u32 4788187, %v3542
        %v3544 = vand.u32 2147483647, %v3543
        %v3546 = vcvt.s32.f32 %v3539
        %v3547 = vmul.f32 %v3546, %v3544
        %v3548 = vxor.u32 %v3547, 2147483648
        %v3549 = vsel %vm3466, %v3548, %v3547
        %v3550 = vsub.s32 4, %v3526
        %v3551 = vsel %vm3466, %v3550, %v3526
        %v3552 = vsel %vm3465, %v2315, %v3549
        %v3553 = vsel %vm3465, 0, %v3551
        %v3554 = vcosq.f32.pop %v3552
        %v3555 = vsinq.f32.pop %v3552
        %vm3556 = vweird.f32 %v2315
        %v3557 = vadd.s32 %v3553, 3
        %v3558 = vand.u32 %v3557, 3
        %vm3559 = vcmp.lt.s32.totalorder %v3558, 2
        %vm3560 = vcmp.eq.s32.totalorder %v3558, 0
        %v3561 = vxor.u32 %v3555, 2147483648
        %v3562 = vsel %vm3560, %v3554, %v3561
        %vm3563 = vcmp.eq.s32.totalorder %v3558, 2
        %v3564 = vxor.u32 %v3554, 2147483648
        %v3565 = vsel %vm3563, %v3564, %v3555
        %v3566 = vsel %vm3559, %v3562, %v3565
        %v3567 = vsel %vm3556, nan, %v3566
        %v3568 = vand.u32 2147483647, %v2316
        %vm3569 = vcmp.le.f32.partialorder %v3568, 0.7853982
        %vm3570 = vcmp.lt.s32.totalorder %v2316, 0
        %v3571 = vand.u32 %v2316, 2139095040
        %v3572 = vshrl.u32 %v3571, 23
        %v3573 = vsub.s32 %v3572, 127
        %v3574 = vand.u32 2147483647, %v2316
        %v3575 = vand.u32 %v3574, 8388607
        %v3576 = vor.u32 %v3575, 8388608
        %v3577 = vsub.s32 0, %v3576
        %v3578 = vadd.s32 %v3573, 1
        %vm3579 = vcmp.gt.s32.totalorder %v3578, 0
        %v3580 = vsel %vm3579, %v3578, 0
        %v3581 = vshrl.u32 %v3580, 5
        %v3582 = vand.u32 %v3580, 31
        %v3583 = vsub.s32 32, %v3582
        %v3584 = vshrl.u32 683565275, %v3583
        %v3585 = vshll.u32 683565275, %v3582
        %v3586 = vshrl.u32 2475754826, %v3583
        %v3587 = vor.u32 %v3585, %v3586
        %v3588 = vshll.u32 2475754826, %v3582
        %v3589 = vshrl.u32 2131351028, %v3583
        %v3590 = vor.u32 %v3588, %v3589
        %v3591 = vshll.u32 2131351028, %v3582
        %v3592 = vshrl.u32 2102212464, %v3583
        %v3593 = vor.u32 %v3591, %v3592
        %v3594 = vshll.u32 2102212464, %v3582
        %v3595 = vshrl.u32 920167782, %v3583
        %v3596 = vor.u32 %v3594, %v3595
        %v3597 = vshll.u32 920167782, %v3582
        %v3598 = vshrl.u32 1326507024, %v3583
        %v3599 = vor.u32 %v3597, %v3598
        %vm3600 = vcmp.lt.s32.totalorder %v3581, 1
        %vm3601 = vcmp.lt.s32.totalorder %v3581, 2
        %vm3602 = vcmp.lt.s32.totalorder %v3581, 3
        %vm3603 = vcmp.lt.s32.totalorder %v3581, 4
        %v3604 = vsel %vm3600, %v3584, %v3587
        %v3605 = vsel %vm3603, %v3593, 2102212464
        %v3606 = vsel %vm3602, %v3590, %v3605
        %v3607 = vsel %vm3601, %v3604, %v3606
        %v3608 = vsel %vm3600, %v3587, %v3590
        %v3609 = vsel %vm3603, %v3596, 920167782
        %v3610 = vsel %vm3602, %v3593, %v3609
        %v3611 = vsel %vm3601, %v3608, %v3610
        %v3612 = vsel %vm3600, %v3590, %v3593
        %v3613 = vsel %vm3603, %v3599, 1326507024
        %v3614 = vsel %vm3602, %v3596, %v3613
        %v3615 = vsel %vm3601, %v3612, %v3614
        %v3616 = vshll.u32 %v3576, 8
        %v3617 = vmul.u32.u64.compose %v3616, %v3615
        %v3618 = vextract.low.u32 %v3617
        %v3619 = vextract.high.u32 %v3617
        %v3620 = vmul.u32.u64.compose %v3616, %v3611
        %v3621 = vextract.low.u32 %v3620
        %v3622 = vextract.high.u32 %v3620
        %v3623 = vmul.u32 %v3616, %v3607
        %v3624 = vadd.s32 %v3619, %v3621
        %vm3625 = vc.u32 %v3619, %v3621
        %v3626 = vadd.s32 %v3622, 1
        %v3627 = vsel %vm3625, %v3626, %v3622
        %v3628 = vadd.s32 %v3623, %v3627
        %v3629 = vadd.s32 %v3628, 536870912
        %v3630 = vshrl.u32 %v3629, 30
        %v3631 = vshll.u32 %v3630, 30
        %v3632 = vsub.s32 %v3628, %v3631
        %vm3633 = vcmp.lt.s32.totalorder %v3632, 0
        %v3634 = vsub.s32 0, %v3632
        %v3635 = vsel %vm3633, %v3634, %v3632
        %v3636 = vclz %v3635
        %v3637 = vsub.s32 %v3636, 2
        %vm3638 = vcmp.gt.s32.totalorder 0, %v3637
        %v3639 = vsel %vm3638, 0, %v3637
        %v3640 = vsub.s32 32, %v3639
        %v3641 = vshll.u32 %v3632, %v3639
        %v3642 = vshrl.u32 %v3624, %v3640
        %v3643 = vor.u32 %v3641, %v3642
        %v3644 = vsub.s32 4294967266, %v3639
        %v3645 = vadd.s32 %v3644, 127
        %v3646 = vshll.u32 %v3645, 23
        %v3647 = vor.u32 4788187, %v3646
        %v3648 = vand.u32 2147483647, %v3647
        %v3650 = vcvt.s32.f32 %v3643
        %v3651 = vmul.f32 %v3650, %v3648
        %v3652 = vxor.u32 %v3651, 2147483648
        %v3653 = vsel %vm3570, %v3652, %v3651
        %v3654 = vsub.s32 4, %v3630
        %v3655 = vsel %vm3570, %v3654, %v3630
        %v3656 = vsel %vm3569, %v2316, %v3653
        %v3657 = vsel %vm3569, 0, %v3655
        %v3658 = vcosq.f32.pop %v3656
        %v3659 = vsinq.f32.pop %v3656
        %vm3660 = vweird.f32 %v2316
        %v3661 = vadd.s32 %v3657, 3
        %v3662 = vand.u32 %v3661, 3
        %vm3663 = vcmp.lt.s32.totalorder %v3662, 2
        %vm3664 = vcmp.eq.s32.totalorder %v3662, 0
        %v3665 = vxor.u32 %v3659, 2147483648
        %v3666 = vsel %vm3664, %v3658, %v3665
        %vm3667 = vcmp.eq.s32.totalorder %v3662, 2
        %v3668 = vxor.u32 %v3658, 2147483648
        %v3669 = vsel %vm3667, %v3668, %v3659
        %v3670 = vsel %vm3663, %v3666, %v3669
        %v3671 = vsel %vm3660, nan, %v3670
        %v3672 = vand.u32 2147483647, %v2317
        %vm3673 = vcmp.le.f32.partialorder %v3672, 0.7853982
        %vm3674 = vcmp.lt.s32.totalorder %v2317, 0
        %v3675 = vand.u32 %v2317, 2139095040
        %v3676 = vshrl.u32 %v3675, 23
        %v3677 = vsub.s32 %v3676, 127
        %v3678 = vand.u32 2147483647, %v2317
        %v3679 = vand.u32 %v3678, 8388607
        %v3680 = vor.u32 %v3679, 8388608
        %v3681 = vsub.s32 0, %v3680
        %v3682 = vadd.s32 %v3677, 1
        %vm3683 = vcmp.gt.s32.totalorder %v3682, 0
        %v3684 = vsel %vm3683, %v3682, 0
        %v3685 = vshrl.u32 %v3684, 5
        %v3686 = vand.u32 %v3684, 31
        %v3687 = vsub.s32 32, %v3686
        %v3688 = vshrl.u32 683565275, %v3687
        %v3689 = vshll.u32 683565275, %v3686
        %v3690 = vshrl.u32 2475754826, %v3687
        %v3691 = vor.u32 %v3689, %v3690
        %v3692 = vshll.u32 2475754826, %v3686
        %v3693 = vshrl.u32 2131351028, %v3687
        %v3694 = vor.u32 %v3692, %v3693
        %v3695 = vshll.u32 2131351028, %v3686
        %v3696 = vshrl.u32 2102212464, %v3687
        %v3697 = vor.u32 %v3695, %v3696
        %v3698 = vshll.u32 2102212464, %v3686
        %v3699 = vshrl.u32 920167782, %v3687
        %v3700 = vor.u32 %v3698, %v3699
        %v3701 = vshll.u32 920167782, %v3686
        %v3702 = vshrl.u32 1326507024, %v3687
        %v3703 = vor.u32 %v3701, %v3702
        %vm3704 = vcmp.lt.s32.totalorder %v3685, 1
        %vm3705 = vcmp.lt.s32.totalorder %v3685, 2
        %vm3706 = vcmp.lt.s32.totalorder %v3685, 3
        %vm3707 = vcmp.lt.s32.totalorder %v3685, 4
        %v3708 = vsel %vm3704, %v3688, %v3691
        %v3709 = vsel %vm3707, %v3697, 2102212464
        %v3710 = vsel %vm3706, %v3694, %v3709
        %v3711 = vsel %vm3705, %v3708, %v3710
        %v3712 = vsel %vm3704, %v3691, %v3694
        %v3713 = vsel %vm3707, %v3700, 920167782
        %v3714 = vsel %vm3706, %v3697, %v3713
        %v3715 = vsel %vm3705, %v3712, %v3714
        %v3716 = vsel %vm3704, %v3694, %v3697
        %v3717 = vsel %vm3707, %v3703, 1326507024
        %v3718 = vsel %vm3706, %v3700, %v3717
        %v3719 = vsel %vm3705, %v3716, %v3718
        %v3720 = vshll.u32 %v3680, 8
        %v3721 = vmul.u32.u64.compose %v3720, %v3719
        %v3722 = vextract.low.u32 %v3721
        %v3723 = vextract.high.u32 %v3721
        %v3724 = vmul.u32.u64.compose %v3720, %v3715
        %v3725 = vextract.low.u32 %v3724
        %v3726 = vextract.high.u32 %v3724
        %v3727 = vmul.u32 %v3720, %v3711
        %v3728 = vadd.s32 %v3723, %v3725
        %vm3729 = vc.u32 %v3723, %v3725
        %v3730 = vadd.s32 %v3726, 1
        %v3731 = vsel %vm3729, %v3730, %v3726
        %v3732 = vadd.s32 %v3727, %v3731
        %v3733 = vadd.s32 %v3732, 536870912
        %v3734 = vshrl.u32 %v3733, 30
        %v3735 = vshll.u32 %v3734, 30
        %v3736 = vsub.s32 %v3732, %v3735
        %vm3737 = vcmp.lt.s32.totalorder %v3736, 0
        %v3738 = vsub.s32 0, %v3736
        %v3739 = vsel %vm3737, %v3738, %v3736
        %v3740 = vclz %v3739
        %v3741 = vsub.s32 %v3740, 2
        %vm3742 = vcmp.gt.s32.totalorder 0, %v3741
        %v3743 = vsel %vm3742, 0, %v3741
        %v3744 = vsub.s32 32, %v3743
        %v3745 = vshll.u32 %v3736, %v3743
        %v3746 = vshrl.u32 %v3728, %v3744
        %v3747 = vor.u32 %v3745, %v3746
        %v3748 = vsub.s32 4294967266, %v3743
        %v3749 = vadd.s32 %v3748, 127
        %v3750 = vshll.u32 %v3749, 23
        %v3751 = vor.u32 4788187, %v3750
        %v3752 = vand.u32 2147483647, %v3751
        %v3754 = vcvt.s32.f32 %v3747
        %v3755 = vmul.f32 %v3754, %v3752
        %v3756 = vxor.u32 %v3755, 2147483648
        %v3757 = vsel %vm3674, %v3756, %v3755
        %v3758 = vsub.s32 4, %v3734
        %v3759 = vsel %vm3674, %v3758, %v3734
        %v3760 = vsel %vm3673, %v2317, %v3757
        %v3761 = vsel %vm3673, 0, %v3759
        %v3762 = vcosq.f32.pop %v3760
        %v3763 = vsinq.f32.pop %v3760
        %vm3764 = vweird.f32 %v2317
        %v3765 = vadd.s32 %v3761, 3
        %v3766 = vand.u32 %v3765, 3
        %vm3767 = vcmp.lt.s32.totalorder %v3766, 2
        %vm3768 = vcmp.eq.s32.totalorder %v3766, 0
        %v3769 = vxor.u32 %v3763, 2147483648
        %v3770 = vsel %vm3768, %v3762, %v3769
        %vm3771 = vcmp.eq.s32.totalorder %v3766, 2
        %v3772 = vxor.u32 %v3762, 2147483648
        %v3773 = vsel %vm3771, %v3772, %v3763
        %v3774 = vsel %vm3767, %v3770, %v3773
        %v3775 = vsel %vm3764, nan, %v3774
        %v3776 = vand.u32 2147483647, %v2318
        %vm3777 = vcmp.le.f32.partialorder %v3776, 0.7853982
        %vm3778 = vcmp.lt.s32.totalorder %v2318, 0
        %v3779 = vand.u32 %v2318, 2139095040
        %v3780 = vshrl.u32 %v3779, 23
        %v3781 = vsub.s32 %v3780, 127
        %v3782 = vand.u32 2147483647, %v2318
        %v3783 = vand.u32 %v3782, 8388607
        %v3784 = vor.u32 %v3783, 8388608
        %v3785 = vsub.s32 0, %v3784
        %v3786 = vadd.s32 %v3781, 1
        %vm3787 = vcmp.gt.s32.totalorder %v3786, 0
        %v3788 = vsel %vm3787, %v3786, 0
        %v3789 = vshrl.u32 %v3788, 5
        %v3790 = vand.u32 %v3788, 31
        %v3791 = vsub.s32 32, %v3790
        %v3792 = vshrl.u32 683565275, %v3791
        %v3793 = vshll.u32 683565275, %v3790
        %v3794 = vshrl.u32 2475754826, %v3791
        %v3795 = vor.u32 %v3793, %v3794
        %v3796 = vshll.u32 2475754826, %v3790
        %v3797 = vshrl.u32 2131351028, %v3791
        %v3798 = vor.u32 %v3796, %v3797
        %v3799 = vshll.u32 2131351028, %v3790
        %v3800 = vshrl.u32 2102212464, %v3791
        %v3801 = vor.u32 %v3799, %v3800
        %v3802 = vshll.u32 2102212464, %v3790
        %v3803 = vshrl.u32 920167782, %v3791
        %v3804 = vor.u32 %v3802, %v3803
        %v3805 = vshll.u32 920167782, %v3790
        %v3806 = vshrl.u32 1326507024, %v3791
        %v3807 = vor.u32 %v3805, %v3806
        %vm3808 = vcmp.lt.s32.totalorder %v3789, 1
        %vm3809 = vcmp.lt.s32.totalorder %v3789, 2
        %vm3810 = vcmp.lt.s32.totalorder %v3789, 3
        %vm3811 = vcmp.lt.s32.totalorder %v3789, 4
        %v3812 = vsel %vm3808, %v3792, %v3795
        %v3813 = vsel %vm3811, %v3801, 2102212464
        %v3814 = vsel %vm3810, %v3798, %v3813
        %v3815 = vsel %vm3809, %v3812, %v3814
        %v3816 = vsel %vm3808, %v3795, %v3798
        %v3817 = vsel %vm3811, %v3804, 920167782
        %v3818 = vsel %vm3810, %v3801, %v3817
        %v3819 = vsel %vm3809, %v3816, %v3818
        %v3820 = vsel %vm3808, %v3798, %v3801
        %v3821 = vsel %vm3811, %v3807, 1326507024
        %v3822 = vsel %vm3810, %v3804, %v3821
        %v3823 = vsel %vm3809, %v3820, %v3822
        %v3824 = vshll.u32 %v3784, 8
        %v3825 = vmul.u32.u64.compose %v3824, %v3823
        %v3826 = vextract.low.u32 %v3825
        %v3827 = vextract.high.u32 %v3825
        %v3828 = vmul.u32.u64.compose %v3824, %v3819
        %v3829 = vextract.low.u32 %v3828
        %v3830 = vextract.high.u32 %v3828
        %v3831 = vmul.u32 %v3824, %v3815
        %v3832 = vadd.s32 %v3827, %v3829
        %vm3833 = vc.u32 %v3827, %v3829
        %v3834 = vadd.s32 %v3830, 1
        %v3835 = vsel %vm3833, %v3834, %v3830
        %v3836 = vadd.s32 %v3831, %v3835
        %v3837 = vadd.s32 %v3836, 536870912
        %v3838 = vshrl.u32 %v3837, 30
        %v3839 = vshll.u32 %v3838, 30
        %v3840 = vsub.s32 %v3836, %v3839
        %vm3841 = vcmp.lt.s32.totalorder %v3840, 0
        %v3842 = vsub.s32 0, %v3840
        %v3843 = vsel %vm3841, %v3842, %v3840
        %v3844 = vclz %v3843
        %v3845 = vsub.s32 %v3844, 2
        %vm3846 = vcmp.gt.s32.totalorder 0, %v3845
        %v3847 = vsel %vm3846, 0, %v3845
        %v3848 = vsub.s32 32, %v3847
        %v3849 = vshll.u32 %v3840, %v3847
        %v3850 = vshrl.u32 %v3832, %v3848
        %v3851 = vor.u32 %v3849, %v3850
        %v3852 = vsub.s32 4294967266, %v3847
        %v3853 = vadd.s32 %v3852, 127
        %v3854 = vshll.u32 %v3853, 23
        %v3855 = vor.u32 4788187, %v3854
        %v3856 = vand.u32 2147483647, %v3855
        %v3858 = vcvt.s32.f32 %v3851
        %v3859 = vmul.f32 %v3858, %v3856
        %v3860 = vxor.u32 %v3859, 2147483648
        %v3861 = vsel %vm3778, %v3860, %v3859
        %v3862 = vsub.s32 4, %v3838
        %v3863 = vsel %vm3778, %v3862, %v3838
        %v3864 = vsel %vm3777, %v2318, %v3861
        %v3865 = vsel %vm3777, 0, %v3863
        %v3866 = vcosq.f32.pop %v3864
        %v3867 = vsinq.f32.pop %v3864
        %vm3868 = vweird.f32 %v2318
        %v3869 = vadd.s32 %v3865, 3
        %v3870 = vand.u32 %v3869, 3
        %vm3871 = vcmp.lt.s32.totalorder %v3870, 2
        %vm3872 = vcmp.eq.s32.totalorder %v3870, 0
        %v3873 = vxor.u32 %v3867, 2147483648
        %v3874 = vsel %vm3872, %v3866, %v3873
        %vm3875 = vcmp.eq.s32.totalorder %v3870, 2
        %v3876 = vxor.u32 %v3866, 2147483648
        %v3877 = vsel %vm3875, %v3876, %v3867
        %v3878 = vsel %vm3871, %v3874, %v3877
        %v3879 = vsel %vm3868, nan, %v3878
        %v3880 = vand.u32 2147483647, %v2319
        %vm3881 = vcmp.le.f32.partialorder %v3880, 0.7853982
        %vm3882 = vcmp.lt.s32.totalorder %v2319, 0
        %v3883 = vand.u32 %v2319, 2139095040
        %v3884 = vshrl.u32 %v3883, 23
        %v3885 = vsub.s32 %v3884, 127
        %v3886 = vand.u32 2147483647, %v2319
        %v3887 = vand.u32 %v3886, 8388607
        %v3888 = vor.u32 %v3887, 8388608
        %v3889 = vsub.s32 0, %v3888
        %v3890 = vadd.s32 %v3885, 1
        %vm3891 = vcmp.gt.s32.totalorder %v3890, 0
        %v3892 = vsel %vm3891, %v3890, 0
        %v3893 = vshrl.u32 %v3892, 5
        %v3894 = vand.u32 %v3892, 31
        %v3895 = vsub.s32 32, %v3894
        %v3896 = vshrl.u32 683565275, %v3895
        %v3897 = vshll.u32 683565275, %v3894
        %v3898 = vshrl.u32 2475754826, %v3895
        %v3899 = vor.u32 %v3897, %v3898
        %v3900 = vshll.u32 2475754826, %v3894
        %v3901 = vshrl.u32 2131351028, %v3895
        %v3902 = vor.u32 %v3900, %v3901
        %v3903 = vshll.u32 2131351028, %v3894
        %v3904 = vshrl.u32 2102212464, %v3895
        %v3905 = vor.u32 %v3903, %v3904
        %v3906 = vshll.u32 2102212464, %v3894
        %v3907 = vshrl.u32 920167782, %v3895
        %v3908 = vor.u32 %v3906, %v3907
        %v3909 = vshll.u32 920167782, %v3894
        %v3910 = vshrl.u32 1326507024, %v3895
        %v3911 = vor.u32 %v3909, %v3910
        %vm3912 = vcmp.lt.s32.totalorder %v3893, 1
        %vm3913 = vcmp.lt.s32.totalorder %v3893, 2
        %vm3914 = vcmp.lt.s32.totalorder %v3893, 3
        %vm3915 = vcmp.lt.s32.totalorder %v3893, 4
        %v3916 = vsel %vm3912, %v3896, %v3899
        %v3917 = vsel %vm3915, %v3905, 2102212464
        %v3918 = vsel %vm3914, %v3902, %v3917
        %v3919 = vsel %vm3913, %v3916, %v3918
        %v3920 = vsel %vm3912, %v3899, %v3902
        %v3921 = vsel %vm3915, %v3908, 920167782
        %v3922 = vsel %vm3914, %v3905, %v3921
        %v3923 = vsel %vm3913, %v3920, %v3922
        %v3924 = vsel %vm3912, %v3902, %v3905
        %v3925 = vsel %vm3915, %v3911, 1326507024
        %v3926 = vsel %vm3914, %v3908, %v3925
        %v3927 = vsel %vm3913, %v3924, %v3926
        %v3928 = vshll.u32 %v3888, 8
        %v3929 = vmul.u32.u64.compose %v3928, %v3927
        %v3930 = vextract.low.u32 %v3929
        %v3931 = vextract.high.u32 %v3929
        %v3932 = vmul.u32.u64.compose %v3928, %v3923
        %v3933 = vextract.low.u32 %v3932
        %v3934 = vextract.high.u32 %v3932
        %v3935 = vmul.u32 %v3928, %v3919
        %v3936 = vadd.s32 %v3931, %v3933
        %vm3937 = vc.u32 %v3931, %v3933
        %v3938 = vadd.s32 %v3934, 1
        %v3939 = vsel %vm3937, %v3938, %v3934
        %v3940 = vadd.s32 %v3935, %v3939
        %v3941 = vadd.s32 %v3940, 536870912
        %v3942 = vshrl.u32 %v3941, 30
        %v3943 = vshll.u32 %v3942, 30
        %v3944 = vsub.s32 %v3940, %v3943
        %vm3945 = vcmp.lt.s32.totalorder %v3944, 0
        %v3946 = vsub.s32 0, %v3944
        %v3947 = vsel %vm3945, %v3946, %v3944
        %v3948 = vclz %v3947
        %v3949 = vsub.s32 %v3948, 2
        %vm3950 = vcmp.gt.s32.totalorder 0, %v3949
        %v3951 = vsel %vm3950, 0, %v3949
        %v3952 = vsub.s32 32, %v3951
        %v3953 = vshll.u32 %v3944, %v3951
        %v3954 = vshrl.u32 %v3936, %v3952
        %v3955 = vor.u32 %v3953, %v3954
        %v3956 = vsub.s32 4294967266, %v3951
        %v3957 = vadd.s32 %v3956, 127
        %v3958 = vshll.u32 %v3957, 23
        %v3959 = vor.u32 4788187, %v3958
        %v3960 = vand.u32 2147483647, %v3959
        %v3962 = vcvt.s32.f32 %v3955
        %v3963 = vmul.f32 %v3962, %v3960
        %v3964 = vxor.u32 %v3963, 2147483648
        %v3965 = vsel %vm3882, %v3964, %v3963
        %v3966 = vsub.s32 4, %v3942
        %v3967 = vsel %vm3882, %v3966, %v3942
        %v3968 = vsel %vm3881, %v2319, %v3965
        %v3969 = vsel %vm3881, 0, %v3967
        %v3970 = vcosq.f32.pop %v3968
        %v3971 = vsinq.f32.pop %v3968
        %vm3972 = vweird.f32 %v2319
        %v3973 = vadd.s32 %v3969, 3
        %v3974 = vand.u32 %v3973, 3
        %vm3975 = vcmp.lt.s32.totalorder %v3974, 2
        %vm3976 = vcmp.eq.s32.totalorder %v3974, 0
        %v3977 = vxor.u32 %v3971, 2147483648
        %v3978 = vsel %vm3976, %v3970, %v3977
        %vm3979 = vcmp.eq.s32.totalorder %v3974, 2
        %v3980 = vxor.u32 %v3970, 2147483648
        %v3981 = vsel %vm3979, %v3980, %v3971
        %v3982 = vsel %vm3975, %v3978, %v3981
        %v3983 = vsel %vm3972, nan, %v3982
        %3984 = vst [vmem:[%s232 + $0x80] sm:$0xff] %v2423
        %3985 = vst [vmem:[%s232 + $0x88] sm:$0xff] %v2527
        %3986 = vst [vmem:[%s232 + $0x90] sm:$0xff] %v2631
        %3987 = vst [vmem:[%s232 + $0x98] sm:$0xff] %v2735
        %3988 = vst [vmem:[%s232 + $0xa0] sm:$0xff] %v2839
        %3989 = vst [vmem:[%s232 + $0xa8] sm:$0xff] %v2943
        %3990 = vst [vmem:[%s232 + $0xb0] sm:$0xff] %v3047
        %3991 = vst [vmem:[%s232 + $0xb8] sm:$0xff] %v3151
        %3992 = vst [vmem:[%s232 + $0xc0] sm:$0xff] %v3255
        %3993 = vst [vmem:[%s232 + $0xc8] sm:$0xff] %v3359
        %3994 = vst [vmem:[%s232 + $0xd0] sm:$0xff] %v3463
        %3995 = vst [vmem:[%s232 + $0xd8] sm:$0xff] %v3567
        %3996 = vst [vmem:[%s232 + $0xe0] sm:$0xff] %v3671
        %3997 = vst [vmem:[%s232 + $0xe8] sm:$0xff] %v3775
        %3998 = vst [vmem:[%s232 + $0xf0] sm:$0xff] %v3879
        %3999 = vst [vmem:[%s232 + $0xf8] sm:$0xff] %v3983
        %s4000 = sand.u32 %s141, 1
        %s4001 = scalar_lea.sflag [#allocation4], %s4000
        %s4002 = sand.u32 %s141, 1
        %s4003 = smul.addr %s4002, 256
        %s4004 = scalar_lea.vmem [#allocation3], %s4003
        // Predicated region
        $region41: #{tpu_custom_call.1} parent=35 // pred_check
          %p4005 = pneg %p151
        $region42: #{tpu_custom_call.1} parent=35 // pred_check_branch
          %4007 = sbr.rel (%p4005) target = $region44
        $region43: #{tpu_custom_call.1} parent=35 // pred_region
          %s4009 = ssub.s32 4096, 4096
          %4010 = vsyncadd %s4001, %s4009
          %s4011 = smul.addr %s23, 64
          %s4012 = sadd.s32 %s22, %s4011
          %s4013 = smul.addr %s4012, 128
          %s4014 = scalar_lea.hbm %s4, %s4013
          %s4015 = sshll.u32 %s4004, 4
          %s4016 = int_to_ptr.vmem [resolvable:$true] %s4015
          %4021 = dma.vmem_to_hbm [thread:$0]  %s4016, 4096, %s4014, %s4001, 128, 256, 8
        $region44: #{tpu_custom_call.1} parent=35 // pred_fallthru
          _
      $region36: #{tpu_custom_call.1} parent=5 // pred_fallthru
        _
      %p4022 = scmp.le.s32.totalorder 2, %s13
      // Predicated region
      $region45: #{tpu_custom_call.1} parent=5 // pred_check
        %p4023 = pneg %p4022
      $region46: #{tpu_custom_call.1} parent=5 // pred_check_branch
        %4025 = sbr.rel (%p4023) target = $region48
      $region47: #{tpu_custom_call.1} parent=5 // pred_region
        %s4026 = ssub.s32 %s13, 2
        // Predicated region
        $region49: #{tpu_custom_call.1} parent=47 // pred_check
          %p4027 = pneg %p157
        $region50: #{tpu_custom_call.1} parent=47 // pred_check_branch
          %4029 = sbr.rel (%p4027) target = $region52
        $region51: #{tpu_custom_call.1} parent=47 // pred_region
          %s4030 = sand.u32 %s142, 1
          %s4031 = scalar_lea.sflag [#allocation4], %s4030
          %s4032 = sand.u32 %s142, 1
          %s4033 = smul.addr %s4032, 256
          %s4034 = scalar_lea.vmem [#allocation3], %s4033
          %4035 = dma.done %s4031, 4096
        $region52: #{tpu_custom_call.1} parent=47 // pred_fallthru
          _
      $region48: #{tpu_custom_call.1} parent=5 // pred_fallthru
        _
    $region6: #{tpu_custom_call.1} parent=1 // loop_footer
      %s17 = sadd.s32 1, %s13
    $region7: #{tpu_custom_call.1} parent=1 // loop_footer_branch
      %12 = sbr.rel target = $region3
    $region8: #{tpu_custom_call.1} parent=1 // loop_exit
      _
    %4036 = vsyncpa [#allocation4], 1
    %s4037 = scalar_lea.sflag [#allocation4], 1
    %4038 = vsyncpa %s4037, 1

</llo_original>
